<compile_context>
chip_gen: v6e
topology: v6e:2x2x1
jax: 0.10.0
libtpu: 0.0.40
codegen_flags: <defaults>
</compile_context>

<pallas_src>
import functools

import numpy as np
import jax
import jax.numpy as jnp
from jax.experimental import pallas as pl
from jax.experimental.pallas import tpu as pltpu


_CN = 8  # negative-axis chunk width (slab sublane dim); 8 = native sublane count


def _round_up(x, m):
    return (x + m - 1) // m * m


def _vmem_limit_bytes():
    """Generation-aware VMEM request: ~3/4 of physical (48 MiB v7x, 96 MiB v5e/v6e)."""
    try:
        cap = int(pltpu.get_tpu_info().vmem_capacity_bytes)
    except Exception:  # pragma: no cover - no TPU info available
        cap = 128 * 1024 * 1024
    return max(32 * 1024 * 1024, (cap * 3) // 4)


def _choose_tile_m(n_pad, e_pad, vmem_limit):
    """Largest anchor tile whose per-step working set fits ~60% of the VMEM limit."""
    budget = int(vmem_limit * 0.6)
    # Constant-index inputs (full candidate embeddings + label / |e|^2 rows) are
    # double-buffered by the pipeline -> count them twice.
    const_bytes = 2 * (n_pad * e_pad + 2 * n_pad) * 4
    for tm in (256, 128, 64, 32, 16, 8):
        if n_pad % tm:
            continue
        slab = tm * _CN * n_pad * 4                      # one (TM, CN, N) f32 slab
        per_step = (3 * slab                             # slab + temps + hoisted broadcast
                    + 5 * tm * n_pad * 4                 # dist/d_ap/d_an values + an^T scratch
                    + 2 * tm * e_pad * 4                 # double-buffered anchor block
                    + const_bytes)
        if per_step <= budget:
            return tm
    return 8


def _triplet_tile_kernel(a_emb_ref, a_sq_ref, a_lab_ref, emb_ref, lab_ref, sq_ref,
                         sum_ref, cnt_ref,
                         apm_ref, an_t_ref, acc_s_ref, acc_c_ref,
                         *, margin, n_valid, cn):
    tm = a_emb_ref.shape[0]
    n_pad = emb_ref.shape[0]
    n_chunks = n_pad // cn

    ea = a_emb_ref[...]                  # (TM, Ep)  f32  anchor tile
    e = emb_ref[...]                     # (Np, Ep)  f32  all candidates
    a_sq = a_sq_ref[...]                 # (TM, 1)   f32  anchor |e|^2 (precomputed)
    sq = sq_ref[...]                     # (1, Np)   f32  candidate |e|^2
    lab_a = a_lab_ref[...]               # (TM, 1)   i32
    lab = lab_ref[...]                   # (1, Np)   i32

    # ---- pairwise distances: anchor tile vs all candidates (TM, Np) ---------
    gram = jax.lax.dot_general(ea, e, (((1,), (1,)), ((), ())),
                               preferred_element_type=jnp.float32)
    d2 = jnp.maximum(sq - 2.0 * gram + a_sq, 0.0)
    zero = d2 == 0.0
    dist = jnp.where(zero, 0.0, jnp.sqrt(jnp.where(zero, 1e-16, d2)))

    # ---- 2-D validity masks ---------------------------------------------------
    a_ids = (pl.program_id(0) * tm
             + jax.lax.broadcasted_iota(jnp.int32, (tm, n_pad), 0))
    c_ids = jax.lax.broadcasted_iota(jnp.int32, (tm, n_pad), 1)
    same = lab_a == lab
    col_ok = c_ids < n_valid
    # a != n and p != n are implied by labels[a] == labels[p] != labels[n].
    pos = same & (a_ids != c_ids) & (a_ids < n_valid) & col_ok
    neg = jnp.logical_not(same) & col_ok

    big = jnp.float32(1e30)              # static sentinel (no runtime max needed)
    d_apm = jnp.where(pos, dist + margin, -big)   # margin folded in here (2-D)
    d_an = jnp.where(neg, dist, big)

    # Hoist the sublane-broadcast of the positive operand out of the chunk loop.
    apm_ref[...] = jnp.broadcast_to(d_apm[:, None, :], (tm, cn, n_pad))
    # Store the negative operand transposed: each CN-chunk is then an aligned
    # sublane slice (cheap, no dynamic lane offsets).
    an_t_ref[...] = jnp.transpose(d_an)           # (Np, TM)
    acc_s_ref[...] = jnp.zeros_like(acc_s_ref)
    acc_c_ref[...] = jnp.zeros_like(acc_c_ref)

    # ---- chunked O(N^3) loop: one bounded (TM, CN, Np) slab per step ---------
    @pl.loop(0, n_chunks)
    def _(c):
        off = pl.multiple_of(c * cn, cn)
        neg_c = jnp.transpose(an_t_ref[pl.ds(off, cn), :])          # (TM, CN)
        t = jnp.maximum(apm_ref[...] - neg_c[:, :, None], 0.0)      # (TM, CN, Np)
        # Reduce the lane axis first (VALU tree adds + 1 lane-reduce per
        # (anchor, sublane-group)); sublane + final reductions happen once below.
        acc_s_ref[...] += jnp.sum(t, axis=2)
        acc_c_ref[...] += jnp.sum((t > 1e-16).astype(jnp.float32), axis=2)

    sum_ref[...] = jnp.sum(acc_s_ref[...], axis=1, keepdims=True)
    cnt_ref[...] = jnp.sum(acc_c_ref[...], axis=1, keepdims=True)


def batch_all_triplet_loss(embeddings, labels, margin):
    """Batch-all triplet loss; the N^2 / N^3 hot path runs in one Pallas kernel."""
    embeddings = jnp.asarray(embeddings, jnp.float32)
    labels = jnp.asarray(labels, jnp.int32)
    n, e_dim = embeddings.shape

    n_pad = _round_up(n, 128)                       # lane-dense candidate axis
    e_pad = _round_up(e_dim, 128)                   # lane-dense MXU contraction axis
    vmem_limit = _vmem_limit_bytes()
    tm = _choose_tile_m(n_pad, e_pad, vmem_limit)
    cn = _CN

    emb_p = jnp.zeros((n_pad, e_pad), jnp.float32).at[:n, :e_dim].set(embeddings)
    lab_p = jnp.zeros((n_pad,), jnp.int32).at[:n].set(labels)
    lab_col = lab_p.reshape(n_pad, 1)
    lab_row = lab_p.reshape(1, n_pad)
    sq = jnp.sum(emb_p * emb_p, axis=1)             # squared norms, precomputed once
    sq_col = sq.reshape(n_pad, 1)
    sq_row = sq.reshape(1, n_pad)

    kernel = functools.partial(_triplet_tile_kernel, margin=float(margin),
                               n_valid=int(n), cn=cn)

    sums, cnts = pl.pallas_call(
        kernel,
        out_shape=(jax.ShapeDtypeStruct((n_pad, 1), jnp.float32),
                   jax.ShapeDtypeStruct((n_pad, 1), jnp.float32)),
        grid=(n_pad // tm,),
        in_specs=[
            pl.BlockSpec((tm, e_pad), lambda i: (i, 0)),      # anchor embeddings
            pl.BlockSpec((tm, 1), lambda i: (i, 0)),          # anchor |e|^2
            pl.BlockSpec((tm, 1), lambda i: (i, 0)),          # anchor labels
            pl.BlockSpec((n_pad, e_pad), lambda i: (0, 0)),   # all candidates
            pl.BlockSpec((1, n_pad), lambda i: (0, 0)),       # all labels (row)
            pl.BlockSpec((1, n_pad), lambda i: (0, 0)),       # candidate |e|^2 (row)
        ],
        out_specs=(pl.BlockSpec((tm, 1), lambda i: (i, 0)),
                   pl.BlockSpec((tm, 1), lambda i: (i, 0))),
        scratch_shapes=[
            pltpu.VMEM((tm, cn, n_pad), jnp.float32),  # hoisted d_ap(+margin) broadcast
            pltpu.VMEM((n_pad, tm), jnp.float32),      # d_an transposed (chunk rows)
            pltpu.VMEM((tm, cn), jnp.float32),         # per-anchor partial sums
            pltpu.VMEM((tm, cn), jnp.float32),         # per-anchor positive counts
        ],
        compiler_params=pltpu.CompilerParams(
            dimension_semantics=("parallel",),
            vmem_limit_bytes=int(vmem_limit)),
    )(emb_p, sq_col, lab_col, emb_p, lab_row, sq_row)

    total = jnp.sum(sums)
    num_positive = jnp.sum(cnts)
    # TODO(synk): the reference also computes fraction_positive_triplets but
    # never returns it; omitted here.
    return total / (num_positive + 1e-16)


class BatchAllTripletLoss:
    """JAX/Pallas port of the PyTorch BatchAllTripletLoss forward pass."""

    def __init__(self, margin):
        self.margin = float(margin)

    def __call__(self, embeddings, labels):
        return batch_all_triplet_loss(embeddings, labels, self.margin)


def _reference_loss(embeddings, labels, margin):
    """Pure-JAX mirror of the PyTorch batch_all_triplet_loss (for checking)."""
    e = embeddings.astype(jnp.float32)
    dot = jnp.matmul(e, e.T, precision=jax.lax.Precision.HIGHEST)
    sq = jnp.diag(dot)
    d2 = jnp.maximum(sq[None, :] - 2.0 * dot + sq[:, None], 0.0)
    zero = d2 == 0.0
    dist = jnp.where(zero, 0.0, jnp.sqrt(jnp.where(zero, 1e-16, d2)))

    n = labels.shape[0]
    ine = ~jnp.eye(n, dtype=bool)
    distinct = ine[:, :, None] & ine[:, None, :] & ine[None, :, :]
    leq = labels[None, :] == labels[:, None]
    mask = distinct & leq[:, :, None] & (~leq)[:, None, :]

    t = dist[:, :, None] - dist[:, None, :] + margin
    t = jnp.maximum(jnp.where(mask, t, 0.0), 0.0)
    n_pos = jnp.sum((t > 1e-16).astype(jnp.float32))
    return jnp.sum(t) / (n_pos + 1e-16)


if __name__ == "__main__":
    key = jax.random.PRNGKey(0)
    k_emb, _ = jax.random.split(key)

    batch, embed_dim = 8, 32
    x = jax.random.normal(k_emb, (batch, embed_dim), dtype=jnp.float32)
    y = jnp.array([0, 0, 1, 1, 2, 2, 3, 3], dtype=jnp.int32)
    margin = 0.2

    loss_mod = BatchAllTripletLoss(margin=margin)
    loss = jax.block_until_ready(loss_mod(x, y))

    ref = jax.block_until_ready(_reference_loss(x, y, margin))

    assert np.isfinite(float(loss))
    # Loose tolerance: TPU matmul precision + the >1e-16 count threshold can
    # flip borderline triplets between the two implementations.
    np.testing.assert_allclose(float(loss), float(ref), rtol=1e-1, atol=1e-2)
    print("KERNEL_OK")
</pallas_src>

<mosaic_0001>
module attributes {stable_mosaic.version = 11 : i64} {
  func.func @_triplet_tile_kernel(%arg0: i32, %arg1: memref<128x128xf32, #tpu.memory_space<vmem>>, %arg2: memref<128x1xf32, #tpu.memory_space<vmem>>, %arg3: memref<128x1xi32, #tpu.memory_space<vmem>>, %arg4: memref<128x128xf32, #tpu.memory_space<vmem>>, %arg5: memref<1x128xi32, #tpu.memory_space<vmem>>, %arg6: memref<1x128xf32, #tpu.memory_space<vmem>>, %arg7: memref<128x1xf32, #tpu.memory_space<vmem>>, %arg8: memref<128x1xf32, #tpu.memory_space<vmem>>, %arg9: memref<128x8x128xf32, #tpu.memory_space<vmem>>, %arg10: memref<128x128xf32, #tpu.memory_space<vmem>>, %arg11: memref<128x8xf32, #tpu.memory_space<vmem>>, %arg12: memref<128x8xf32, #tpu.memory_space<vmem>>) attributes {dimension_semantics = [#tpu.dimension_semantics<parallel>], iteration_bounds = array<i64: 1>, scalar_prefetch = 0 : i64, scratch_operands = 4 : i64, tpu.core_type = #tpu.core_type<tc>, window_params = [{transform_indices = @transform_0, window_bounds = array<i64: 128, 128>}, {transform_indices = @transform_1, window_bounds = array<i64: 128, 1>}, {transform_indices = @transform_2, window_bounds = array<i64: 128, 1>}, {pipeline_mode = #tpu.pipeline_mode<synchronous>, transform_indices = @transform_3, window_bounds = array<i64: 128, 128>}, {pipeline_mode = #tpu.pipeline_mode<synchronous>, transform_indices = @transform_4, window_bounds = array<i64: 1, 128>}, {pipeline_mode = #tpu.pipeline_mode<synchronous>, transform_indices = @transform_5, window_bounds = array<i64: 1, 128>}, {transform_indices = @transform_6, window_bounds = array<i64: 128, 1>}, {transform_indices = @transform_7, window_bounds = array<i64: 128, 1>}]} {
    %c0 = arith.constant 0 : index
    %c0_0 = arith.constant 0 : index
    %0 = vector.load %arg1[%c0, %c0_0] : memref<128x128xf32, #tpu.memory_space<vmem>>, vector<128x128xf32>
    %c0_1 = arith.constant 0 : index
    %c0_2 = arith.constant 0 : index
    %1 = vector.load %arg4[%c0_1, %c0_2] : memref<128x128xf32, #tpu.memory_space<vmem>>, vector<128x128xf32>
    %c0_3 = arith.constant 0 : index
    %c0_4 = arith.constant 0 : index
    %2 = vector.load %arg2[%c0_3, %c0_4] : memref<128x1xf32, #tpu.memory_space<vmem>>, vector<128x1xf32>
    %c0_5 = arith.constant 0 : index
    %c0_6 = arith.constant 0 : index
    %3 = vector.load %arg6[%c0_5, %c0_6] : memref<1x128xf32, #tpu.memory_space<vmem>>, vector<1x128xf32>
    %c0_7 = arith.constant 0 : index
    %c0_8 = arith.constant 0 : index
    %4 = vector.load %arg3[%c0_7, %c0_8] : memref<128x1xi32, #tpu.memory_space<vmem>>, vector<128x1xi32>
    %c0_9 = arith.constant 0 : index
    %c0_10 = arith.constant 0 : index
    %5 = vector.load %arg5[%c0_9, %c0_10] : memref<1x128xi32, #tpu.memory_space<vmem>>, vector<1x128xi32>
    %cst = arith.constant dense<0.000000e+00> : vector<128x128xf32>
    %6 = tpu.matmul %0, %1, %cst {dimension_numbers = #tpu.dot_dimension_numbers<[1], [1], [0], [0], [0, 0, 1, 0], [], []>} : vector<128x128xf32>, vector<128x128xf32>, vector<128x128xf32> -> vector<128x128xf32>
    %cst_11 = arith.constant 2.000000e+00 : f32
    %7 = vector.broadcast %cst_11 : f32 to vector<128x128xf32>
    %8 = arith.mulf %7, %6 : vector<128x128xf32>
    %9 = vector.broadcast %3 : vector<1x128xf32> to vector<128x128xf32>
    %10 = arith.subf %9, %8 : vector<128x128xf32>
    %11 = vector.broadcast %2 : vector<128x1xf32> to vector<128x128xf32>
    %12 = arith.addf %10, %11 : vector<128x128xf32>
    %cst_12 = arith.constant 0.000000e+00 : f32
    %13 = vector.broadcast %cst_12 : f32 to vector<128x128xf32>
    %14 = arith.maximumf %12, %13 : vector<128x128xf32>
    %cst_13 = arith.constant 0.000000e+00 : f32
    %15 = vector.broadcast %cst_13 : f32 to vector<128x128xf32>
    %16 = arith.cmpf oeq, %14, %15 : vector<128x128xf32>
    %cst_14 = arith.constant 1.000000e-16 : f32
    %17 = vector.broadcast %cst_14 : f32 to vector<128x128xf32>
    %18 = arith.select %16, %17, %14 : vector<128x128xi1>, vector<128x128xf32>
    %19 = math.sqrt %18 : vector<128x128xf32>
    %cst_15 = arith.constant 0.000000e+00 : f32
    %20 = vector.broadcast %cst_15 : f32 to vector<128x128xf32>
    %21 = arith.select %16, %20, %19 : vector<128x128xi1>, vector<128x128xf32>
    %c128_i32 = arith.constant 128 : i32
    %22 = arith.muli %arg0, %c128_i32 : i32
    %23 = tpu.iota {dimensions = array<i32: 0>} : vector<128x128xi32>
    %24 = vector.broadcast %22 : i32 to vector<128x128xi32>
    %25 = arith.addi %24, %23 : vector<128x128xi32>
    %26 = tpu.iota {dimensions = array<i32: 1>} : vector<128x128xi32>
    %27 = vector.broadcast %4 : vector<128x1xi32> to vector<128x128xi32>
    %28 = vector.broadcast %5 : vector<1x128xi32> to vector<128x128xi32>
    %29 = arith.cmpi eq, %27, %28 : vector<128x128xi32>
    %c8_i32 = arith.constant 8 : i32
    %30 = vector.broadcast %c8_i32 : i32 to vector<128x128xi32>
    %31 = arith.cmpi slt, %26, %30 : vector<128x128xi32>
    %32 = arith.cmpi ne, %25, %26 : vector<128x128xi32>
    %33 = arith.andi %29, %32 : vector<128x128xi1>
    %c8_i32_16 = arith.constant 8 : i32
    %34 = vector.broadcast %c8_i32_16 : i32 to vector<128x128xi32>
    %35 = arith.cmpi slt, %25, %34 : vector<128x128xi32>
    %36 = arith.andi %33, %35 : vector<128x128xi1>
    %37 = arith.andi %36, %31 : vector<128x128xi1>
    %cst_17 = arith.constant dense<true> : vector<128x128xi1>
    %38 = arith.xori %29, %cst_17 : vector<128x128xi1>
    %39 = arith.andi %38, %31 : vector<128x128xi1>
    %cst_18 = arith.constant 2.000000e-01 : f32
    %40 = vector.broadcast %cst_18 : f32 to vector<128x128xf32>
    %41 = arith.addf %21, %40 : vector<128x128xf32>
    %cst_19 = arith.constant 0.000000e+00 : f32
    %cst_20 = arith.constant 1.000000e+30 : f32
    %42 = arith.subf %cst_19, %cst_20 : f32
    %43 = vector.broadcast %42 : f32 to vector<128x128xf32>
    %44 = arith.select %37, %41, %43 : vector<128x128xi1>, vector<128x128xf32>
    %cst_21 = arith.constant 1.000000e+30 : f32
    %45 = vector.broadcast %cst_21 : f32 to vector<128x128xf32>
    %46 = arith.select %39, %21, %45 : vector<128x128xi1>, vector<128x128xf32>
    %47 = vector.shape_cast %44 : vector<128x128xf32> to vector<128x1x128xf32>
    %48 = vector.shape_cast %47 : vector<128x1x128xf32> to vector<128x1x128xf32>
    %49 = vector.broadcast %48 : vector<128x1x128xf32> to vector<128x8x128xf32>
    %c0_22 = arith.constant 0 : index
    %c0_23 = arith.constant 0 : index
    %c0_24 = arith.constant 0 : index
    %50 = vector.load %arg9[%c0_22, %c0_23, %c0_24] : memref<128x8x128xf32, #tpu.memory_space<vmem>>, vector<128x8x128xf32>
    tpu.vector_store %arg9[%c0_22, %c0_23, %c0_24], %49 {strides = array<i32>} : memref<128x8x128xf32, #tpu.memory_space<vmem>>, vector<128x8x128xf32>,
    %51 = tpu.transpose %46, [1, 0] : vector<128x128xf32> -> vector<128x128xf32>
    %c0_25 = arith.constant 0 : index
    %c0_26 = arith.constant 0 : index
    %52 = vector.load %arg10[%c0_25, %c0_26] : memref<128x128xf32, #tpu.memory_space<vmem>>, vector<128x128xf32>
    tpu.vector_store %arg10[%c0_25, %c0_26], %51 {strides = array<i32>} : memref<128x128xf32, #tpu.memory_space<vmem>>, vector<128x128xf32>,
    %cst_27 = arith.constant 0.000000e+00 : f32
    %53 = vector.broadcast %cst_27 : f32 to vector<128x8xf32>
    %c0_28 = arith.constant 0 : index
    %c0_29 = arith.constant 0 : index
    %54 = vector.load %arg11[%c0_28, %c0_29] : memref<128x8xf32, #tpu.memory_space<vmem>>, vector<128x8xf32>
    tpu.vector_store %arg11[%c0_28, %c0_29], %53 {strides = array<i32>} : memref<128x8xf32, #tpu.memory_space<vmem>>, vector<128x8xf32>,
    %cst_30 = arith.constant 0.000000e+00 : f32
    %55 = vector.broadcast %cst_30 : f32 to vector<128x8xf32>
    %c0_31 = arith.constant 0 : index
    %c0_32 = arith.constant 0 : index
    %56 = vector.load %arg12[%c0_31, %c0_32] : memref<128x8xf32, #tpu.memory_space<vmem>>, vector<128x8xf32>
    tpu.vector_store %arg12[%c0_31, %c0_32], %55 {strides = array<i32>} : memref<128x8xf32, #tpu.memory_space<vmem>>, vector<128x8xf32>,
    %c0_i32 = arith.constant 0 : i32
    %c16_i32 = arith.constant 16 : i32
    %57 = arith.addi %c0_i32, %c16_i32 : i32
    %c1_i32 = arith.constant 1 : i32
    scf.for %arg13 = %c0_i32 to %57 step %c1_i32  : i32 {
      %c1_i32_44 = arith.constant 1 : i32
      %66 = arith.muli %arg13, %c1_i32_44 : i32
      %c0_i32_45 = arith.constant 0 : i32
      %67 = arith.addi %c0_i32_45, %66 : i32
      %c8_i32_46 = arith.constant 8 : i32
      %68 = arith.muli %67, %c8_i32_46 : i32
      %69 = tpu.assume_multiple %68, 8 : i32
      %70 = arith.index_cast %69 : i32 to index
      %c0_47 = arith.constant 0 : index
      %71 = vector.load %arg10[%70, %c0_47] : memref<128x128xf32, #tpu.memory_space<vmem>>, vector<8x128xf32>
      %72 = tpu.transpose %71, [1, 0] : vector<8x128xf32> -> vector<128x8xf32>
      %c0_48 = arith.constant 0 : index
      %c0_49 = arith.constant 0 : index
      %c0_50 = arith.constant 0 : index
      %73 = vector.load %arg9[%c0_48, %c0_49, %c0_50] : memref<128x8x128xf32, #tpu.memory_space<vmem>>, vector<128x8x128xf32>
      %74 = vector.shape_cast %72 : vector<128x8xf32> to vector<128x8x1xf32>
      %75 = vector.broadcast %74 : vector<128x8x1xf32> to vector<128x8x128xf32>
      %76 = arith.subf %73, %75 : vector<128x8x128xf32>
      %cst_51 = arith.constant 0.000000e+00 : f32
      %77 = vector.broadcast %cst_51 : f32 to vector<128x8x128xf32>
      %78 = arith.maximumf %76, %77 : vector<128x8x128xf32>
      %c0_52 = arith.constant 0 : index
      %c0_53 = arith.constant 0 : index
      %79 = vector.load %arg11[%c0_52, %c0_53] : memref<128x8xf32, #tpu.memory_space<vmem>>, vector<128x8xf32>
      %cst_54 = arith.constant dense<0.000000e+00> : vector<128x8xf32>
      %80 = vector.multi_reduction <add>, %78, %cst_54 [2] : vector<128x8x128xf32> to vector<128x8xf32>
      %81 = arith.addf %79, %80 : vector<128x8xf32>
      %c0_55 = arith.constant 0 : index
      %c0_56 = arith.constant 0 : index
      %82 = vector.load %arg11[%c0_55, %c0_56] : memref<128x8xf32, #tpu.memory_space<vmem>>, vector<128x8xf32>
      tpu.vector_store %arg11[%c0_55, %c0_56], %81 {strides = array<i32>} : memref<128x8xf32, #tpu.memory_space<vmem>>, vector<128x8xf32>,
      %c0_57 = arith.constant 0 : index
      %c0_58 = arith.constant 0 : index
      %83 = vector.load %arg12[%c0_57, %c0_58] : memref<128x8xf32, #tpu.memory_space<vmem>>, vector<128x8xf32>
      %cst_59 = arith.constant 1.000000e-16 : f32
      %84 = vector.broadcast %cst_59 : f32 to vector<128x8x128xf32>
      %85 = arith.cmpf ogt, %78, %84 : vector<128x8x128xf32>
      %86 = arith.extui %85 : vector<128x8x128xi1> to vector<128x8x128xi32>
      %87 = arith.sitofp %86 : vector<128x8x128xi32> to vector<128x8x128xf32>
      %cst_60 = arith.constant dense<0.000000e+00> : vector<128x8xf32>
      %88 = vector.multi_reduction <add>, %87, %cst_60 [2] : vector<128x8x128xf32> to vector<128x8xf32>
      %89 = arith.addf %83, %88 : vector<128x8xf32>
      %c0_61 = arith.constant 0 : index
      %c0_62 = arith.constant 0 : index
      %90 = vector.load %arg12[%c0_61, %c0_62] : memref<128x8xf32, #tpu.memory_space<vmem>>, vector<128x8xf32>
      tpu.vector_store %arg12[%c0_61, %c0_62], %89 {strides = array<i32>} : memref<128x8xf32, #tpu.memory_space<vmem>>, vector<128x8xf32>,
    }
    %c16_i32_33 = arith.constant 16 : i32
    %c0_34 = arith.constant 0 : index
    %c0_35 = arith.constant 0 : index
    %58 = vector.load %arg11[%c0_34, %c0_35] : memref<128x8xf32, #tpu.memory_space<vmem>>, vector<128x8xf32>
    %cst_36 = arith.constant dense<0.000000e+00> : vector<128xf32>
    %59 = vector.multi_reduction <add>, %58, %cst_36 [1] : vector<128x8xf32> to vector<128xf32>
    %60 = vector.shape_cast %59 : vector<128xf32> to vector<128x1xf32>
    %c0_37 = arith.constant 0 : index
    %c0_38 = arith.constant 0 : index
    %61 = vector.load %arg7[%c0_37, %c0_38] : memref<128x1xf32, #tpu.memory_space<vmem>>, vector<128x1xf32>
    tpu.vector_store %arg7[%c0_37, %c0_38], %60 {strides = array<i32>} : memref<128x1xf32, #tpu.memory_space<vmem>>, vector<128x1xf32>,
    %c0_39 = arith.constant 0 : index
    %c0_40 = arith.constant 0 : index
    %62 = vector.load %arg12[%c0_39, %c0_40] : memref<128x8xf32, #tpu.memory_space<vmem>>, vector<128x8xf32>
    %cst_41 = arith.constant dense<0.000000e+00> : vector<128xf32>
    %63 = vector.multi_reduction <add>, %62, %cst_41 [1] : vector<128x8xf32> to vector<128xf32>
    %64 = vector.shape_cast %63 : vector<128xf32> to vector<128x1xf32>
    %c0_42 = arith.constant 0 : index
    %c0_43 = arith.constant 0 : index
    %65 = vector.load %arg8[%c0_42, %c0_43] : memref<128x1xf32, #tpu.memory_space<vmem>>, vector<128x1xf32>
    tpu.vector_store %arg8[%c0_42, %c0_43], %64 {strides = array<i32>} : memref<128x1xf32, #tpu.memory_space<vmem>>, vector<128x1xf32>,
    return
  }
  func.func @transform_0(%arg0: i32) -> (i32, i32) {
    %c0_i32 = arith.constant 0 : i32
    %c0_i32_0 = arith.constant 0 : i32
    return %arg0, %c0_i32 : i32, i32
  }
  func.func @transform_1(%arg0: i32) -> (i32, i32) {
    %c0_i32 = arith.constant 0 : i32
    %c0_i32_0 = arith.constant 0 : i32
    return %arg0, %c0_i32 : i32, i32
  }
  func.func @transform_2(%arg0: i32) -> (i32, i32) {
    %c0_i32 = arith.constant 0 : i32
    %c0_i32_0 = arith.constant 0 : i32
    return %arg0, %c0_i32 : i32, i32
  }
  func.func @transform_3(%arg0: i32) -> (i32, i32) {
    %c0_i32 = arith.constant 0 : i32
    %c0_i32_0 = arith.constant 0 : i32
    %c0_i32_1 = arith.constant 0 : i32
    return %c0_i32, %c0_i32_0 : i32, i32
  }
  func.func @transform_4(%arg0: i32) -> (i32, i32) {
    %c0_i32 = arith.constant 0 : i32
    %c0_i32_0 = arith.constant 0 : i32
    %c0_i32_1 = arith.constant 0 : i32
    return %c0_i32, %c0_i32_0 : i32, i32
  }
  func.func @transform_5(%arg0: i32) -> (i32, i32) {
    %c0_i32 = arith.constant 0 : i32
    %c0_i32_0 = arith.constant 0 : i32
    %c0_i32_1 = arith.constant 0 : i32
    return %c0_i32, %c0_i32_0 : i32, i32
  }
  func.func @transform_6(%arg0: i32) -> (i32, i32) {
    %c0_i32 = arith.constant 0 : i32
    %c0_i32_0 = arith.constant 0 : i32
    return %arg0, %c0_i32 : i32, i32
  }
  func.func @transform_7(%arg0: i32) -> (i32, i32) {
    %c0_i32 = arith.constant 0 : i32
    %c0_i32_0 = arith.constant 0 : i32
    return %arg0, %c0_i32 : i32, i32
  }
}

</mosaic_0001>

<llo_original>
// kernel: tpu_custom_call.1
$region0: #{tpu_custom_call.1}
  #allocation0 [shape = 'u32[]', space=smem, size = 0x4, offset = 0x4, fixed_abs, tag = 'smem constant byte address 0x4 - core index']
  #allocation1 [shape = 'u32[144,128]{1,0:T(1,128)}', space=vmem, size = 0x12000, scoped, tag = 'internal scratch']
  #allocation2 [shape = 'f32[128,8,128]{2,1,0:T(8,128)}', space=vmem, size = 0x80000, scoped, tag = 'scratch operand']
  #allocation3 [shape = 'f32[128,128]{1,0:T(8,128)}', space=vmem, size = 0x10000, scoped, tag = 'scratch operand']
  #allocation4 [shape = 'f32[128,8]{1,0:T(8,128)}', space=vmem, size = 0x10000, scoped, tag = 'scratch operand']
  #allocation5 [shape = 'f32[128,8]{1,0:T(8,128)}', space=vmem, size = 0x10000, scoped, tag = 'scratch operand']
  %s0 = inlined_call_operand.vmem [shape: f32[128,128], index: 0, kind: input, shape index: {}]
  %s1 = inlined_call_operand.vmem [shape: f32[128,1], index: 1, kind: input, shape index: {}]
  %s2 = inlined_call_operand.vmem [shape: s32[128,1], index: 2, kind: input, shape index: {}]
  %s3 = inlined_call_operand.vmem [shape: f32[128,128], index: 3, kind: input, shape index: {}]
  %s4 = inlined_call_operand.vmem [shape: s32[1,128], index: 4, kind: input, shape index: {}]
  %s5 = inlined_call_operand.vmem [shape: f32[1,128], index: 5, kind: input, shape index: {}]
  %s6 = inlined_call_operand.vmem [shape: f32[128,1], index: 6, kind: output, shape index: {0}]
  %s7 = inlined_call_operand.vmem [shape: f32[128,1], index: 7, kind: output, shape index: {1}]
  %8 = xla_tuple %s6, %s7
  %s9 = sld [smem:[#allocation0]]
  $region49: #{tpu_custom_call.1} parent=0
    _
  %s11 = ssub.s32 1, %s9
  %s12 = scalar_select 0, %s11, %s9
  // Predicated region
  $region2: #{tpu_custom_call.1} parent=0 // pred_check
    _
  $region3: #{tpu_custom_call.1} parent=0 // pred_check_branch
    %14 = sbr.rel (0) target = $region5
  $region4: #{tpu_custom_call.1} parent=0 // pred_region
    _
  $region5: #{tpu_custom_call.1} parent=0 // pred_fallthru
    _
  // Predicated region
  $region6: #{tpu_custom_call.1} parent=0 // pred_check
    _
  $region7: #{tpu_custom_call.1} parent=0 // pred_check_branch
    %16 = sbr.rel (0) target = $region9
  $region8: #{tpu_custom_call.1} parent=0 // pred_region
    _
  $region9: #{tpu_custom_call.1} parent=0 // pred_fallthru
    _
  // Predicated region
  $region10: #{tpu_custom_call.1} parent=0 // pred_check
    _
  $region11: #{tpu_custom_call.1} parent=0 // pred_check_branch
    %18 = sbr.rel (0) target = $region13
  $region12: #{tpu_custom_call.1} parent=0 // pred_region
    _
  $region13: #{tpu_custom_call.1} parent=0 // pred_fallthru
    _
  // Predicated region
  $region14: #{tpu_custom_call.1} parent=0 // pred_check
    _
  $region15: #{tpu_custom_call.1} parent=0 // pred_check_branch
    %20 = sbr.rel (0) target = $region17
  $region16: #{tpu_custom_call.1} parent=0 // pred_region
    _
  $region17: #{tpu_custom_call.1} parent=0 // pred_fallthru
    _
  // Predicated region
  $region18: #{tpu_custom_call.1} parent=0 // pred_check
    _
  $region19: #{tpu_custom_call.1} parent=0 // pred_check_branch
    %22 = sbr.rel (0) target = $region21
  $region20: #{tpu_custom_call.1} parent=0 // pred_region
    _
  $region21: #{tpu_custom_call.1} parent=0 // pred_fallthru
    _
  // Predicated region
  $region22: #{tpu_custom_call.1} parent=0 // pred_check
    _
  $region23: #{tpu_custom_call.1} parent=0 // pred_check_branch
    %24 = sbr.rel (0) target = $region25
  $region24: #{tpu_custom_call.1} parent=0 // pred_region
    _
  $region25: #{tpu_custom_call.1} parent=0 // pred_fallthru
    _
  %v25 = vld [vmem:[%s0] sm:$0xff]
  %v26 = vld [vmem:[%s0 + $0x8] sm:$0xff]
  %v27 = vld [vmem:[%s0 + $0x10] sm:$0xff]
  %v28 = vld [vmem:[%s0 + $0x18] sm:$0xff]
  %v29 = vld [vmem:[%s0 + $0x20] sm:$0xff]
  %v30 = vld [vmem:[%s0 + $0x28] sm:$0xff]
  %v31 = vld [vmem:[%s0 + $0x30] sm:$0xff]
  %v32 = vld [vmem:[%s0 + $0x38] sm:$0xff]
  %v33 = vld [vmem:[%s0 + $0x40] sm:$0xff]
  %v34 = vld [vmem:[%s0 + $0x48] sm:$0xff]
  %v35 = vld [vmem:[%s0 + $0x50] sm:$0xff]
  %v36 = vld [vmem:[%s0 + $0x58] sm:$0xff]
  %v37 = vld [vmem:[%s0 + $0x60] sm:$0xff]
  %v38 = vld [vmem:[%s0 + $0x68] sm:$0xff]
  %v39 = vld [vmem:[%s0 + $0x70] sm:$0xff]
  %v40 = vld [vmem:[%s0 + $0x78] sm:$0xff]
  %v41 = vld [vmem:[%s3] sm:$0xff]
  %v42 = vld [vmem:[%s3 + $0x8] sm:$0xff]
  %v43 = vld [vmem:[%s3 + $0x10] sm:$0xff]
  %v44 = vld [vmem:[%s3 + $0x18] sm:$0xff]
  %v45 = vld [vmem:[%s3 + $0x20] sm:$0xff]
  %v46 = vld [vmem:[%s3 + $0x28] sm:$0xff]
  %v47 = vld [vmem:[%s3 + $0x30] sm:$0xff]
  %v48 = vld [vmem:[%s3 + $0x38] sm:$0xff]
  %v49 = vld [vmem:[%s3 + $0x40] sm:$0xff]
  %v50 = vld [vmem:[%s3 + $0x48] sm:$0xff]
  %v51 = vld [vmem:[%s3 + $0x50] sm:$0xff]
  %v52 = vld [vmem:[%s3 + $0x58] sm:$0xff]
  %v53 = vld [vmem:[%s3 + $0x60] sm:$0xff]
  %v54 = vld [vmem:[%s3 + $0x68] sm:$0xff]
  %v55 = vld [vmem:[%s3 + $0x70] sm:$0xff]
  %v56 = vld [vmem:[%s3 + $0x78] sm:$0xff]
  %v57 = vld [vmem:[%s1] sm:$0xff]
  %v58 = vld [vmem:[%s1 + $0x8] sm:$0xff]
  %v59 = vld [vmem:[%s1 + $0x10] sm:$0xff]
  %v60 = vld [vmem:[%s1 + $0x18] sm:$0xff]
  %v61 = vld [vmem:[%s1 + $0x20] sm:$0xff]
  %v62 = vld [vmem:[%s1 + $0x28] sm:$0xff]
  %v63 = vld [vmem:[%s1 + $0x30] sm:$0xff]
  %v64 = vld [vmem:[%s1 + $0x38] sm:$0xff]
  %v65 = vld [vmem:[%s1 + $0x40] sm:$0xff]
  %v66 = vld [vmem:[%s1 + $0x48] sm:$0xff]
  %v67 = vld [vmem:[%s1 + $0x50] sm:$0xff]
  %v68 = vld [vmem:[%s1 + $0x58] sm:$0xff]
  %v69 = vld [vmem:[%s1 + $0x60] sm:$0xff]
  %v70 = vld [vmem:[%s1 + $0x68] sm:$0xff]
  %v71 = vld [vmem:[%s1 + $0x70] sm:$0xff]
  %v72 = vld [vmem:[%s1 + $0x78] sm:$0xff]
  %v73 = vld [vmem:[%s5] sm:$0x1]
  %v74 = vld [vmem:[%s2] sm:$0xff]
  %v75 = vld [vmem:[%s2 + $0x8] sm:$0xff]
  %v76 = vld [vmem:[%s2 + $0x10] sm:$0xff]
  %v77 = vld [vmem:[%s2 + $0x18] sm:$0xff]
  %v78 = vld [vmem:[%s2 + $0x20] sm:$0xff]
  %v79 = vld [vmem:[%s2 + $0x28] sm:$0xff]
  %v80 = vld [vmem:[%s2 + $0x30] sm:$0xff]
  %v81 = vld [vmem:[%s2 + $0x38] sm:$0xff]
  %v82 = vld [vmem:[%s2 + $0x40] sm:$0xff]
  %v83 = vld [vmem:[%s2 + $0x48] sm:$0xff]
  %v84 = vld [vmem:[%s2 + $0x50] sm:$0xff]
  %v85 = vld [vmem:[%s2 + $0x58] sm:$0xff]
  %v86 = vld [vmem:[%s2 + $0x60] sm:$0xff]
  %v87 = vld [vmem:[%s2 + $0x68] sm:$0xff]
  %v88 = vld [vmem:[%s2 + $0x70] sm:$0xff]
  %v89 = vld [vmem:[%s2 + $0x78] sm:$0xff]
  %v90 = vld [vmem:[%s4] sm:$0x1]
  %91 = vmatprep.subr.mxu0 0.0
  %92 = vmatpush1.xpose.msra.mxu0 %v56
  %93 = vmatprep.subr.mxu0 0.0
  %94 = vmatpush1.xpose.msra.mxu0 %v55
  %95 = vmatprep.subr.mxu0 0.0
  %96 = vmatpush1.xpose.msra.mxu0 %v54
  %97 = vmatprep.subr.mxu0 0.0
  %98 = vmatpush1.xpose.msra.mxu0 %v53
  %99 = vmatprep.subr.mxu0 0.0
  %100 = vmatpush1.xpose.msra.mxu0 %v52
  %101 = vmatprep.subr.mxu0 0.0
  %102 = vmatpush1.xpose.msra.mxu0 %v51
  %103 = vmatprep.subr.mxu0 0.0
  %104 = vmatpush1.xpose.msra.mxu0 %v50
  %105 = vmatprep.subr.mxu0 0.0
  %106 = vmatpush1.xpose.msra.mxu0 %v49
  %107 = vmatprep.subr.mxu0 0.0
  %108 = vmatpush1.xpose.msra.mxu0 %v48
  %109 = vmatprep.subr.mxu0 0.0
  %110 = vmatpush1.xpose.msra.mxu0 %v47
  %111 = vmatprep.subr.mxu0 0.0
  %112 = vmatpush1.xpose.msra.mxu0 %v46
  %113 = vmatprep.subr.mxu0 0.0
  %114 = vmatpush1.xpose.msra.mxu0 %v45
  %115 = vmatprep.subr.mxu0 0.0
  %116 = vmatpush1.xpose.msra.mxu0 %v44
  %117 = vmatprep.subr.mxu0 0.0
  %118 = vmatpush1.xpose.msra.mxu0 %v43
  %119 = vmatprep.subr.mxu0 0.0
  %120 = vmatpush1.xpose.msra.mxu0 %v42
  %121 = vmatprep.subr.mxu0 0.0
  %122 = vmatpush1.xpose.msra.mxu0 %v41
  %123 = vmatprep.subr.mxu0 0.0
  %124 = vmatpush2.xpose.msra.mxu0 0.0
  %125 = vmatprep.subr.mxu0 0.0
  %126 = vmatpush2.xpose.msra.mxu0 0.0
  %127 = vmatprep.subr.mxu0 0.0
  %128 = vmatpush2.xpose.msra.mxu0 0.0
  %129 = vmatprep.subr.mxu0 0.0
  %130 = vmatpush2.xpose.msra.mxu0 0.0
  %131 = vmatprep.subr.mxu0 0.0
  %132 = vmatpush2.xpose.msra.mxu0 0.0
  %133 = vmatprep.subr.mxu0 0.0
  %134 = vmatpush2.xpose.msra.mxu0 0.0
  %135 = vmatprep.subr.mxu0 0.0
  %136 = vmatpush2.xpose.msra.mxu0 0.0
  %137 = vmatprep.subr.mxu0 0.0
  %138 = vmatpush2.xpose.msra.mxu0 0.0
  %139 = vmatprep.subr.mxu0 0.0
  %140 = vmatpush2.xpose.msra.mxu0 0.0
  %141 = vmatprep.subr.mxu0 0.0
  %142 = vmatpush2.xpose.msra.mxu0 0.0
  %143 = vmatprep.subr.mxu0 0.0
  %144 = vmatpush2.xpose.msra.mxu0 0.0
  %145 = vmatprep.subr.mxu0 0.0
  %146 = vmatpush2.xpose.msra.mxu0 0.0
  %147 = vmatprep.subr.mxu0 0.0
  %148 = vmatpush2.xpose.msra.mxu0 0.0
  %149 = vmatprep.subr.mxu0 0.0
  %150 = vmatpush2.xpose.msra.mxu0 0.0
  %151 = vmatprep.subr.mxu0 0.0
  %152 = vmatpush2.xpose.msra.mxu0 0.0
  %153 = vmatprep.subr.mxu0 0.0
  %154 = vmatpush2.xpose.msra.mxu0 0.0
  %155 = vmatprep.mubr.f32.mxu0 0.0
  %156 = vmatmul.mubr.f32.gmra.mxu0 %v25
  %v157 = vpop.f32.mrf.mxu0
  %v158 = vadd.f32 0.0, %v157
  %v159 = vpop.f32.mrf.mxu0
  %160 = vmatprep.mubr.f32.mxu0 0.0
  %161 = vmatmul.mubr.f32.gmra.mxu0 %v26
  %v162 = vpop.f32.mrf.mxu0
  %v163 = vadd.f32 0.0, %v162
  %v164 = vpop.f32.mrf.mxu0
  %165 = vmatprep.mubr.f32.mxu0 0.0
  %166 = vmatmul.mubr.f32.gmra.mxu0 %v27
  %v167 = vpop.f32.mrf.mxu0
  %v168 = vadd.f32 0.0, %v167
  %v169 = vpop.f32.mrf.mxu0
  %170 = vmatprep.mubr.f32.mxu0 0.0
  %171 = vmatmul.mubr.f32.gmra.mxu0 %v28
  %v172 = vpop.f32.mrf.mxu0
  %v173 = vadd.f32 0.0, %v172
  %v174 = vpop.f32.mrf.mxu0
  %175 = vmatprep.mubr.f32.mxu0 0.0
  %176 = vmatmul.mubr.f32.gmra.mxu0 %v29
  %v177 = vpop.f32.mrf.mxu0
  %v178 = vadd.f32 0.0, %v177
  %v179 = vpop.f32.mrf.mxu0
  %180 = vmatprep.mubr.f32.mxu0 0.0
  %181 = vmatmul.mubr.f32.gmra.mxu0 %v30
  %v182 = vpop.f32.mrf.mxu0
  %v183 = vadd.f32 0.0, %v182
  %v184 = vpop.f32.mrf.mxu0
  %185 = vmatprep.mubr.f32.mxu0 0.0
  %186 = vmatmul.mubr.f32.gmra.mxu0 %v31
  %v187 = vpop.f32.mrf.mxu0
  %v188 = vadd.f32 0.0, %v187
  %v189 = vpop.f32.mrf.mxu0
  %190 = vmatprep.mubr.f32.mxu0 0.0
  %191 = vmatmul.mubr.f32.gmra.mxu0 %v32
  %v192 = vpop.f32.mrf.mxu0
  %v193 = vadd.f32 0.0, %v192
  %v194 = vpop.f32.mrf.mxu0
  %195 = vmatprep.mubr.f32.mxu0 0.0
  %196 = vmatmul.mubr.f32.gmra.mxu0 %v33
  %v197 = vpop.f32.mrf.mxu0
  %v198 = vadd.f32 0.0, %v197
  %v199 = vpop.f32.mrf.mxu0
  %200 = vmatprep.mubr.f32.mxu0 0.0
  %201 = vmatmul.mubr.f32.gmra.mxu0 %v34
  %v202 = vpop.f32.mrf.mxu0
  %v203 = vadd.f32 0.0, %v202
  %v204 = vpop.f32.mrf.mxu0
  %205 = vmatprep.mubr.f32.mxu0 0.0
  %206 = vmatmul.mubr.f32.gmra.mxu0 %v35
  %v207 = vpop.f32.mrf.mxu0
  %v208 = vadd.f32 0.0, %v207
  %v209 = vpop.f32.mrf.mxu0
  %210 = vmatprep.mubr.f32.mxu0 0.0
  %211 = vmatmul.mubr.f32.gmra.mxu0 %v36
  %v212 = vpop.f32.mrf.mxu0
  %v213 = vadd.f32 0.0, %v212
  %v214 = vpop.f32.mrf.mxu0
  %215 = vmatprep.mubr.f32.mxu0 0.0
  %216 = vmatmul.mubr.f32.gmra.mxu0 %v37
  %v217 = vpop.f32.mrf.mxu0
  %v218 = vadd.f32 0.0, %v217
  %v219 = vpop.f32.mrf.mxu0
  %220 = vmatprep.mubr.f32.mxu0 0.0
  %221 = vmatmul.mubr.f32.gmra.mxu0 %v38
  %v222 = vpop.f32.mrf.mxu0
  %v223 = vadd.f32 0.0, %v222
  %v224 = vpop.f32.mrf.mxu0
  %225 = vmatprep.mubr.f32.mxu0 0.0
  %226 = vmatmul.mubr.f32.gmra.mxu0 %v39
  %v227 = vpop.f32.mrf.mxu0
  %v228 = vadd.f32 0.0, %v227
  %v229 = vpop.f32.mrf.mxu0
  %230 = vmatprep.mubr.f32.mxu0 0.0
  %231 = vmatmul.mubr.f32.gmra.mxu0 %v40
  %v232 = vpop.f32.mrf.mxu0
  %v233 = vadd.f32 0.0, %v232
  %v234 = vpop.f32.mrf.mxu0
  %235 = vdwg.mxu0
  %v236 = vmul.f32 %v158, 2.0
  %v237 = vmul.f32 %v163, 2.0
  %v238 = vmul.f32 %v168, 2.0
  %v239 = vmul.f32 %v173, 2.0
  %v240 = vmul.f32 %v178, 2.0
  %v241 = vmul.f32 %v183, 2.0
  %v242 = vmul.f32 %v188, 2.0
  %v243 = vmul.f32 %v193, 2.0
  %v244 = vmul.f32 %v198, 2.0
  %v245 = vmul.f32 %v203, 2.0
  %v246 = vmul.f32 %v208, 2.0
  %v247 = vmul.f32 %v213, 2.0
  %v248 = vmul.f32 %v218, 2.0
  %v249 = vmul.f32 %v223, 2.0
  %v250 = vmul.f32 %v228, 2.0
  %v251 = vmul.f32 %v233, 2.0
  %v253 = vlaneseq
  %v254 = vshrl.u32 %v253, 7
  %v255 = vsub.s32 0, %v254
  %v256 = vrot.slane %v73, %v255
  %v258 = vsub.f32 %v256, %v236
  %v259 = vsub.f32 %v256, %v237
  %v260 = vsub.f32 %v256, %v238
  %v261 = vsub.f32 %v256, %v239
  %v262 = vsub.f32 %v256, %v240
  %v263 = vsub.f32 %v256, %v241
  %v264 = vsub.f32 %v256, %v242
  %v265 = vsub.f32 %v256, %v243
  %v266 = vsub.f32 %v256, %v244
  %v267 = vsub.f32 %v256, %v245
  %v268 = vsub.f32 %v256, %v246
  %v269 = vsub.f32 %v256, %v247
  %v270 = vsub.f32 %v256, %v248
  %v271 = vsub.f32 %v256, %v249
  %v272 = vsub.f32 %v256, %v250
  %v273 = vsub.f32 %v256, %v251
  %275 = vset.pattern.permute.xlu0 0
  %276 = vperm.xlu0 %275, %v57
  %v277 = vpop.permute.xlu0 %276
  %280 = vset.pattern.permute.xlu0 0
  %281 = vperm.xlu0 %280, %v58
  %v282 = vpop.permute.xlu0 %281
  %285 = vset.pattern.permute.xlu0 0
  %286 = vperm.xlu0 %285, %v59
  %v287 = vpop.permute.xlu0 %286
  %290 = vset.pattern.permute.xlu0 0
  %291 = vperm.xlu0 %290, %v60
  %v292 = vpop.permute.xlu0 %291
  %295 = vset.pattern.permute.xlu0 0
  %296 = vperm.xlu0 %295, %v61
  %v297 = vpop.permute.xlu0 %296
  %300 = vset.pattern.permute.xlu0 0
  %301 = vperm.xlu0 %300, %v62
  %v302 = vpop.permute.xlu0 %301
  %305 = vset.pattern.permute.xlu0 0
  %306 = vperm.xlu0 %305, %v63
  %v307 = vpop.permute.xlu0 %306
  %310 = vset.pattern.permute.xlu0 0
  %311 = vperm.xlu0 %310, %v64
  %v312 = vpop.permute.xlu0 %311
  %315 = vset.pattern.permute.xlu0 0
  %316 = vperm.xlu0 %315, %v65
  %v317 = vpop.permute.xlu0 %316
  %320 = vset.pattern.permute.xlu0 0
  %321 = vperm.xlu0 %320, %v66
  %v322 = vpop.permute.xlu0 %321
  %325 = vset.pattern.permute.xlu0 0
  %326 = vperm.xlu0 %325, %v67
  %v327 = vpop.permute.xlu0 %326
  %330 = vset.pattern.permute.xlu0 0
  %331 = vperm.xlu0 %330, %v68
  %v332 = vpop.permute.xlu0 %331
  %335 = vset.pattern.permute.xlu0 0
  %336 = vperm.xlu0 %335, %v69
  %v337 = vpop.permute.xlu0 %336
  %340 = vset.pattern.permute.xlu0 0
  %341 = vperm.xlu0 %340, %v70
  %v342 = vpop.permute.xlu0 %341
  %345 = vset.pattern.permute.xlu0 0
  %346 = vperm.xlu0 %345, %v71
  %v347 = vpop.permute.xlu0 %346
  %350 = vset.pattern.permute.xlu0 0
  %351 = vperm.xlu0 %350, %v72
  %v352 = vpop.permute.xlu0 %351
  %v354 = vadd.f32 %v258, %v277
  %v355 = vadd.f32 %v259, %v282
  %v356 = vadd.f32 %v260, %v287
  %v357 = vadd.f32 %v261, %v292
  %v358 = vadd.f32 %v262, %v297
  %v359 = vadd.f32 %v263, %v302
  %v360 = vadd.f32 %v264, %v307
  %v361 = vadd.f32 %v265, %v312
  %v362 = vadd.f32 %v266, %v317
  %v363 = vadd.f32 %v267, %v322
  %v364 = vadd.f32 %v268, %v327
  %v365 = vadd.f32 %v269, %v332
  %v366 = vadd.f32 %v270, %v337
  %v367 = vadd.f32 %v271, %v342
  %v368 = vadd.f32 %v272, %v347
  %v369 = vadd.f32 %v273, %v352
  %v370 = vmax.f32 %v354, 0.0
  %v371 = vmax.f32 %v355, 0.0
  %v372 = vmax.f32 %v356, 0.0
  %v373 = vmax.f32 %v357, 0.0
  %v374 = vmax.f32 %v358, 0.0
  %v375 = vmax.f32 %v359, 0.0
  %v376 = vmax.f32 %v360, 0.0
  %v377 = vmax.f32 %v361, 0.0
  %v378 = vmax.f32 %v362, 0.0
  %v379 = vmax.f32 %v363, 0.0
  %v380 = vmax.f32 %v364, 0.0
  %v381 = vmax.f32 %v365, 0.0
  %v382 = vmax.f32 %v366, 0.0
  %v383 = vmax.f32 %v367, 0.0
  %v384 = vmax.f32 %v368, 0.0
  %v385 = vmax.f32 %v369, 0.0
  %vm386 = vcmp.eq.f32.partialorder %v370, 0.0
  %vm387 = vcmp.eq.f32.partialorder %v371, 0.0
  %vm388 = vcmp.eq.f32.partialorder %v372, 0.0
  %vm389 = vcmp.eq.f32.partialorder %v373, 0.0
  %vm390 = vcmp.eq.f32.partialorder %v374, 0.0
  %vm391 = vcmp.eq.f32.partialorder %v375, 0.0
  %vm392 = vcmp.eq.f32.partialorder %v376, 0.0
  %vm393 = vcmp.eq.f32.partialorder %v377, 0.0
  %vm394 = vcmp.eq.f32.partialorder %v378, 0.0
  %vm395 = vcmp.eq.f32.partialorder %v379, 0.0
  %vm396 = vcmp.eq.f32.partialorder %v380, 0.0
  %vm397 = vcmp.eq.f32.partialorder %v381, 0.0
  %vm398 = vcmp.eq.f32.partialorder %v382, 0.0
  %vm399 = vcmp.eq.f32.partialorder %v383, 0.0
  %vm400 = vcmp.eq.f32.partialorder %v384, 0.0
  %vm401 = vcmp.eq.f32.partialorder %v385, 0.0
  %v402 = vsel %vm386, 1e-16, %v370
  %v403 = vsel %vm387, 1e-16, %v371
  %v404 = vsel %vm388, 1e-16, %v372
  %v405 = vsel %vm389, 1e-16, %v373
  %v406 = vsel %vm390, 1e-16, %v374
  %v407 = vsel %vm391, 1e-16, %v375
  %v408 = vsel %vm392, 1e-16, %v376
  %v409 = vsel %vm393, 1e-16, %v377
  %v410 = vsel %vm394, 1e-16, %v378
  %v411 = vsel %vm395, 1e-16, %v379
  %v412 = vsel %vm396, 1e-16, %v380
  %v413 = vsel %vm397, 1e-16, %v381
  %v414 = vsel %vm398, 1e-16, %v382
  %v415 = vsel %vm399, 1e-16, %v383
  %v416 = vsel %vm400, 1e-16, %v384
  %v417 = vsel %vm401, 1e-16, %v385
  %v418 = vrsqrt.pop %v402
  %v419 = vmul.f32 %v402, %v418
  %vm420 = vcmp.eq.f32.partialorder %v402, inf
  %v421 = vsel %vm420, %v402, %v419
  %vm422 = vcmp.eq.f32.partialorder %v402, 0.0
  %v423 = vand.u32 %v402, 2147483648
  %v424 = vsel %vm422, %v423, %v421
  %v425 = vrsqrt.pop %v403
  %v426 = vmul.f32 %v403, %v425
  %vm427 = vcmp.eq.f32.partialorder %v403, inf
  %v428 = vsel %vm427, %v403, %v426
  %vm429 = vcmp.eq.f32.partialorder %v403, 0.0
  %v430 = vand.u32 %v403, 2147483648
  %v431 = vsel %vm429, %v430, %v428
  %v432 = vrsqrt.pop %v404
  %v433 = vmul.f32 %v404, %v432
  %vm434 = vcmp.eq.f32.partialorder %v404, inf
  %v435 = vsel %vm434, %v404, %v433
  %vm436 = vcmp.eq.f32.partialorder %v404, 0.0
  %v437 = vand.u32 %v404, 2147483648
  %v438 = vsel %vm436, %v437, %v435
  %v439 = vrsqrt.pop %v405
  %v440 = vmul.f32 %v405, %v439
  %vm441 = vcmp.eq.f32.partialorder %v405, inf
  %v442 = vsel %vm441, %v405, %v440
  %vm443 = vcmp.eq.f32.partialorder %v405, 0.0
  %v444 = vand.u32 %v405, 2147483648
  %v445 = vsel %vm443, %v444, %v442
  %v446 = vrsqrt.pop %v406
  %v447 = vmul.f32 %v406, %v446
  %vm448 = vcmp.eq.f32.partialorder %v406, inf
  %v449 = vsel %vm448, %v406, %v447
  %vm450 = vcmp.eq.f32.partialorder %v406, 0.0
  %v451 = vand.u32 %v406, 2147483648
  %v452 = vsel %vm450, %v451, %v449
  %v453 = vrsqrt.pop %v407
  %v454 = vmul.f32 %v407, %v453
  %vm455 = vcmp.eq.f32.partialorder %v407, inf
  %v456 = vsel %vm455, %v407, %v454
  %vm457 = vcmp.eq.f32.partialorder %v407, 0.0
  %v458 = vand.u32 %v407, 2147483648
  %v459 = vsel %vm457, %v458, %v456
  %v460 = vrsqrt.pop %v408
  %v461 = vmul.f32 %v408, %v460
  %vm462 = vcmp.eq.f32.partialorder %v408, inf
  %v463 = vsel %vm462, %v408, %v461
  %vm464 = vcmp.eq.f32.partialorder %v408, 0.0
  %v465 = vand.u32 %v408, 2147483648
  %v466 = vsel %vm464, %v465, %v463
  %v467 = vrsqrt.pop %v409
  %v468 = vmul.f32 %v409, %v467
  %vm469 = vcmp.eq.f32.partialorder %v409, inf
  %v470 = vsel %vm469, %v409, %v468
  %vm471 = vcmp.eq.f32.partialorder %v409, 0.0
  %v472 = vand.u32 %v409, 2147483648
  %v473 = vsel %vm471, %v472, %v470
  %v474 = vrsqrt.pop %v410
  %v475 = vmul.f32 %v410, %v474
  %vm476 = vcmp.eq.f32.partialorder %v410, inf
  %v477 = vsel %vm476, %v410, %v475
  %vm478 = vcmp.eq.f32.partialorder %v410, 0.0
  %v479 = vand.u32 %v410, 2147483648
  %v480 = vsel %vm478, %v479, %v477
  %v481 = vrsqrt.pop %v411
  %v482 = vmul.f32 %v411, %v481
  %vm483 = vcmp.eq.f32.partialorder %v411, inf
  %v484 = vsel %vm483, %v411, %v482
  %vm485 = vcmp.eq.f32.partialorder %v411, 0.0
  %v486 = vand.u32 %v411, 2147483648
  %v487 = vsel %vm485, %v486, %v484
  %v488 = vrsqrt.pop %v412
  %v489 = vmul.f32 %v412, %v488
  %vm490 = vcmp.eq.f32.partialorder %v412, inf
  %v491 = vsel %vm490, %v412, %v489
  %vm492 = vcmp.eq.f32.partialorder %v412, 0.0
  %v493 = vand.u32 %v412, 2147483648
  %v494 = vsel %vm492, %v493, %v491
  %v495 = vrsqrt.pop %v413
  %v496 = vmul.f32 %v413, %v495
  %vm497 = vcmp.eq.f32.partialorder %v413, inf
  %v498 = vsel %vm497, %v413, %v496
  %vm499 = vcmp.eq.f32.partialorder %v413, 0.0
  %v500 = vand.u32 %v413, 2147483648
  %v501 = vsel %vm499, %v500, %v498
  %v502 = vrsqrt.pop %v414
  %v503 = vmul.f32 %v414, %v502
  %vm504 = vcmp.eq.f32.partialorder %v414, inf
  %v505 = vsel %vm504, %v414, %v503
  %vm506 = vcmp.eq.f32.partialorder %v414, 0.0
  %v507 = vand.u32 %v414, 2147483648
  %v508 = vsel %vm506, %v507, %v505
  %v509 = vrsqrt.pop %v415
  %v510 = vmul.f32 %v415, %v509
  %vm511 = vcmp.eq.f32.partialorder %v415, inf
  %v512 = vsel %vm511, %v415, %v510
  %vm513 = vcmp.eq.f32.partialorder %v415, 0.0
  %v514 = vand.u32 %v415, 2147483648
  %v515 = vsel %vm513, %v514, %v512
  %v516 = vrsqrt.pop %v416
  %v517 = vmul.f32 %v416, %v516
  %vm518 = vcmp.eq.f32.partialorder %v416, inf
  %v519 = vsel %vm518, %v416, %v517
  %vm520 = vcmp.eq.f32.partialorder %v416, 0.0
  %v521 = vand.u32 %v416, 2147483648
  %v522 = vsel %vm520, %v521, %v519
  %v523 = vrsqrt.pop %v417
  %v524 = vmul.f32 %v417, %v523
  %vm525 = vcmp.eq.f32.partialorder %v417, inf
  %v526 = vsel %vm525, %v417, %v524
  %vm527 = vcmp.eq.f32.partialorder %v417, 0.0
  %v528 = vand.u32 %v417, 2147483648
  %v529 = vsel %vm527, %v528, %v526
  %v530 = vsel %vm386, 0.0, %v424
  %v531 = vsel %vm387, 0.0, %v431
  %v532 = vsel %vm388, 0.0, %v438
  %v533 = vsel %vm389, 0.0, %v445
  %v534 = vsel %vm390, 0.0, %v452
  %v535 = vsel %vm391, 0.0, %v459
  %v536 = vsel %vm392, 0.0, %v466
  %v537 = vsel %vm393, 0.0, %v473
  %v538 = vsel %vm394, 0.0, %v480
  %v539 = vsel %vm395, 0.0, %v487
  %v540 = vsel %vm396, 0.0, %v494
  %v541 = vsel %vm397, 0.0, %v501
  %v542 = vsel %vm398, 0.0, %v508
  %v543 = vsel %vm399, 0.0, %v515
  %v544 = vsel %vm400, 0.0, %v522
  %v545 = vsel %vm401, 0.0, %v529
  %s546 = smul.u32 0, 128
  %v547 = vlaneseq
  %v548 = vshrl.u32 %v547, 7
  %v549 = vadd.s32 %v548, 8
  %v550 = vadd.s32 %v548, 16
  %v551 = vadd.s32 %v548, 24
  %v552 = vadd.s32 %v548, 32
  %v553 = vadd.s32 %v548, 40
  %v554 = vadd.s32 %v548, 48
  %v555 = vadd.s32 %v548, 56
  %v556 = vadd.s32 %v548, 64
  %v557 = vadd.s32 %v548, 72
  %v558 = vadd.s32 %v548, 80
  %v559 = vadd.s32 %v548, 88
  %v560 = vadd.s32 %v548, 96
  %v561 = vadd.s32 %v548, 104
  %v562 = vadd.s32 %v548, 112
  %v563 = vadd.s32 %v548, 120
  %v564 = vstv %s546
  %v565 = vadd.s32 %v564, %v548
  %v566 = vadd.s32 %v564, %v549
  %v567 = vadd.s32 %v564, %v550
  %v568 = vadd.s32 %v564, %v551
  %v569 = vadd.s32 %v564, %v552
  %v570 = vadd.s32 %v564, %v553
  %v571 = vadd.s32 %v564, %v554
  %v572 = vadd.s32 %v564, %v555
  %v573 = vadd.s32 %v564, %v556
  %v574 = vadd.s32 %v564, %v557
  %v575 = vadd.s32 %v564, %v558
  %v576 = vadd.s32 %v564, %v559
  %v577 = vadd.s32 %v564, %v560
  %v578 = vadd.s32 %v564, %v561
  %v579 = vadd.s32 %v564, %v562
  %v580 = vadd.s32 %v564, %v563
  %v581 = vlaneseq
  %v582 = vand.u32 %v581, 127
  %583 = vset.pattern.permute.xlu0 0
  %584 = vperm.xlu0 %583, %v74
  %v585 = vpop.permute.xlu0 %584
  %586 = vset.pattern.permute.xlu0 0
  %587 = vperm.xlu0 %586, %v75
  %v588 = vpop.permute.xlu0 %587
  %589 = vset.pattern.permute.xlu0 0
  %590 = vperm.xlu0 %589, %v76
  %v591 = vpop.permute.xlu0 %590
  %592 = vset.pattern.permute.xlu0 0
  %593 = vperm.xlu0 %592, %v77
  %v594 = vpop.permute.xlu0 %593
  %595 = vset.pattern.permute.xlu0 0
  %596 = vperm.xlu0 %595, %v78
  %v597 = vpop.permute.xlu0 %596
  %598 = vset.pattern.permute.xlu0 0
  %599 = vperm.xlu0 %598, %v79
  %v600 = vpop.permute.xlu0 %599
  %601 = vset.pattern.permute.xlu0 0
  %602 = vperm.xlu0 %601, %v80
  %v603 = vpop.permute.xlu0 %602
  %604 = vset.pattern.permute.xlu0 0
  %605 = vperm.xlu0 %604, %v81
  %v606 = vpop.permute.xlu0 %605
  %607 = vset.pattern.permute.xlu0 0
  %608 = vperm.xlu0 %607, %v82
  %v609 = vpop.permute.xlu0 %608
  %610 = vset.pattern.permute.xlu0 0
  %611 = vperm.xlu0 %610, %v83
  %v612 = vpop.permute.xlu0 %611
  %613 = vset.pattern.permute.xlu0 0
  %614 = vperm.xlu0 %613, %v84
  %v615 = vpop.permute.xlu0 %614
  %616 = vset.pattern.permute.xlu0 0
  %617 = vperm.xlu0 %616, %v85
  %v618 = vpop.permute.xlu0 %617
  %619 = vset.pattern.permute.xlu0 0
  %620 = vperm.xlu0 %619, %v86
  %v621 = vpop.permute.xlu0 %620
  %622 = vset.pattern.permute.xlu0 0
  %623 = vperm.xlu0 %622, %v87
  %v624 = vpop.permute.xlu0 %623
  %625 = vset.pattern.permute.xlu0 0
  %626 = vperm.xlu0 %625, %v88
  %v627 = vpop.permute.xlu0 %626
  %628 = vset.pattern.permute.xlu0 0
  %629 = vperm.xlu0 %628, %v89
  %v630 = vpop.permute.xlu0 %629
  %v631 = vlaneseq
  %v632 = vshrl.u32 %v631, 7
  %v633 = vsub.s32 0, %v632
  %v634 = vrot.slane %v90, %v633
  %vm635 = vcmp.eq.s32.totalorder %v585, %v634
  %vm636 = vcmp.eq.s32.totalorder %v588, %v634
  %vm637 = vcmp.eq.s32.totalorder %v591, %v634
  %vm638 = vcmp.eq.s32.totalorder %v594, %v634
  %vm639 = vcmp.eq.s32.totalorder %v597, %v634
  %vm640 = vcmp.eq.s32.totalorder %v600, %v634
  %vm641 = vcmp.eq.s32.totalorder %v603, %v634
  %vm642 = vcmp.eq.s32.totalorder %v606, %v634
  %vm643 = vcmp.eq.s32.totalorder %v609, %v634
  %vm644 = vcmp.eq.s32.totalorder %v612, %v634
  %vm645 = vcmp.eq.s32.totalorder %v615, %v634
  %vm646 = vcmp.eq.s32.totalorder %v618, %v634
  %vm647 = vcmp.eq.s32.totalorder %v621, %v634
  %vm648 = vcmp.eq.s32.totalorder %v624, %v634
  %vm649 = vcmp.eq.s32.totalorder %v627, %v634
  %vm650 = vcmp.eq.s32.totalorder %v630, %v634
  %vm651 = vcmp.lt.s32.totalorder %v582, 8
  %vm652 = vcmp.ne.s32.totalorder %v565, %v582
  %vm653 = vcmp.ne.s32.totalorder %v566, %v582
  %vm654 = vcmp.ne.s32.totalorder %v567, %v582
  %vm655 = vcmp.ne.s32.totalorder %v568, %v582
  %vm656 = vcmp.ne.s32.totalorder %v569, %v582
  %vm657 = vcmp.ne.s32.totalorder %v570, %v582
  %vm658 = vcmp.ne.s32.totalorder %v571, %v582
  %vm659 = vcmp.ne.s32.totalorder %v572, %v582
  %vm660 = vcmp.ne.s32.totalorder %v573, %v582
  %vm661 = vcmp.ne.s32.totalorder %v574, %v582
  %vm662 = vcmp.ne.s32.totalorder %v575, %v582
  %vm663 = vcmp.ne.s32.totalorder %v576, %v582
  %vm664 = vcmp.ne.s32.totalorder %v577, %v582
  %vm665 = vcmp.ne.s32.totalorder %v578, %v582
  %vm666 = vcmp.ne.s32.totalorder %v579, %v582
  %vm667 = vcmp.ne.s32.totalorder %v580, %v582
  %vm668 = vmand %vm635, %vm652
  %vm669 = vmand %vm636, %vm653
  %vm670 = vmand %vm637, %vm654
  %vm671 = vmand %vm638, %vm655
  %vm672 = vmand %vm639, %vm656
  %vm673 = vmand %vm640, %vm657
  %vm674 = vmand %vm641, %vm658
  %vm675 = vmand %vm642, %vm659
  %vm676 = vmand %vm643, %vm660
  %vm677 = vmand %vm644, %vm661
  %vm678 = vmand %vm645, %vm662
  %vm679 = vmand %vm646, %vm663
  %vm680 = vmand %vm647, %vm664
  %vm681 = vmand %vm648, %vm665
  %vm682 = vmand %vm649, %vm666
  %vm683 = vmand %vm650, %vm667
  %vm684 = vcmp.lt.s32.totalorder %v565, 8
  %vm685 = vcmp.lt.s32.totalorder %v566, 8
  %vm686 = vcmp.lt.s32.totalorder %v567, 8
  %vm687 = vcmp.lt.s32.totalorder %v568, 8
  %vm688 = vcmp.lt.s32.totalorder %v569, 8
  %vm689 = vcmp.lt.s32.totalorder %v570, 8
  %vm690 = vcmp.lt.s32.totalorder %v571, 8
  %vm691 = vcmp.lt.s32.totalorder %v572, 8
  %vm692 = vcmp.lt.s32.totalorder %v573, 8
  %vm693 = vcmp.lt.s32.totalorder %v574, 8
  %vm694 = vcmp.lt.s32.totalorder %v575, 8
  %vm695 = vcmp.lt.s32.totalorder %v576, 8
  %vm696 = vcmp.lt.s32.totalorder %v577, 8
  %vm697 = vcmp.lt.s32.totalorder %v578, 8
  %vm698 = vcmp.lt.s32.totalorder %v579, 8
  %vm699 = vcmp.lt.s32.totalorder %v580, 8
  %vm700 = vmand %vm668, %vm684
  %vm701 = vmand %vm669, %vm685
  %vm702 = vmand %vm670, %vm686
  %vm703 = vmand %vm671, %vm687
  %vm704 = vmand %vm672, %vm688
  %vm705 = vmand %vm673, %vm689
  %vm706 = vmand %vm674, %vm690
  %vm707 = vmand %vm675, %vm691
  %vm708 = vmand %vm676, %vm692
  %vm709 = vmand %vm677, %vm693
  %vm710 = vmand %vm678, %vm694
  %vm711 = vmand %vm679, %vm695
  %vm712 = vmand %vm680, %vm696
  %vm713 = vmand %vm681, %vm697
  %vm714 = vmand %vm682, %vm698
  %vm715 = vmand %vm683, %vm699
  %vm716 = vmand %vm700, %vm651
  %vm717 = vmand %vm701, %vm651
  %vm718 = vmand %vm702, %vm651
  %vm719 = vmand %vm703, %vm651
  %vm720 = vmand %vm704, %vm651
  %vm721 = vmand %vm705, %vm651
  %vm722 = vmand %vm706, %vm651
  %vm723 = vmand %vm707, %vm651
  %vm724 = vmand %vm708, %vm651
  %vm725 = vmand %vm709, %vm651
  %vm726 = vmand %vm710, %vm651
  %vm727 = vmand %vm711, %vm651
  %vm728 = vmand %vm712, %vm651
  %vm729 = vmand %vm713, %vm651
  %vm730 = vmand %vm714, %vm651
  %vm731 = vmand %vm715, %vm651
  %vm732 = vmxor %vm635, 1
  %vm733 = vmxor %vm636, 1
  %vm734 = vmxor %vm637, 1
  %vm735 = vmxor %vm638, 1
  %vm736 = vmxor %vm639, 1
  %vm737 = vmxor %vm640, 1
  %vm738 = vmxor %vm641, 1
  %vm739 = vmxor %vm642, 1
  %vm740 = vmxor %vm643, 1
  %vm741 = vmxor %vm644, 1
  %vm742 = vmxor %vm645, 1
  %vm743 = vmxor %vm646, 1
  %vm744 = vmxor %vm647, 1
  %vm745 = vmxor %vm648, 1
  %vm746 = vmxor %vm649, 1
  %vm747 = vmxor %vm650, 1
  %vm748 = vmand %vm732, %vm651
  %vm749 = vmand %vm733, %vm651
  %vm750 = vmand %vm734, %vm651
  %vm751 = vmand %vm735, %vm651
  %vm752 = vmand %vm736, %vm651
  %vm753 = vmand %vm737, %vm651
  %vm754 = vmand %vm738, %vm651
  %vm755 = vmand %vm739, %vm651
  %vm756 = vmand %vm740, %vm651
  %vm757 = vmand %vm741, %vm651
  %vm758 = vmand %vm742, %vm651
  %vm759 = vmand %vm743, %vm651
  %vm760 = vmand %vm744, %vm651
  %vm761 = vmand %vm745, %vm651
  %vm762 = vmand %vm746, %vm651
  %vm763 = vmand %vm747, %vm651
  %v764 = vadd.f32 %v530, 0.2
  %v765 = vadd.f32 %v531, 0.2
  %v766 = vadd.f32 %v532, 0.2
  %v767 = vadd.f32 %v533, 0.2
  %v768 = vadd.f32 %v534, 0.2
  %v769 = vadd.f32 %v535, 0.2
  %v770 = vadd.f32 %v536, 0.2
  %v771 = vadd.f32 %v537, 0.2
  %v772 = vadd.f32 %v538, 0.2
  %v773 = vadd.f32 %v539, 0.2
  %v774 = vadd.f32 %v540, 0.2
  %v775 = vadd.f32 %v541, 0.2
  %v776 = vadd.f32 %v542, 0.2
  %v777 = vadd.f32 %v543, 0.2
  %v778 = vadd.f32 %v544, 0.2
  %v779 = vadd.f32 %v545, 0.2
  %v780 = vsel %vm716, %v764, -1e+30
  %v781 = vsel %vm717, %v765, -1e+30
  %v782 = vsel %vm718, %v766, -1e+30
  %v783 = vsel %vm719, %v767, -1e+30
  %v784 = vsel %vm720, %v768, -1e+30
  %v785 = vsel %vm721, %v769, -1e+30
  %v786 = vsel %vm722, %v770, -1e+30
  %v787 = vsel %vm723, %v771, -1e+30
  %v788 = vsel %vm724, %v772, -1e+30
  %v789 = vsel %vm725, %v773, -1e+30
  %v790 = vsel %vm726, %v774, -1e+30
  %v791 = vsel %vm727, %v775, -1e+30
  %v792 = vsel %vm728, %v776, -1e+30
  %v793 = vsel %vm729, %v777, -1e+30
  %v794 = vsel %vm730, %v778, -1e+30
  %v795 = vsel %vm731, %v779, -1e+30
  %v796 = vsel %vm748, %v530, 1e+30
  %v797 = vsel %vm749, %v531, 1e+30
  %v798 = vsel %vm750, %v532, 1e+30
  %v799 = vsel %vm751, %v533, 1e+30
  %v800 = vsel %vm752, %v534, 1e+30
  %v801 = vsel %vm753, %v535, 1e+30
  %v802 = vsel %vm754, %v536, 1e+30
  %v803 = vsel %vm755, %v537, 1e+30
  %v804 = vsel %vm756, %v538, 1e+30
  %v805 = vsel %vm757, %v539, 1e+30
  %v806 = vsel %vm758, %v540, 1e+30
  %v807 = vsel %vm759, %v541, 1e+30
  %v808 = vsel %vm760, %v542, 1e+30
  %v809 = vsel %vm761, %v543, 1e+30
  %v810 = vsel %vm762, %v544, 1e+30
  %v811 = vsel %vm763, %v545, 1e+30
  %v828 = vcombine.high %v780, %v780
  %v830 = vunpack.c.l.s4 1966171168
  %v831 = vunpack.c.0.s8 %v830
  %v832 = vlaneseq
  %v833 = vshrl.u32 %v832, 7
  %v834 = vsub.s32 %v831, %v833
  %v835 = vrot.slane %v780, %v834
  %v837 = vunpack.c.l.s4 1966171168
  %v838 = vunpack.c.0.s8 %v837
  %v839 = vlaneseq
  %v840 = vshrl.u32 %v839, 7
  %v841 = vsub.s32 %v838, %v840
  %v842 = vrot.slane %v828, %v841
  %v843 = vcombine.high %v835, %v835
  %v844 = vcombine.high %v842, %v842
  %v846 = vunpack.c.l.s4 1966171168
  %v847 = vunpack.c.0.s8 %v846
  %v848 = vlaneseq
  %v849 = vshrl.u32 %v848, 7
  %v850 = vsub.s32 %v847, %v849
  %v851 = vrot.slane %v835, %v850
  %v853 = vunpack.c.l.s4 1966171168
  %v854 = vunpack.c.0.s8 %v853
  %v855 = vlaneseq
  %v856 = vshrl.u32 %v855, 7
  %v857 = vsub.s32 %v854, %v856
  %v858 = vrot.slane %v842, %v857
  %v860 = vunpack.c.l.s4 1966171168
  %v861 = vunpack.c.0.s8 %v860
  %v862 = vlaneseq
  %v863 = vshrl.u32 %v862, 7
  %v864 = vsub.s32 %v861, %v863
  %v865 = vrot.slane %v843, %v864
  %v867 = vunpack.c.l.s4 1966171168
  %v868 = vunpack.c.0.s8 %v867
  %v869 = vlaneseq
  %v870 = vshrl.u32 %v869, 7
  %v871 = vsub.s32 %v868, %v870
  %v872 = vrot.slane %v844, %v871
  %v873 = vcombine.high %v851, %v851
  %v874 = vcombine.high %v858, %v858
  %v875 = vcombine.high %v865, %v865
  %v876 = vcombine.high %v872, %v872
  %v877 = vcombine.high %v781, %v781
  %v879 = vunpack.c.l.s4 1966171168
  %v880 = vunpack.c.0.s8 %v879
  %v881 = vlaneseq
  %v882 = vshrl.u32 %v881, 7
  %v883 = vsub.s32 %v880, %v882
  %v884 = vrot.slane %v781, %v883
  %v886 = vunpack.c.l.s4 1966171168
  %v887 = vunpack.c.0.s8 %v886
  %v888 = vlaneseq
  %v889 = vshrl.u32 %v888, 7
  %v890 = vsub.s32 %v887, %v889
  %v891 = vrot.slane %v877, %v890
  %v892 = vcombine.high %v884, %v884
  %v893 = vcombine.high %v891, %v891
  %v895 = vunpack.c.l.s4 1966171168
  %v896 = vunpack.c.0.s8 %v895
  %v897 = vlaneseq
  %v898 = vshrl.u32 %v897, 7
  %v899 = vsub.s32 %v896, %v898
  %v900 = vrot.slane %v884, %v899
  %v902 = vunpack.c.l.s4 1966171168
  %v903 = vunpack.c.0.s8 %v902
  %v904 = vlaneseq
  %v905 = vshrl.u32 %v904, 7
  %v906 = vsub.s32 %v903, %v905
  %v907 = vrot.slane %v891, %v906
  %v909 = vunpack.c.l.s4 1966171168
  %v910 = vunpack.c.0.s8 %v909
  %v911 = vlaneseq
  %v912 = vshrl.u32 %v911, 7
  %v913 = vsub.s32 %v910, %v912
  %v914 = vrot.slane %v892, %v913
  %v916 = vunpack.c.l.s4 1966171168
  %v917 = vunpack.c.0.s8 %v916
  %v918 = vlaneseq
  %v919 = vshrl.u32 %v918, 7
  %v920 = vsub.s32 %v917, %v919
  %v921 = vrot.slane %v893, %v920
  %v922 = vcombine.high %v900, %v900
  %v923 = vcombine.high %v907, %v907
  %v924 = vcombine.high %v914, %v914
  %v925 = vcombine.high %v921, %v921
  %v926 = vcombine.high %v782, %v782
  %v928 = vunpack.c.l.s4 1966171168
  %v929 = vunpack.c.0.s8 %v928
  %v930 = vlaneseq
  %v931 = vshrl.u32 %v930, 7
  %v932 = vsub.s32 %v929, %v931
  %v933 = vrot.slane %v782, %v932
  %v935 = vunpack.c.l.s4 1966171168
  %v936 = vunpack.c.0.s8 %v935
  %v937 = vlaneseq
  %v938 = vshrl.u32 %v937, 7
  %v939 = vsub.s32 %v936, %v938
  %v940 = vrot.slane %v926, %v939
  %v941 = vcombine.high %v933, %v933
  %v942 = vcombine.high %v940, %v940
  %v944 = vunpack.c.l.s4 1966171168
  %v945 = vunpack.c.0.s8 %v944
  %v946 = vlaneseq
  %v947 = vshrl.u32 %v946, 7
  %v948 = vsub.s32 %v945, %v947
  %v949 = vrot.slane %v933, %v948
  %v951 = vunpack.c.l.s4 1966171168
  %v952 = vunpack.c.0.s8 %v951
  %v953 = vlaneseq
  %v954 = vshrl.u32 %v953, 7
  %v955 = vsub.s32 %v952, %v954
  %v956 = vrot.slane %v940, %v955
  %v958 = vunpack.c.l.s4 1966171168
  %v959 = vunpack.c.0.s8 %v958
  %v960 = vlaneseq
  %v961 = vshrl.u32 %v960, 7
  %v962 = vsub.s32 %v959, %v961
  %v963 = vrot.slane %v941, %v962
  %v965 = vunpack.c.l.s4 1966171168
  %v966 = vunpack.c.0.s8 %v965
  %v967 = vlaneseq
  %v968 = vshrl.u32 %v967, 7
  %v969 = vsub.s32 %v966, %v968
  %v970 = vrot.slane %v942, %v969
  %v971 = vcombine.high %v949, %v949
  %v972 = vcombine.high %v956, %v956
  %v973 = vcombine.high %v963, %v963
  %v974 = vcombine.high %v970, %v970
  %v975 = vcombine.high %v783, %v783
  %v977 = vunpack.c.l.s4 1966171168
  %v978 = vunpack.c.0.s8 %v977
  %v979 = vlaneseq
  %v980 = vshrl.u32 %v979, 7
  %v981 = vsub.s32 %v978, %v980
  %v982 = vrot.slane %v783, %v981
  %v984 = vunpack.c.l.s4 1966171168
  %v985 = vunpack.c.0.s8 %v984
  %v986 = vlaneseq
  %v987 = vshrl.u32 %v986, 7
  %v988 = vsub.s32 %v985, %v987
  %v989 = vrot.slane %v975, %v988
  %v990 = vcombine.high %v982, %v982
  %v991 = vcombine.high %v989, %v989
  %v993 = vunpack.c.l.s4 1966171168
  %v994 = vunpack.c.0.s8 %v993
  %v995 = vlaneseq
  %v996 = vshrl.u32 %v995, 7
  %v997 = vsub.s32 %v994, %v996
  %v998 = vrot.slane %v982, %v997
  %v1000 = vunpack.c.l.s4 1966171168
  %v1001 = vunpack.c.0.s8 %v1000
  %v1002 = vlaneseq
  %v1003 = vshrl.u32 %v1002, 7
  %v1004 = vsub.s32 %v1001, %v1003
  %v1005 = vrot.slane %v989, %v1004
  %v1007 = vunpack.c.l.s4 1966171168
  %v1008 = vunpack.c.0.s8 %v1007
  %v1009 = vlaneseq
  %v1010 = vshrl.u32 %v1009, 7
  %v1011 = vsub.s32 %v1008, %v1010
  %v1012 = vrot.slane %v990, %v1011
  %v1014 = vunpack.c.l.s4 1966171168
  %v1015 = vunpack.c.0.s8 %v1014
  %v1016 = vlaneseq
  %v1017 = vshrl.u32 %v1016, 7
  %v1018 = vsub.s32 %v1015, %v1017
  %v1019 = vrot.slane %v991, %v1018
  %v1020 = vcombine.high %v998, %v998
  %v1021 = vcombine.high %v1005, %v1005
  %v1022 = vcombine.high %v1012, %v1012
  %v1023 = vcombine.high %v1019, %v1019
  %v1024 = vcombine.high %v784, %v784
  %v1026 = vunpack.c.l.s4 1966171168
  %v1027 = vunpack.c.0.s8 %v1026
  %v1028 = vlaneseq
  %v1029 = vshrl.u32 %v1028, 7
  %v1030 = vsub.s32 %v1027, %v1029
  %v1031 = vrot.slane %v784, %v1030
  %v1033 = vunpack.c.l.s4 1966171168
  %v1034 = vunpack.c.0.s8 %v1033
  %v1035 = vlaneseq
  %v1036 = vshrl.u32 %v1035, 7
  %v1037 = vsub.s32 %v1034, %v1036
  %v1038 = vrot.slane %v1024, %v1037
  %v1039 = vcombine.high %v1031, %v1031
  %v1040 = vcombine.high %v1038, %v1038
  %v1042 = vunpack.c.l.s4 1966171168
  %v1043 = vunpack.c.0.s8 %v1042
  %v1044 = vlaneseq
  %v1045 = vshrl.u32 %v1044, 7
  %v1046 = vsub.s32 %v1043, %v1045
  %v1047 = vrot.slane %v1031, %v1046
  %v1049 = vunpack.c.l.s4 1966171168
  %v1050 = vunpack.c.0.s8 %v1049
  %v1051 = vlaneseq
  %v1052 = vshrl.u32 %v1051, 7
  %v1053 = vsub.s32 %v1050, %v1052
  %v1054 = vrot.slane %v1038, %v1053
  %v1056 = vunpack.c.l.s4 1966171168
  %v1057 = vunpack.c.0.s8 %v1056
  %v1058 = vlaneseq
  %v1059 = vshrl.u32 %v1058, 7
  %v1060 = vsub.s32 %v1057, %v1059
  %v1061 = vrot.slane %v1039, %v1060
  %v1063 = vunpack.c.l.s4 1966171168
  %v1064 = vunpack.c.0.s8 %v1063
  %v1065 = vlaneseq
  %v1066 = vshrl.u32 %v1065, 7
  %v1067 = vsub.s32 %v1064, %v1066
  %v1068 = vrot.slane %v1040, %v1067
  %v1069 = vcombine.high %v1047, %v1047
  %v1070 = vcombine.high %v1054, %v1054
  %v1071 = vcombine.high %v1061, %v1061
  %v1072 = vcombine.high %v1068, %v1068
  %v1073 = vcombine.high %v785, %v785
  %v1075 = vunpack.c.l.s4 1966171168
  %v1076 = vunpack.c.0.s8 %v1075
  %v1077 = vlaneseq
  %v1078 = vshrl.u32 %v1077, 7
  %v1079 = vsub.s32 %v1076, %v1078
  %v1080 = vrot.slane %v785, %v1079
  %v1082 = vunpack.c.l.s4 1966171168
  %v1083 = vunpack.c.0.s8 %v1082
  %v1084 = vlaneseq
  %v1085 = vshrl.u32 %v1084, 7
  %v1086 = vsub.s32 %v1083, %v1085
  %v1087 = vrot.slane %v1073, %v1086
  %v1088 = vcombine.high %v1080, %v1080
  %v1089 = vcombine.high %v1087, %v1087
  %v1091 = vunpack.c.l.s4 1966171168
  %v1092 = vunpack.c.0.s8 %v1091
  %v1093 = vlaneseq
  %v1094 = vshrl.u32 %v1093, 7
  %v1095 = vsub.s32 %v1092, %v1094
  %v1096 = vrot.slane %v1080, %v1095
  %v1098 = vunpack.c.l.s4 1966171168
  %v1099 = vunpack.c.0.s8 %v1098
  %v1100 = vlaneseq
  %v1101 = vshrl.u32 %v1100, 7
  %v1102 = vsub.s32 %v1099, %v1101
  %v1103 = vrot.slane %v1087, %v1102
  %v1105 = vunpack.c.l.s4 1966171168
  %v1106 = vunpack.c.0.s8 %v1105
  %v1107 = vlaneseq
  %v1108 = vshrl.u32 %v1107, 7
  %v1109 = vsub.s32 %v1106, %v1108
  %v1110 = vrot.slane %v1088, %v1109
  %v1112 = vunpack.c.l.s4 1966171168
  %v1113 = vunpack.c.0.s8 %v1112
  %v1114 = vlaneseq
  %v1115 = vshrl.u32 %v1114, 7
  %v1116 = vsub.s32 %v1113, %v1115
  %v1117 = vrot.slane %v1089, %v1116
  %v1118 = vcombine.high %v1096, %v1096
  %v1119 = vcombine.high %v1103, %v1103
  %v1120 = vcombine.high %v1110, %v1110
  %v1121 = vcombine.high %v1117, %v1117
  %v1122 = vcombine.high %v786, %v786
  %v1124 = vunpack.c.l.s4 1966171168
  %v1125 = vunpack.c.0.s8 %v1124
  %v1126 = vlaneseq
  %v1127 = vshrl.u32 %v1126, 7
  %v1128 = vsub.s32 %v1125, %v1127
  %v1129 = vrot.slane %v786, %v1128
  %v1131 = vunpack.c.l.s4 1966171168
  %v1132 = vunpack.c.0.s8 %v1131
  %v1133 = vlaneseq
  %v1134 = vshrl.u32 %v1133, 7
  %v1135 = vsub.s32 %v1132, %v1134
  %v1136 = vrot.slane %v1122, %v1135
  %v1137 = vcombine.high %v1129, %v1129
  %v1138 = vcombine.high %v1136, %v1136
  %v1140 = vunpack.c.l.s4 1966171168
  %v1141 = vunpack.c.0.s8 %v1140
  %v1142 = vlaneseq
  %v1143 = vshrl.u32 %v1142, 7
  %v1144 = vsub.s32 %v1141, %v1143
  %v1145 = vrot.slane %v1129, %v1144
  %v1147 = vunpack.c.l.s4 1966171168
  %v1148 = vunpack.c.0.s8 %v1147
  %v1149 = vlaneseq
  %v1150 = vshrl.u32 %v1149, 7
  %v1151 = vsub.s32 %v1148, %v1150
  %v1152 = vrot.slane %v1136, %v1151
  %v1154 = vunpack.c.l.s4 1966171168
  %v1155 = vunpack.c.0.s8 %v1154
  %v1156 = vlaneseq
  %v1157 = vshrl.u32 %v1156, 7
  %v1158 = vsub.s32 %v1155, %v1157
  %v1159 = vrot.slane %v1137, %v1158
  %v1161 = vunpack.c.l.s4 1966171168
  %v1162 = vunpack.c.0.s8 %v1161
  %v1163 = vlaneseq
  %v1164 = vshrl.u32 %v1163, 7
  %v1165 = vsub.s32 %v1162, %v1164
  %v1166 = vrot.slane %v1138, %v1165
  %v1167 = vcombine.high %v1145, %v1145
  %v1168 = vcombine.high %v1152, %v1152
  %v1169 = vcombine.high %v1159, %v1159
  %v1170 = vcombine.high %v1166, %v1166
  %v1171 = vcombine.high %v787, %v787
  %v1173 = vunpack.c.l.s4 1966171168
  %v1174 = vunpack.c.0.s8 %v1173
  %v1175 = vlaneseq
  %v1176 = vshrl.u32 %v1175, 7
  %v1177 = vsub.s32 %v1174, %v1176
  %v1178 = vrot.slane %v787, %v1177
  %v1180 = vunpack.c.l.s4 1966171168
  %v1181 = vunpack.c.0.s8 %v1180
  %v1182 = vlaneseq
  %v1183 = vshrl.u32 %v1182, 7
  %v1184 = vsub.s32 %v1181, %v1183
  %v1185 = vrot.slane %v1171, %v1184
  %v1186 = vcombine.high %v1178, %v1178
  %v1187 = vcombine.high %v1185, %v1185
  %v1189 = vunpack.c.l.s4 1966171168
  %v1190 = vunpack.c.0.s8 %v1189
  %v1191 = vlaneseq
  %v1192 = vshrl.u32 %v1191, 7
  %v1193 = vsub.s32 %v1190, %v1192
  %v1194 = vrot.slane %v1178, %v1193
  %v1196 = vunpack.c.l.s4 1966171168
  %v1197 = vunpack.c.0.s8 %v1196
  %v1198 = vlaneseq
  %v1199 = vshrl.u32 %v1198, 7
  %v1200 = vsub.s32 %v1197, %v1199
  %v1201 = vrot.slane %v1185, %v1200
  %v1203 = vunpack.c.l.s4 1966171168
  %v1204 = vunpack.c.0.s8 %v1203
  %v1205 = vlaneseq
  %v1206 = vshrl.u32 %v1205, 7
  %v1207 = vsub.s32 %v1204, %v1206
  %v1208 = vrot.slane %v1186, %v1207
  %v1210 = vunpack.c.l.s4 1966171168
  %v1211 = vunpack.c.0.s8 %v1210
  %v1212 = vlaneseq
  %v1213 = vshrl.u32 %v1212, 7
  %v1214 = vsub.s32 %v1211, %v1213
  %v1215 = vrot.slane %v1187, %v1214
  %v1216 = vcombine.high %v1194, %v1194
  %v1217 = vcombine.high %v1201, %v1201
  %v1218 = vcombine.high %v1208, %v1208
  %v1219 = vcombine.high %v1215, %v1215
  %v1220 = vcombine.high %v788, %v788
  %v1222 = vunpack.c.l.s4 1966171168
  %v1223 = vunpack.c.0.s8 %v1222
  %v1224 = vlaneseq
  %v1225 = vshrl.u32 %v1224, 7
  %v1226 = vsub.s32 %v1223, %v1225
  %v1227 = vrot.slane %v788, %v1226
  %v1229 = vunpack.c.l.s4 1966171168
  %v1230 = vunpack.c.0.s8 %v1229
  %v1231 = vlaneseq
  %v1232 = vshrl.u32 %v1231, 7
  %v1233 = vsub.s32 %v1230, %v1232
  %v1234 = vrot.slane %v1220, %v1233
  %v1235 = vcombine.high %v1227, %v1227
  %v1236 = vcombine.high %v1234, %v1234
  %v1238 = vunpack.c.l.s4 1966171168
  %v1239 = vunpack.c.0.s8 %v1238
  %v1240 = vlaneseq
  %v1241 = vshrl.u32 %v1240, 7
  %v1242 = vsub.s32 %v1239, %v1241
  %v1243 = vrot.slane %v1227, %v1242
  %v1245 = vunpack.c.l.s4 1966171168
  %v1246 = vunpack.c.0.s8 %v1245
  %v1247 = vlaneseq
  %v1248 = vshrl.u32 %v1247, 7
  %v1249 = vsub.s32 %v1246, %v1248
  %v1250 = vrot.slane %v1234, %v1249
  %v1252 = vunpack.c.l.s4 1966171168
  %v1253 = vunpack.c.0.s8 %v1252
  %v1254 = vlaneseq
  %v1255 = vshrl.u32 %v1254, 7
  %v1256 = vsub.s32 %v1253, %v1255
  %v1257 = vrot.slane %v1235, %v1256
  %v1259 = vunpack.c.l.s4 1966171168
  %v1260 = vunpack.c.0.s8 %v1259
  %v1261 = vlaneseq
  %v1262 = vshrl.u32 %v1261, 7
  %v1263 = vsub.s32 %v1260, %v1262
  %v1264 = vrot.slane %v1236, %v1263
  %v1265 = vcombine.high %v1243, %v1243
  %v1266 = vcombine.high %v1250, %v1250
  %v1267 = vcombine.high %v1257, %v1257
  %v1268 = vcombine.high %v1264, %v1264
  %v1269 = vcombine.high %v789, %v789
  %v1271 = vunpack.c.l.s4 1966171168
  %v1272 = vunpack.c.0.s8 %v1271
  %v1273 = vlaneseq
  %v1274 = vshrl.u32 %v1273, 7
  %v1275 = vsub.s32 %v1272, %v1274
  %v1276 = vrot.slane %v789, %v1275
  %v1278 = vunpack.c.l.s4 1966171168
  %v1279 = vunpack.c.0.s8 %v1278
  %v1280 = vlaneseq
  %v1281 = vshrl.u32 %v1280, 7
  %v1282 = vsub.s32 %v1279, %v1281
  %v1283 = vrot.slane %v1269, %v1282
  %v1284 = vcombine.high %v1276, %v1276
  %v1285 = vcombine.high %v1283, %v1283
  %v1287 = vunpack.c.l.s4 1966171168
  %v1288 = vunpack.c.0.s8 %v1287
  %v1289 = vlaneseq
  %v1290 = vshrl.u32 %v1289, 7
  %v1291 = vsub.s32 %v1288, %v1290
  %v1292 = vrot.slane %v1276, %v1291
  %v1294 = vunpack.c.l.s4 1966171168
  %v1295 = vunpack.c.0.s8 %v1294
  %v1296 = vlaneseq
  %v1297 = vshrl.u32 %v1296, 7
  %v1298 = vsub.s32 %v1295, %v1297
  %v1299 = vrot.slane %v1283, %v1298
  %v1301 = vunpack.c.l.s4 1966171168
  %v1302 = vunpack.c.0.s8 %v1301
  %v1303 = vlaneseq
  %v1304 = vshrl.u32 %v1303, 7
  %v1305 = vsub.s32 %v1302, %v1304
  %v1306 = vrot.slane %v1284, %v1305
  %v1308 = vunpack.c.l.s4 1966171168
  %v1309 = vunpack.c.0.s8 %v1308
  %v1310 = vlaneseq
  %v1311 = vshrl.u32 %v1310, 7
  %v1312 = vsub.s32 %v1309, %v1311
  %v1313 = vrot.slane %v1285, %v1312
  %v1314 = vcombine.high %v1292, %v1292
  %v1315 = vcombine.high %v1299, %v1299
  %v1316 = vcombine.high %v1306, %v1306
  %v1317 = vcombine.high %v1313, %v1313
  %v1318 = vcombine.high %v790, %v790
  %v1320 = vunpack.c.l.s4 1966171168
  %v1321 = vunpack.c.0.s8 %v1320
  %v1322 = vlaneseq
  %v1323 = vshrl.u32 %v1322, 7
  %v1324 = vsub.s32 %v1321, %v1323
  %v1325 = vrot.slane %v790, %v1324
  %v1327 = vunpack.c.l.s4 1966171168
  %v1328 = vunpack.c.0.s8 %v1327
  %v1329 = vlaneseq
  %v1330 = vshrl.u32 %v1329, 7
  %v1331 = vsub.s32 %v1328, %v1330
  %v1332 = vrot.slane %v1318, %v1331
  %v1333 = vcombine.high %v1325, %v1325
  %v1334 = vcombine.high %v1332, %v1332
  %v1336 = vunpack.c.l.s4 1966171168
  %v1337 = vunpack.c.0.s8 %v1336
  %v1338 = vlaneseq
  %v1339 = vshrl.u32 %v1338, 7
  %v1340 = vsub.s32 %v1337, %v1339
  %v1341 = vrot.slane %v1325, %v1340
  %v1343 = vunpack.c.l.s4 1966171168
  %v1344 = vunpack.c.0.s8 %v1343
  %v1345 = vlaneseq
  %v1346 = vshrl.u32 %v1345, 7
  %v1347 = vsub.s32 %v1344, %v1346
  %v1348 = vrot.slane %v1332, %v1347
  %v1350 = vunpack.c.l.s4 1966171168
  %v1351 = vunpack.c.0.s8 %v1350
  %v1352 = vlaneseq
  %v1353 = vshrl.u32 %v1352, 7
  %v1354 = vsub.s32 %v1351, %v1353
  %v1355 = vrot.slane %v1333, %v1354
  %v1357 = vunpack.c.l.s4 1966171168
  %v1358 = vunpack.c.0.s8 %v1357
  %v1359 = vlaneseq
  %v1360 = vshrl.u32 %v1359, 7
  %v1361 = vsub.s32 %v1358, %v1360
  %v1362 = vrot.slane %v1334, %v1361
  %v1363 = vcombine.high %v1341, %v1341
  %v1364 = vcombine.high %v1348, %v1348
  %v1365 = vcombine.high %v1355, %v1355
  %v1366 = vcombine.high %v1362, %v1362
  %v1367 = vcombine.high %v791, %v791
  %v1369 = vunpack.c.l.s4 1966171168
  %v1370 = vunpack.c.0.s8 %v1369
  %v1371 = vlaneseq
  %v1372 = vshrl.u32 %v1371, 7
  %v1373 = vsub.s32 %v1370, %v1372
  %v1374 = vrot.slane %v791, %v1373
  %v1376 = vunpack.c.l.s4 1966171168
  %v1377 = vunpack.c.0.s8 %v1376
  %v1378 = vlaneseq
  %v1379 = vshrl.u32 %v1378, 7
  %v1380 = vsub.s32 %v1377, %v1379
  %v1381 = vrot.slane %v1367, %v1380
  %v1382 = vcombine.high %v1374, %v1374
  %v1383 = vcombine.high %v1381, %v1381
  %v1385 = vunpack.c.l.s4 1966171168
  %v1386 = vunpack.c.0.s8 %v1385
  %v1387 = vlaneseq
  %v1388 = vshrl.u32 %v1387, 7
  %v1389 = vsub.s32 %v1386, %v1388
  %v1390 = vrot.slane %v1374, %v1389
  %v1392 = vunpack.c.l.s4 1966171168
  %v1393 = vunpack.c.0.s8 %v1392
  %v1394 = vlaneseq
  %v1395 = vshrl.u32 %v1394, 7
  %v1396 = vsub.s32 %v1393, %v1395
  %v1397 = vrot.slane %v1381, %v1396
  %v1399 = vunpack.c.l.s4 1966171168
  %v1400 = vunpack.c.0.s8 %v1399
  %v1401 = vlaneseq
  %v1402 = vshrl.u32 %v1401, 7
  %v1403 = vsub.s32 %v1400, %v1402
  %v1404 = vrot.slane %v1382, %v1403
  %v1406 = vunpack.c.l.s4 1966171168
  %v1407 = vunpack.c.0.s8 %v1406
  %v1408 = vlaneseq
  %v1409 = vshrl.u32 %v1408, 7
  %v1410 = vsub.s32 %v1407, %v1409
  %v1411 = vrot.slane %v1383, %v1410
  %v1412 = vcombine.high %v1390, %v1390
  %v1413 = vcombine.high %v1397, %v1397
  %v1414 = vcombine.high %v1404, %v1404
  %v1415 = vcombine.high %v1411, %v1411
  %v1416 = vcombine.high %v792, %v792
  %v1418 = vunpack.c.l.s4 1966171168
  %v1419 = vunpack.c.0.s8 %v1418
  %v1420 = vlaneseq
  %v1421 = vshrl.u32 %v1420, 7
  %v1422 = vsub.s32 %v1419, %v1421
  %v1423 = vrot.slane %v792, %v1422
  %v1425 = vunpack.c.l.s4 1966171168
  %v1426 = vunpack.c.0.s8 %v1425
  %v1427 = vlaneseq
  %v1428 = vshrl.u32 %v1427, 7
  %v1429 = vsub.s32 %v1426, %v1428
  %v1430 = vrot.slane %v1416, %v1429
  %v1431 = vcombine.high %v1423, %v1423
  %v1432 = vcombine.high %v1430, %v1430
  %v1434 = vunpack.c.l.s4 1966171168
  %v1435 = vunpack.c.0.s8 %v1434
  %v1436 = vlaneseq
  %v1437 = vshrl.u32 %v1436, 7
  %v1438 = vsub.s32 %v1435, %v1437
  %v1439 = vrot.slane %v1423, %v1438
  %v1441 = vunpack.c.l.s4 1966171168
  %v1442 = vunpack.c.0.s8 %v1441
  %v1443 = vlaneseq
  %v1444 = vshrl.u32 %v1443, 7
  %v1445 = vsub.s32 %v1442, %v1444
  %v1446 = vrot.slane %v1430, %v1445
  %v1448 = vunpack.c.l.s4 1966171168
  %v1449 = vunpack.c.0.s8 %v1448
  %v1450 = vlaneseq
  %v1451 = vshrl.u32 %v1450, 7
  %v1452 = vsub.s32 %v1449, %v1451
  %v1453 = vrot.slane %v1431, %v1452
  %v1455 = vunpack.c.l.s4 1966171168
  %v1456 = vunpack.c.0.s8 %v1455
  %v1457 = vlaneseq
  %v1458 = vshrl.u32 %v1457, 7
  %v1459 = vsub.s32 %v1456, %v1458
  %v1460 = vrot.slane %v1432, %v1459
  %v1461 = vcombine.high %v1439, %v1439
  %v1462 = vcombine.high %v1446, %v1446
  %v1463 = vcombine.high %v1453, %v1453
  %v1464 = vcombine.high %v1460, %v1460
  %v1465 = vcombine.high %v793, %v793
  %v1467 = vunpack.c.l.s4 1966171168
  %v1468 = vunpack.c.0.s8 %v1467
  %v1469 = vlaneseq
  %v1470 = vshrl.u32 %v1469, 7
  %v1471 = vsub.s32 %v1468, %v1470
  %v1472 = vrot.slane %v793, %v1471
  %v1474 = vunpack.c.l.s4 1966171168
  %v1475 = vunpack.c.0.s8 %v1474
  %v1476 = vlaneseq
  %v1477 = vshrl.u32 %v1476, 7
  %v1478 = vsub.s32 %v1475, %v1477
  %v1479 = vrot.slane %v1465, %v1478
  %v1480 = vcombine.high %v1472, %v1472
  %v1481 = vcombine.high %v1479, %v1479
  %v1483 = vunpack.c.l.s4 1966171168
  %v1484 = vunpack.c.0.s8 %v1483
  %v1485 = vlaneseq
  %v1486 = vshrl.u32 %v1485, 7
  %v1487 = vsub.s32 %v1484, %v1486
  %v1488 = vrot.slane %v1472, %v1487
  %v1490 = vunpack.c.l.s4 1966171168
  %v1491 = vunpack.c.0.s8 %v1490
  %v1492 = vlaneseq
  %v1493 = vshrl.u32 %v1492, 7
  %v1494 = vsub.s32 %v1491, %v1493
  %v1495 = vrot.slane %v1479, %v1494
  %v1497 = vunpack.c.l.s4 1966171168
  %v1498 = vunpack.c.0.s8 %v1497
  %v1499 = vlaneseq
  %v1500 = vshrl.u32 %v1499, 7
  %v1501 = vsub.s32 %v1498, %v1500
  %v1502 = vrot.slane %v1480, %v1501
  %v1504 = vunpack.c.l.s4 1966171168
  %v1505 = vunpack.c.0.s8 %v1504
  %v1506 = vlaneseq
  %v1507 = vshrl.u32 %v1506, 7
  %v1508 = vsub.s32 %v1505, %v1507
  %v1509 = vrot.slane %v1481, %v1508
  %v1510 = vcombine.high %v1488, %v1488
  %v1511 = vcombine.high %v1495, %v1495
  %v1512 = vcombine.high %v1502, %v1502
  %v1513 = vcombine.high %v1509, %v1509
  %v1514 = vcombine.high %v794, %v794
  %v1516 = vunpack.c.l.s4 1966171168
  %v1517 = vunpack.c.0.s8 %v1516
  %v1518 = vlaneseq
  %v1519 = vshrl.u32 %v1518, 7
  %v1520 = vsub.s32 %v1517, %v1519
  %v1521 = vrot.slane %v794, %v1520
  %v1523 = vunpack.c.l.s4 1966171168
  %v1524 = vunpack.c.0.s8 %v1523
  %v1525 = vlaneseq
  %v1526 = vshrl.u32 %v1525, 7
  %v1527 = vsub.s32 %v1524, %v1526
  %v1528 = vrot.slane %v1514, %v1527
  %v1529 = vcombine.high %v1521, %v1521
  %v1530 = vcombine.high %v1528, %v1528
  %v1532 = vunpack.c.l.s4 1966171168
  %v1533 = vunpack.c.0.s8 %v1532
  %v1534 = vlaneseq
  %v1535 = vshrl.u32 %v1534, 7
  %v1536 = vsub.s32 %v1533, %v1535
  %v1537 = vrot.slane %v1521, %v1536
  %v1539 = vunpack.c.l.s4 1966171168
  %v1540 = vunpack.c.0.s8 %v1539
  %v1541 = vlaneseq
  %v1542 = vshrl.u32 %v1541, 7
  %v1543 = vsub.s32 %v1540, %v1542
  %v1544 = vrot.slane %v1528, %v1543
  %v1546 = vunpack.c.l.s4 1966171168
  %v1547 = vunpack.c.0.s8 %v1546
  %v1548 = vlaneseq
  %v1549 = vshrl.u32 %v1548, 7
  %v1550 = vsub.s32 %v1547, %v1549
  %v1551 = vrot.slane %v1529, %v1550
  %v1553 = vunpack.c.l.s4 1966171168
  %v1554 = vunpack.c.0.s8 %v1553
  %v1555 = vlaneseq
  %v1556 = vshrl.u32 %v1555, 7
  %v1557 = vsub.s32 %v1554, %v1556
  %v1558 = vrot.slane %v1530, %v1557
  %v1559 = vcombine.high %v1537, %v1537
  %v1560 = vcombine.high %v1544, %v1544
  %v1561 = vcombine.high %v1551, %v1551
  %v1562 = vcombine.high %v1558, %v1558
  %v1563 = vcombine.high %v795, %v795
  %v1565 = vunpack.c.l.s4 1966171168
  %v1566 = vunpack.c.0.s8 %v1565
  %v1567 = vlaneseq
  %v1568 = vshrl.u32 %v1567, 7
  %v1569 = vsub.s32 %v1566, %v1568
  %v1570 = vrot.slane %v795, %v1569
  %v1572 = vunpack.c.l.s4 1966171168
  %v1573 = vunpack.c.0.s8 %v1572
  %v1574 = vlaneseq
  %v1575 = vshrl.u32 %v1574, 7
  %v1576 = vsub.s32 %v1573, %v1575
  %v1577 = vrot.slane %v1563, %v1576
  %v1578 = vcombine.high %v1570, %v1570
  %v1579 = vcombine.high %v1577, %v1577
  %v1581 = vunpack.c.l.s4 1966171168
  %v1582 = vunpack.c.0.s8 %v1581
  %v1583 = vlaneseq
  %v1584 = vshrl.u32 %v1583, 7
  %v1585 = vsub.s32 %v1582, %v1584
  %v1586 = vrot.slane %v1570, %v1585
  %v1588 = vunpack.c.l.s4 1966171168
  %v1589 = vunpack.c.0.s8 %v1588
  %v1590 = vlaneseq
  %v1591 = vshrl.u32 %v1590, 7
  %v1592 = vsub.s32 %v1589, %v1591
  %v1593 = vrot.slane %v1577, %v1592
  %v1595 = vunpack.c.l.s4 1966171168
  %v1596 = vunpack.c.0.s8 %v1595
  %v1597 = vlaneseq
  %v1598 = vshrl.u32 %v1597, 7
  %v1599 = vsub.s32 %v1596, %v1598
  %v1600 = vrot.slane %v1578, %v1599
  %v1602 = vunpack.c.l.s4 1966171168
  %v1603 = vunpack.c.0.s8 %v1602
  %v1604 = vlaneseq
  %v1605 = vshrl.u32 %v1604, 7
  %v1606 = vsub.s32 %v1603, %v1605
  %v1607 = vrot.slane %v1579, %v1606
  %v1608 = vcombine.high %v1586, %v1586
  %v1609 = vcombine.high %v1593, %v1593
  %v1610 = vcombine.high %v1600, %v1600
  %v1611 = vcombine.high %v1607, %v1607
  %v1612 = vlaneseq
  %v1613 = vshrl.u32 %v1612, 7
  %v1614 = vsub.s32 0, %v1613
  %v1615 = vrot.slane %v851, %v1614
  %v1616 = vlaneseq
  %v1617 = vshrl.u32 %v1616, 7
  %v1618 = vsub.s32 0, %v1617
  %v1619 = vrot.slane %v865, %v1618
  %v1620 = vlaneseq
  %v1621 = vshrl.u32 %v1620, 7
  %v1622 = vsub.s32 0, %v1621
  %v1623 = vrot.slane %v873, %v1622
  %v1624 = vlaneseq
  %v1625 = vshrl.u32 %v1624, 7
  %v1626 = vsub.s32 0, %v1625
  %v1627 = vrot.slane %v875, %v1626
  %v1628 = vlaneseq
  %v1629 = vshrl.u32 %v1628, 7
  %v1630 = vsub.s32 0, %v1629
  %v1631 = vrot.slane %v858, %v1630
  %v1632 = vlaneseq
  %v1633 = vshrl.u32 %v1632, 7
  %v1634 = vsub.s32 0, %v1633
  %v1635 = vrot.slane %v872, %v1634
  %v1636 = vlaneseq
  %v1637 = vshrl.u32 %v1636, 7
  %v1638 = vsub.s32 0, %v1637
  %v1639 = vrot.slane %v874, %v1638
  %v1640 = vlaneseq
  %v1641 = vshrl.u32 %v1640, 7
  %v1642 = vsub.s32 0, %v1641
  %v1643 = vrot.slane %v876, %v1642
  %v1644 = vlaneseq
  %v1645 = vshrl.u32 %v1644, 7
  %v1646 = vsub.s32 0, %v1645
  %v1647 = vrot.slane %v900, %v1646
  %v1648 = vlaneseq
  %v1649 = vshrl.u32 %v1648, 7
  %v1650 = vsub.s32 0, %v1649
  %v1651 = vrot.slane %v914, %v1650
  %v1652 = vlaneseq
  %v1653 = vshrl.u32 %v1652, 7
  %v1654 = vsub.s32 0, %v1653
  %v1655 = vrot.slane %v922, %v1654
  %v1656 = vlaneseq
  %v1657 = vshrl.u32 %v1656, 7
  %v1658 = vsub.s32 0, %v1657
  %v1659 = vrot.slane %v924, %v1658
  %v1660 = vlaneseq
  %v1661 = vshrl.u32 %v1660, 7
  %v1662 = vsub.s32 0, %v1661
  %v1663 = vrot.slane %v907, %v1662
  %v1664 = vlaneseq
  %v1665 = vshrl.u32 %v1664, 7
  %v1666 = vsub.s32 0, %v1665
  %v1667 = vrot.slane %v921, %v1666
  %v1668 = vlaneseq
  %v1669 = vshrl.u32 %v1668, 7
  %v1670 = vsub.s32 0, %v1669
  %v1671 = vrot.slane %v923, %v1670
  %v1672 = vlaneseq
  %v1673 = vshrl.u32 %v1672, 7
  %v1674 = vsub.s32 0, %v1673
  %v1675 = vrot.slane %v925, %v1674
  %v1676 = vlaneseq
  %v1677 = vshrl.u32 %v1676, 7
  %v1678 = vsub.s32 0, %v1677
  %v1679 = vrot.slane %v949, %v1678
  %v1680 = vlaneseq
  %v1681 = vshrl.u32 %v1680, 7
  %v1682 = vsub.s32 0, %v1681
  %v1683 = vrot.slane %v963, %v1682
  %v1684 = vlaneseq
  %v1685 = vshrl.u32 %v1684, 7
  %v1686 = vsub.s32 0, %v1685
  %v1687 = vrot.slane %v971, %v1686
  %v1688 = vlaneseq
  %v1689 = vshrl.u32 %v1688, 7
  %v1690 = vsub.s32 0, %v1689
  %v1691 = vrot.slane %v973, %v1690
  %v1692 = vlaneseq
  %v1693 = vshrl.u32 %v1692, 7
  %v1694 = vsub.s32 0, %v1693
  %v1695 = vrot.slane %v956, %v1694
  %v1696 = vlaneseq
  %v1697 = vshrl.u32 %v1696, 7
  %v1698 = vsub.s32 0, %v1697
  %v1699 = vrot.slane %v970, %v1698
  %v1700 = vlaneseq
  %v1701 = vshrl.u32 %v1700, 7
  %v1702 = vsub.s32 0, %v1701
  %v1703 = vrot.slane %v972, %v1702
  %v1704 = vlaneseq
  %v1705 = vshrl.u32 %v1704, 7
  %v1706 = vsub.s32 0, %v1705
  %v1707 = vrot.slane %v974, %v1706
  %v1708 = vlaneseq
  %v1709 = vshrl.u32 %v1708, 7
  %v1710 = vsub.s32 0, %v1709
  %v1711 = vrot.slane %v998, %v1710
  %v1712 = vlaneseq
  %v1713 = vshrl.u32 %v1712, 7
  %v1714 = vsub.s32 0, %v1713
  %v1715 = vrot.slane %v1012, %v1714
  %v1716 = vlaneseq
  %v1717 = vshrl.u32 %v1716, 7
  %v1718 = vsub.s32 0, %v1717
  %v1719 = vrot.slane %v1020, %v1718
  %v1720 = vlaneseq
  %v1721 = vshrl.u32 %v1720, 7
  %v1722 = vsub.s32 0, %v1721
  %v1723 = vrot.slane %v1022, %v1722
  %v1724 = vlaneseq
  %v1725 = vshrl.u32 %v1724, 7
  %v1726 = vsub.s32 0, %v1725
  %v1727 = vrot.slane %v1005, %v1726
  %v1728 = vlaneseq
  %v1729 = vshrl.u32 %v1728, 7
  %v1730 = vsub.s32 0, %v1729
  %v1731 = vrot.slane %v1019, %v1730
  %v1732 = vlaneseq
  %v1733 = vshrl.u32 %v1732, 7
  %v1734 = vsub.s32 0, %v1733
  %v1735 = vrot.slane %v1021, %v1734
  %v1736 = vlaneseq
  %v1737 = vshrl.u32 %v1736, 7
  %v1738 = vsub.s32 0, %v1737
  %v1739 = vrot.slane %v1023, %v1738
  %v1740 = vlaneseq
  %v1741 = vshrl.u32 %v1740, 7
  %v1742 = vsub.s32 0, %v1741
  %v1743 = vrot.slane %v1047, %v1742
  %v1744 = vlaneseq
  %v1745 = vshrl.u32 %v1744, 7
  %v1746 = vsub.s32 0, %v1745
  %v1747 = vrot.slane %v1061, %v1746
  %v1748 = vlaneseq
  %v1749 = vshrl.u32 %v1748, 7
  %v1750 = vsub.s32 0, %v1749
  %v1751 = vrot.slane %v1069, %v1750
  %v1752 = vlaneseq
  %v1753 = vshrl.u32 %v1752, 7
  %v1754 = vsub.s32 0, %v1753
  %v1755 = vrot.slane %v1071, %v1754
  %v1756 = vlaneseq
  %v1757 = vshrl.u32 %v1756, 7
  %v1758 = vsub.s32 0, %v1757
  %v1759 = vrot.slane %v1054, %v1758
  %v1760 = vlaneseq
  %v1761 = vshrl.u32 %v1760, 7
  %v1762 = vsub.s32 0, %v1761
  %v1763 = vrot.slane %v1068, %v1762
  %v1764 = vlaneseq
  %v1765 = vshrl.u32 %v1764, 7
  %v1766 = vsub.s32 0, %v1765
  %v1767 = vrot.slane %v1070, %v1766
  %v1768 = vlaneseq
  %v1769 = vshrl.u32 %v1768, 7
  %v1770 = vsub.s32 0, %v1769
  %v1771 = vrot.slane %v1072, %v1770
  %v1772 = vlaneseq
  %v1773 = vshrl.u32 %v1772, 7
  %v1774 = vsub.s32 0, %v1773
  %v1775 = vrot.slane %v1096, %v1774
  %v1776 = vlaneseq
  %v1777 = vshrl.u32 %v1776, 7
  %v1778 = vsub.s32 0, %v1777
  %v1779 = vrot.slane %v1110, %v1778
  %v1780 = vlaneseq
  %v1781 = vshrl.u32 %v1780, 7
  %v1782 = vsub.s32 0, %v1781
  %v1783 = vrot.slane %v1118, %v1782
  %v1784 = vlaneseq
  %v1785 = vshrl.u32 %v1784, 7
  %v1786 = vsub.s32 0, %v1785
  %v1787 = vrot.slane %v1120, %v1786
  %v1788 = vlaneseq
  %v1789 = vshrl.u32 %v1788, 7
  %v1790 = vsub.s32 0, %v1789
  %v1791 = vrot.slane %v1103, %v1790
  %v1792 = vlaneseq
  %v1793 = vshrl.u32 %v1792, 7
  %v1794 = vsub.s32 0, %v1793
  %v1795 = vrot.slane %v1117, %v1794
  %v1796 = vlaneseq
  %v1797 = vshrl.u32 %v1796, 7
  %v1798 = vsub.s32 0, %v1797
  %v1799 = vrot.slane %v1119, %v1798
  %v1800 = vlaneseq
  %v1801 = vshrl.u32 %v1800, 7
  %v1802 = vsub.s32 0, %v1801
  %v1803 = vrot.slane %v1121, %v1802
  %v1804 = vlaneseq
  %v1805 = vshrl.u32 %v1804, 7
  %v1806 = vsub.s32 0, %v1805
  %v1807 = vrot.slane %v1145, %v1806
  %v1808 = vlaneseq
  %v1809 = vshrl.u32 %v1808, 7
  %v1810 = vsub.s32 0, %v1809
  %v1811 = vrot.slane %v1159, %v1810
  %v1812 = vlaneseq
  %v1813 = vshrl.u32 %v1812, 7
  %v1814 = vsub.s32 0, %v1813
  %v1815 = vrot.slane %v1167, %v1814
  %v1816 = vlaneseq
  %v1817 = vshrl.u32 %v1816, 7
  %v1818 = vsub.s32 0, %v1817
  %v1819 = vrot.slane %v1169, %v1818
  %v1820 = vlaneseq
  %v1821 = vshrl.u32 %v1820, 7
  %v1822 = vsub.s32 0, %v1821
  %v1823 = vrot.slane %v1152, %v1822
  %v1824 = vlaneseq
  %v1825 = vshrl.u32 %v1824, 7
  %v1826 = vsub.s32 0, %v1825
  %v1827 = vrot.slane %v1166, %v1826
  %v1828 = vlaneseq
  %v1829 = vshrl.u32 %v1828, 7
  %v1830 = vsub.s32 0, %v1829
  %v1831 = vrot.slane %v1168, %v1830
  %v1832 = vlaneseq
  %v1833 = vshrl.u32 %v1832, 7
  %v1834 = vsub.s32 0, %v1833
  %v1835 = vrot.slane %v1170, %v1834
  %v1836 = vlaneseq
  %v1837 = vshrl.u32 %v1836, 7
  %v1838 = vsub.s32 0, %v1837
  %v1839 = vrot.slane %v1194, %v1838
  %v1840 = vlaneseq
  %v1841 = vshrl.u32 %v1840, 7
  %v1842 = vsub.s32 0, %v1841
  %v1843 = vrot.slane %v1208, %v1842
  %v1844 = vlaneseq
  %v1845 = vshrl.u32 %v1844, 7
  %v1846 = vsub.s32 0, %v1845
  %v1847 = vrot.slane %v1216, %v1846
  %v1848 = vlaneseq
  %v1849 = vshrl.u32 %v1848, 7
  %v1850 = vsub.s32 0, %v1849
  %v1851 = vrot.slane %v1218, %v1850
  %v1852 = vlaneseq
  %v1853 = vshrl.u32 %v1852, 7
  %v1854 = vsub.s32 0, %v1853
  %v1855 = vrot.slane %v1201, %v1854
  %v1856 = vlaneseq
  %v1857 = vshrl.u32 %v1856, 7
  %v1858 = vsub.s32 0, %v1857
  %v1859 = vrot.slane %v1215, %v1858
  %v1860 = vlaneseq
  %v1861 = vshrl.u32 %v1860, 7
  %v1862 = vsub.s32 0, %v1861
  %v1863 = vrot.slane %v1217, %v1862
  %v1864 = vlaneseq
  %v1865 = vshrl.u32 %v1864, 7
  %v1866 = vsub.s32 0, %v1865
  %v1867 = vrot.slane %v1219, %v1866
  %v1868 = vlaneseq
  %v1869 = vshrl.u32 %v1868, 7
  %v1870 = vsub.s32 0, %v1869
  %v1871 = vrot.slane %v1243, %v1870
  %v1872 = vlaneseq
  %v1873 = vshrl.u32 %v1872, 7
  %v1874 = vsub.s32 0, %v1873
  %v1875 = vrot.slane %v1257, %v1874
  %v1876 = vlaneseq
  %v1877 = vshrl.u32 %v1876, 7
  %v1878 = vsub.s32 0, %v1877
  %v1879 = vrot.slane %v1265, %v1878
  %v1880 = vlaneseq
  %v1881 = vshrl.u32 %v1880, 7
  %v1882 = vsub.s32 0, %v1881
  %v1883 = vrot.slane %v1267, %v1882
  %v1884 = vlaneseq
  %v1885 = vshrl.u32 %v1884, 7
  %v1886 = vsub.s32 0, %v1885
  %v1887 = vrot.slane %v1250, %v1886
  %v1888 = vlaneseq
  %v1889 = vshrl.u32 %v1888, 7
  %v1890 = vsub.s32 0, %v1889
  %v1891 = vrot.slane %v1264, %v1890
  %v1892 = vlaneseq
  %v1893 = vshrl.u32 %v1892, 7
  %v1894 = vsub.s32 0, %v1893
  %v1895 = vrot.slane %v1266, %v1894
  %v1896 = vlaneseq
  %v1897 = vshrl.u32 %v1896, 7
  %v1898 = vsub.s32 0, %v1897
  %v1899 = vrot.slane %v1268, %v1898
  %v1900 = vlaneseq
  %v1901 = vshrl.u32 %v1900, 7
  %v1902 = vsub.s32 0, %v1901
  %v1903 = vrot.slane %v1292, %v1902
  %v1904 = vlaneseq
  %v1905 = vshrl.u32 %v1904, 7
  %v1906 = vsub.s32 0, %v1905
  %v1907 = vrot.slane %v1306, %v1906
  %v1908 = vlaneseq
  %v1909 = vshrl.u32 %v1908, 7
  %v1910 = vsub.s32 0, %v1909
  %v1911 = vrot.slane %v1314, %v1910
  %v1912 = vlaneseq
  %v1913 = vshrl.u32 %v1912, 7
  %v1914 = vsub.s32 0, %v1913
  %v1915 = vrot.slane %v1316, %v1914
  %v1916 = vlaneseq
  %v1917 = vshrl.u32 %v1916, 7
  %v1918 = vsub.s32 0, %v1917
  %v1919 = vrot.slane %v1299, %v1918
  %v1920 = vlaneseq
  %v1921 = vshrl.u32 %v1920, 7
  %v1922 = vsub.s32 0, %v1921
  %v1923 = vrot.slane %v1313, %v1922
  %v1924 = vlaneseq
  %v1925 = vshrl.u32 %v1924, 7
  %v1926 = vsub.s32 0, %v1925
  %v1927 = vrot.slane %v1315, %v1926
  %v1928 = vlaneseq
  %v1929 = vshrl.u32 %v1928, 7
  %v1930 = vsub.s32 0, %v1929
  %v1931 = vrot.slane %v1317, %v1930
  %v1932 = vlaneseq
  %v1933 = vshrl.u32 %v1932, 7
  %v1934 = vsub.s32 0, %v1933
  %v1935 = vrot.slane %v1341, %v1934
  %v1936 = vlaneseq
  %v1937 = vshrl.u32 %v1936, 7
  %v1938 = vsub.s32 0, %v1937
  %v1939 = vrot.slane %v1355, %v1938
  %v1940 = vlaneseq
  %v1941 = vshrl.u32 %v1940, 7
  %v1942 = vsub.s32 0, %v1941
  %v1943 = vrot.slane %v1363, %v1942
  %v1944 = vlaneseq
  %v1945 = vshrl.u32 %v1944, 7
  %v1946 = vsub.s32 0, %v1945
  %v1947 = vrot.slane %v1365, %v1946
  %v1948 = vlaneseq
  %v1949 = vshrl.u32 %v1948, 7
  %v1950 = vsub.s32 0, %v1949
  %v1951 = vrot.slane %v1348, %v1950
  %v1952 = vlaneseq
  %v1953 = vshrl.u32 %v1952, 7
  %v1954 = vsub.s32 0, %v1953
  %v1955 = vrot.slane %v1362, %v1954
  %v1956 = vlaneseq
  %v1957 = vshrl.u32 %v1956, 7
  %v1958 = vsub.s32 0, %v1957
  %v1959 = vrot.slane %v1364, %v1958
  %v1960 = vlaneseq
  %v1961 = vshrl.u32 %v1960, 7
  %v1962 = vsub.s32 0, %v1961
  %v1963 = vrot.slane %v1366, %v1962
  %v1964 = vlaneseq
  %v1965 = vshrl.u32 %v1964, 7
  %v1966 = vsub.s32 0, %v1965
  %v1967 = vrot.slane %v1390, %v1966
  %v1968 = vlaneseq
  %v1969 = vshrl.u32 %v1968, 7
  %v1970 = vsub.s32 0, %v1969
  %v1971 = vrot.slane %v1404, %v1970
  %v1972 = vlaneseq
  %v1973 = vshrl.u32 %v1972, 7
  %v1974 = vsub.s32 0, %v1973
  %v1975 = vrot.slane %v1412, %v1974
  %v1976 = vlaneseq
  %v1977 = vshrl.u32 %v1976, 7
  %v1978 = vsub.s32 0, %v1977
  %v1979 = vrot.slane %v1414, %v1978
  %v1980 = vlaneseq
  %v1981 = vshrl.u32 %v1980, 7
  %v1982 = vsub.s32 0, %v1981
  %v1983 = vrot.slane %v1397, %v1982
  %v1984 = vlaneseq
  %v1985 = vshrl.u32 %v1984, 7
  %v1986 = vsub.s32 0, %v1985
  %v1987 = vrot.slane %v1411, %v1986
  %v1988 = vlaneseq
  %v1989 = vshrl.u32 %v1988, 7
  %v1990 = vsub.s32 0, %v1989
  %v1991 = vrot.slane %v1413, %v1990
  %v1992 = vlaneseq
  %v1993 = vshrl.u32 %v1992, 7
  %v1994 = vsub.s32 0, %v1993
  %v1995 = vrot.slane %v1415, %v1994
  %v1996 = vlaneseq
  %v1997 = vshrl.u32 %v1996, 7
  %v1998 = vsub.s32 0, %v1997
  %v1999 = vrot.slane %v1439, %v1998
  %v2000 = vlaneseq
  %v2001 = vshrl.u32 %v2000, 7
  %v2002 = vsub.s32 0, %v2001
  %v2003 = vrot.slane %v1453, %v2002
  %v2004 = vlaneseq
  %v2005 = vshrl.u32 %v2004, 7
  %v2006 = vsub.s32 0, %v2005
  %v2007 = vrot.slane %v1461, %v2006
  %v2008 = vlaneseq
  %v2009 = vshrl.u32 %v2008, 7
  %v2010 = vsub.s32 0, %v2009
  %v2011 = vrot.slane %v1463, %v2010
  %v2012 = vlaneseq
  %v2013 = vshrl.u32 %v2012, 7
  %v2014 = vsub.s32 0, %v2013
  %v2015 = vrot.slane %v1446, %v2014
  %v2016 = vlaneseq
  %v2017 = vshrl.u32 %v2016, 7
  %v2018 = vsub.s32 0, %v2017
  %v2019 = vrot.slane %v1460, %v2018
  %v2020 = vlaneseq
  %v2021 = vshrl.u32 %v2020, 7
  %v2022 = vsub.s32 0, %v2021
  %v2023 = vrot.slane %v1462, %v2022
  %v2024 = vlaneseq
  %v2025 = vshrl.u32 %v2024, 7
  %v2026 = vsub.s32 0, %v2025
  %v2027 = vrot.slane %v1464, %v2026
  %v2028 = vlaneseq
  %v2029 = vshrl.u32 %v2028, 7
  %v2030 = vsub.s32 0, %v2029
  %v2031 = vrot.slane %v1488, %v2030
  %v2032 = vlaneseq
  %v2033 = vshrl.u32 %v2032, 7
  %v2034 = vsub.s32 0, %v2033
  %v2035 = vrot.slane %v1502, %v2034
  %v2036 = vlaneseq
  %v2037 = vshrl.u32 %v2036, 7
  %v2038 = vsub.s32 0, %v2037
  %v2039 = vrot.slane %v1510, %v2038
  %v2040 = vlaneseq
  %v2041 = vshrl.u32 %v2040, 7
  %v2042 = vsub.s32 0, %v2041
  %v2043 = vrot.slane %v1512, %v2042
  %v2044 = vlaneseq
  %v2045 = vshrl.u32 %v2044, 7
  %v2046 = vsub.s32 0, %v2045
  %v2047 = vrot.slane %v1495, %v2046
  %v2048 = vlaneseq
  %v2049 = vshrl.u32 %v2048, 7
  %v2050 = vsub.s32 0, %v2049
  %v2051 = vrot.slane %v1509, %v2050
  %v2052 = vlaneseq
  %v2053 = vshrl.u32 %v2052, 7
  %v2054 = vsub.s32 0, %v2053
  %v2055 = vrot.slane %v1511, %v2054
  %v2056 = vlaneseq
  %v2057 = vshrl.u32 %v2056, 7
  %v2058 = vsub.s32 0, %v2057
  %v2059 = vrot.slane %v1513, %v2058
  %v2060 = vlaneseq
  %v2061 = vshrl.u32 %v2060, 7
  %v2062 = vsub.s32 0, %v2061
  %v2063 = vrot.slane %v1537, %v2062
  %v2064 = vlaneseq
  %v2065 = vshrl.u32 %v2064, 7
  %v2066 = vsub.s32 0, %v2065
  %v2067 = vrot.slane %v1551, %v2066
  %v2068 = vlaneseq
  %v2069 = vshrl.u32 %v2068, 7
  %v2070 = vsub.s32 0, %v2069
  %v2071 = vrot.slane %v1559, %v2070
  %v2072 = vlaneseq
  %v2073 = vshrl.u32 %v2072, 7
  %v2074 = vsub.s32 0, %v2073
  %v2075 = vrot.slane %v1561, %v2074
  %v2076 = vlaneseq
  %v2077 = vshrl.u32 %v2076, 7
  %v2078 = vsub.s32 0, %v2077
  %v2079 = vrot.slane %v1544, %v2078
  %v2080 = vlaneseq
  %v2081 = vshrl.u32 %v2080, 7
  %v2082 = vsub.s32 0, %v2081
  %v2083 = vrot.slane %v1558, %v2082
  %v2084 = vlaneseq
  %v2085 = vshrl.u32 %v2084, 7
  %v2086 = vsub.s32 0, %v2085
  %v2087 = vrot.slane %v1560, %v2086
  %v2088 = vlaneseq
  %v2089 = vshrl.u32 %v2088, 7
  %v2090 = vsub.s32 0, %v2089
  %v2091 = vrot.slane %v1562, %v2090
  %v2092 = vlaneseq
  %v2093 = vshrl.u32 %v2092, 7
  %v2094 = vsub.s32 0, %v2093
  %v2095 = vrot.slane %v1586, %v2094
  %v2096 = vlaneseq
  %v2097 = vshrl.u32 %v2096, 7
  %v2098 = vsub.s32 0, %v2097
  %v2099 = vrot.slane %v1600, %v2098
  %v2100 = vlaneseq
  %v2101 = vshrl.u32 %v2100, 7
  %v2102 = vsub.s32 0, %v2101
  %v2103 = vrot.slane %v1608, %v2102
  %v2104 = vlaneseq
  %v2105 = vshrl.u32 %v2104, 7
  %v2106 = vsub.s32 0, %v2105
  %v2107 = vrot.slane %v1610, %v2106
  %v2108 = vlaneseq
  %v2109 = vshrl.u32 %v2108, 7
  %v2110 = vsub.s32 0, %v2109
  %v2111 = vrot.slane %v1593, %v2110
  %v2112 = vlaneseq
  %v2113 = vshrl.u32 %v2112, 7
  %v2114 = vsub.s32 0, %v2113
  %v2115 = vrot.slane %v1607, %v2114
  %v2116 = vlaneseq
  %v2117 = vshrl.u32 %v2116, 7
  %v2118 = vsub.s32 0, %v2117
  %v2119 = vrot.slane %v1609, %v2118
  %v2120 = vlaneseq
  %v2121 = vshrl.u32 %v2120, 7
  %v2122 = vsub.s32 0, %v2121
  %v2123 = vrot.slane %v1611, %v2122
  %2252 = vst [vmem:[#allocation2] sm:$0xff] %v1615
  %2253 = vst [vmem:[#allocation2 + $0x8] sm:$0xff] %v1619
  %2254 = vst [vmem:[#allocation2 + $0x10] sm:$0xff] %v1623
  %2255 = vst [vmem:[#allocation2 + $0x18] sm:$0xff] %v1627
  %2256 = vst [vmem:[#allocation2 + $0x20] sm:$0xff] %v1631
  %2257 = vst [vmem:[#allocation2 + $0x28] sm:$0xff] %v1635
  %2258 = vst [vmem:[#allocation2 + $0x30] sm:$0xff] %v1639
  %2259 = vst [vmem:[#allocation2 + $0x38] sm:$0xff] %v1643
  %2260 = vst [vmem:[#allocation2 + $0x40] sm:$0xff] %v1647
  %2261 = vst [vmem:[#allocation2 + $0x48] sm:$0xff] %v1651
  %2262 = vst [vmem:[#allocation2 + $0x50] sm:$0xff] %v1655
  %2263 = vst [vmem:[#allocation2 + $0x58] sm:$0xff] %v1659
  %2264 = vst [vmem:[#allocation2 + $0x60] sm:$0xff] %v1663
  %2265 = vst [vmem:[#allocation2 + $0x68] sm:$0xff] %v1667
  %2266 = vst [vmem:[#allocation2 + $0x70] sm:$0xff] %v1671
  %2267 = vst [vmem:[#allocation2 + $0x78] sm:$0xff] %v1675
  %2268 = vst [vmem:[#allocation2 + $0x80] sm:$0xff] %v1679
  %2269 = vst [vmem:[#allocation2 + $0x88] sm:$0xff] %v1683
  %2270 = vst [vmem:[#allocation2 + $0x90] sm:$0xff] %v1687
  %2271 = vst [vmem:[#allocation2 + $0x98] sm:$0xff] %v1691
  %2272 = vst [vmem:[#allocation2 + $0xa0] sm:$0xff] %v1695
  %2273 = vst [vmem:[#allocation2 + $0xa8] sm:$0xff] %v1699
  %2274 = vst [vmem:[#allocation2 + $0xb0] sm:$0xff] %v1703
  %2275 = vst [vmem:[#allocation2 + $0xb8] sm:$0xff] %v1707
  %2276 = vst [vmem:[#allocation2 + $0xc0] sm:$0xff] %v1711
  %2277 = vst [vmem:[#allocation2 + $0xc8] sm:$0xff] %v1715
  %2278 = vst [vmem:[#allocation2 + $0xd0] sm:$0xff] %v1719
  %2279 = vst [vmem:[#allocation2 + $0xd8] sm:$0xff] %v1723
  %2280 = vst [vmem:[#allocation2 + $0xe0] sm:$0xff] %v1727
  %2281 = vst [vmem:[#allocation2 + $0xe8] sm:$0xff] %v1731
  %2282 = vst [vmem:[#allocation2 + $0xf0] sm:$0xff] %v1735
  %2283 = vst [vmem:[#allocation2 + $0xf8] sm:$0xff] %v1739
  %2284 = vst [vmem:[#allocation2 + $0x100] sm:$0xff] %v1743
  %2285 = vst [vmem:[#allocation2 + $0x108] sm:$0xff] %v1747
  %2286 = vst [vmem:[#allocation2 + $0x110] sm:$0xff] %v1751
  %2287 = vst [vmem:[#allocation2 + $0x118] sm:$0xff] %v1755
  %2288 = vst [vmem:[#allocation2 + $0x120] sm:$0xff] %v1759
  %2289 = vst [vmem:[#allocation2 + $0x128] sm:$0xff] %v1763
  %2290 = vst [vmem:[#allocation2 + $0x130] sm:$0xff] %v1767
  %2291 = vst [vmem:[#allocation2 + $0x138] sm:$0xff] %v1771
  %2292 = vst [vmem:[#allocation2 + $0x140] sm:$0xff] %v1775
  %2293 = vst [vmem:[#allocation2 + $0x148] sm:$0xff] %v1779
  %2294 = vst [vmem:[#allocation2 + $0x150] sm:$0xff] %v1783
  %2295 = vst [vmem:[#allocation2 + $0x158] sm:$0xff] %v1787
  %2296 = vst [vmem:[#allocation2 + $0x160] sm:$0xff] %v1791
  %2297 = vst [vmem:[#allocation2 + $0x168] sm:$0xff] %v1795
  %2298 = vst [vmem:[#allocation2 + $0x170] sm:$0xff] %v1799
  %2299 = vst [vmem:[#allocation2 + $0x178] sm:$0xff] %v1803
  %2300 = vst [vmem:[#allocation2 + $0x180] sm:$0xff] %v1807
  %2301 = vst [vmem:[#allocation2 + $0x188] sm:$0xff] %v1811
  %2302 = vst [vmem:[#allocation2 + $0x190] sm:$0xff] %v1815
  %2303 = vst [vmem:[#allocation2 + $0x198] sm:$0xff] %v1819
  %2304 = vst [vmem:[#allocation2 + $0x1a0] sm:$0xff] %v1823
  %2305 = vst [vmem:[#allocation2 + $0x1a8] sm:$0xff] %v1827
  %2306 = vst [vmem:[#allocation2 + $0x1b0] sm:$0xff] %v1831
  %2307 = vst [vmem:[#allocation2 + $0x1b8] sm:$0xff] %v1835
  %2308 = vst [vmem:[#allocation2 + $0x1c0] sm:$0xff] %v1839
  %2309 = vst [vmem:[#allocation2 + $0x1c8] sm:$0xff] %v1843
  %2310 = vst [vmem:[#allocation2 + $0x1d0] sm:$0xff] %v1847
  %2311 = vst [vmem:[#allocation2 + $0x1d8] sm:$0xff] %v1851
  %2312 = vst [vmem:[#allocation2 + $0x1e0] sm:$0xff] %v1855
  %2313 = vst [vmem:[#allocation2 + $0x1e8] sm:$0xff] %v1859
  %2314 = vst [vmem:[#allocation2 + $0x1f0] sm:$0xff] %v1863
  %2315 = vst [vmem:[#allocation2 + $0x1f8] sm:$0xff] %v1867
  %2316 = vst [vmem:[#allocation2 + $0x200] sm:$0xff] %v1871
  %2317 = vst [vmem:[#allocation2 + $0x208] sm:$0xff] %v1875
  %2318 = vst [vmem:[#allocation2 + $0x210] sm:$0xff] %v1879
  %2319 = vst [vmem:[#allocation2 + $0x218] sm:$0xff] %v1883
  %2320 = vst [vmem:[#allocation2 + $0x220] sm:$0xff] %v1887
  %2321 = vst [vmem:[#allocation2 + $0x228] sm:$0xff] %v1891
  %2322 = vst [vmem:[#allocation2 + $0x230] sm:$0xff] %v1895
  %2323 = vst [vmem:[#allocation2 + $0x238] sm:$0xff] %v1899
  %2324 = vst [vmem:[#allocation2 + $0x240] sm:$0xff] %v1903
  %2325 = vst [vmem:[#allocation2 + $0x248] sm:$0xff] %v1907
  %2326 = vst [vmem:[#allocation2 + $0x250] sm:$0xff] %v1911
  %2327 = vst [vmem:[#allocation2 + $0x258] sm:$0xff] %v1915
  %2328 = vst [vmem:[#allocation2 + $0x260] sm:$0xff] %v1919
  %2329 = vst [vmem:[#allocation2 + $0x268] sm:$0xff] %v1923
  %2330 = vst [vmem:[#allocation2 + $0x270] sm:$0xff] %v1927
  %2331 = vst [vmem:[#allocation2 + $0x278] sm:$0xff] %v1931
  %2332 = vst [vmem:[#allocation2 + $0x280] sm:$0xff] %v1935
  %2333 = vst [vmem:[#allocation2 + $0x288] sm:$0xff] %v1939
  %2334 = vst [vmem:[#allocation2 + $0x290] sm:$0xff] %v1943
  %2335 = vst [vmem:[#allocation2 + $0x298] sm:$0xff] %v1947
  %2336 = vst [vmem:[#allocation2 + $0x2a0] sm:$0xff] %v1951
  %2337 = vst [vmem:[#allocation2 + $0x2a8] sm:$0xff] %v1955
  %2338 = vst [vmem:[#allocation2 + $0x2b0] sm:$0xff] %v1959
  %2339 = vst [vmem:[#allocation2 + $0x2b8] sm:$0xff] %v1963
  %2340 = vst [vmem:[#allocation2 + $0x2c0] sm:$0xff] %v1967
  %2341 = vst [vmem:[#allocation2 + $0x2c8] sm:$0xff] %v1971
  %2342 = vst [vmem:[#allocation2 + $0x2d0] sm:$0xff] %v1975
  %2343 = vst [vmem:[#allocation2 + $0x2d8] sm:$0xff] %v1979
  %2344 = vst [vmem:[#allocation2 + $0x2e0] sm:$0xff] %v1983
  %2345 = vst [vmem:[#allocation2 + $0x2e8] sm:$0xff] %v1987
  %2346 = vst [vmem:[#allocation2 + $0x2f0] sm:$0xff] %v1991
  %2347 = vst [vmem:[#allocation2 + $0x2f8] sm:$0xff] %v1995
  %2348 = vst [vmem:[#allocation2 + $0x300] sm:$0xff] %v1999
  %2349 = vst [vmem:[#allocation2 + $0x308] sm:$0xff] %v2003
  %2350 = vst [vmem:[#allocation2 + $0x310] sm:$0xff] %v2007
  %2351 = vst [vmem:[#allocation2 + $0x318] sm:$0xff] %v2011
  %2352 = vst [vmem:[#allocation2 + $0x320] sm:$0xff] %v2015
  %2353 = vst [vmem:[#allocation2 + $0x328] sm:$0xff] %v2019
  %2354 = vst [vmem:[#allocation2 + $0x330] sm:$0xff] %v2023
  %2355 = vst [vmem:[#allocation2 + $0x338] sm:$0xff] %v2027
  %2356 = vst [vmem:[#allocation2 + $0x340] sm:$0xff] %v2031
  %2357 = vst [vmem:[#allocation2 + $0x348] sm:$0xff] %v2035
  %2358 = vst [vmem:[#allocation2 + $0x350] sm:$0xff] %v2039
  %2359 = vst [vmem:[#allocation2 + $0x358] sm:$0xff] %v2043
  %2360 = vst [vmem:[#allocation2 + $0x360] sm:$0xff] %v2047
  %2361 = vst [vmem:[#allocation2 + $0x368] sm:$0xff] %v2051
  %2362 = vst [vmem:[#allocation2 + $0x370] sm:$0xff] %v2055
  %2363 = vst [vmem:[#allocation2 + $0x378] sm:$0xff] %v2059
  %2364 = vst [vmem:[#allocation2 + $0x380] sm:$0xff] %v2063
  %2365 = vst [vmem:[#allocation2 + $0x388] sm:$0xff] %v2067
  %2366 = vst [vmem:[#allocation2 + $0x390] sm:$0xff] %v2071
  %2367 = vst [vmem:[#allocation2 + $0x398] sm:$0xff] %v2075
  %2368 = vst [vmem:[#allocation2 + $0x3a0] sm:$0xff] %v2079
  %2369 = vst [vmem:[#allocation2 + $0x3a8] sm:$0xff] %v2083
  %2370 = vst [vmem:[#allocation2 + $0x3b0] sm:$0xff] %v2087
  %2371 = vst [vmem:[#allocation2 + $0x3b8] sm:$0xff] %v2091
  %2372 = vst [vmem:[#allocation2 + $0x3c0] sm:$0xff] %v2095
  %2373 = vst [vmem:[#allocation2 + $0x3c8] sm:$0xff] %v2099
  %2374 = vst [vmem:[#allocation2 + $0x3d0] sm:$0xff] %v2103
  %2375 = vst [vmem:[#allocation2 + $0x3d8] sm:$0xff] %v2107
  %2376 = vst [vmem:[#allocation2 + $0x3e0] sm:$0xff] %v2111
  %2377 = vst [vmem:[#allocation2 + $0x3e8] sm:$0xff] %v2115
  %2378 = vst [vmem:[#allocation2 + $0x3f0] sm:$0xff] %v2119
  %2379 = vst [vmem:[#allocation2 + $0x3f8] sm:$0xff] %v2123
  %2380 = vxpose.xlu0.b32.start [1/16] %v796, 128
  %2381 = vxpose.xlu0.b32.cont [2/16] %v797, 128
  %2382 = vxpose.xlu0.b32.cont [3/16] %v798, 128
  %2383 = vxpose.xlu0.b32.cont [4/16] %v799, 128
  %2384 = vxpose.xlu0.b32.cont [5/16] %v800, 128
  %2385 = vxpose.xlu0.b32.cont [6/16] %v801, 128
  %2386 = vxpose.xlu0.b32.cont [7/16] %v802, 128
  %2387 = vxpose.xlu0.b32.cont [8/16] %v803, 128
  %2388 = vxpose.xlu0.b32.cont [9/16] %v804, 128
  %2389 = vxpose.xlu0.b32.cont [10/16] %v805, 128
  %2390 = vxpose.xlu0.b32.cont [11/16] %v806, 128
  %2391 = vxpose.xlu0.b32.cont [12/16] %v807, 128
  %2392 = vxpose.xlu0.b32.cont [13/16] %v808, 128
  %2393 = vxpose.xlu0.b32.cont [14/16] %v809, 128
  %2394 = vxpose.xlu0.b32.cont [15/16] %v810, 128
  %2395 = vxpose.xlu0.b32.end [16/16] %v811, 128
  %v2396 = vpop.trf.xlu0
  %v2397 = vpop.trf.xlu0
  %v2398 = vpop.trf.xlu0
  %v2399 = vpop.trf.xlu0
  %v2400 = vpop.trf.xlu0
  %v2401 = vpop.trf.xlu0
  %v2402 = vpop.trf.xlu0
  %v2403 = vpop.trf.xlu0
  %v2404 = vpop.trf.xlu0
  %v2405 = vpop.trf.xlu0
  %v2406 = vpop.trf.xlu0
  %v2407 = vpop.trf.xlu0
  %v2408 = vpop.trf.xlu0
  %v2409 = vpop.trf.xlu0
  %v2410 = vpop.trf.xlu0
  %v2411 = vpop.trf.xlu0
  %2412 = vst [vmem:[#allocation3] sm:$0xff] %v2396
  %2413 = vst [vmem:[#allocation3 + $0x8] sm:$0xff] %v2397
  %2414 = vst [vmem:[#allocation3 + $0x10] sm:$0xff] %v2398
  %2415 = vst [vmem:[#allocation3 + $0x18] sm:$0xff] %v2399
  %2416 = vst [vmem:[#allocation3 + $0x20] sm:$0xff] %v2400
  %2417 = vst [vmem:[#allocation3 + $0x28] sm:$0xff] %v2401
  %2418 = vst [vmem:[#allocation3 + $0x30] sm:$0xff] %v2402
  %2419 = vst [vmem:[#allocation3 + $0x38] sm:$0xff] %v2403
  %2420 = vst [vmem:[#allocation3 + $0x40] sm:$0xff] %v2404
  %2421 = vst [vmem:[#allocation3 + $0x48] sm:$0xff] %v2405
  %2422 = vst [vmem:[#allocation3 + $0x50] sm:$0xff] %v2406
  %2423 = vst [vmem:[#allocation3 + $0x58] sm:$0xff] %v2407
  %2424 = vst [vmem:[#allocation3 + $0x60] sm:$0xff] %v2408
  %2425 = vst [vmem:[#allocation3 + $0x68] sm:$0xff] %v2409
  %2426 = vst [vmem:[#allocation3 + $0x70] sm:$0xff] %v2410
  %2427 = vst [vmem:[#allocation3 + $0x78] sm:$0xff] %v2411
  %vm2428 = vcmask 64512
  %2429 = vst.msk [vmem:[#allocation4] sm:$0xff] %vm2428, 0.0
  %2430 = vst.msk [vmem:[#allocation4 + $0x8] sm:$0xff] %vm2428, 0.0
  %2431 = vst.msk [vmem:[#allocation4 + $0x10] sm:$0xff] %vm2428, 0.0
  %2432 = vst.msk [vmem:[#allocation4 + $0x18] sm:$0xff] %vm2428, 0.0
  %2433 = vst.msk [vmem:[#allocation4 + $0x20] sm:$0xff] %vm2428, 0.0
  %2434 = vst.msk [vmem:[#allocation4 + $0x28] sm:$0xff] %vm2428, 0.0
  %2435 = vst.msk [vmem:[#allocation4 + $0x30] sm:$0xff] %vm2428, 0.0
  %2436 = vst.msk [vmem:[#allocation4 + $0x38] sm:$0xff] %vm2428, 0.0
  %2437 = vst.msk [vmem:[#allocation4 + $0x40] sm:$0xff] %vm2428, 0.0
  %2438 = vst.msk [vmem:[#allocation4 + $0x48] sm:$0xff] %vm2428, 0.0
  %2439 = vst.msk [vmem:[#allocation4 + $0x50] sm:$0xff] %vm2428, 0.0
  %2440 = vst.msk [vmem:[#allocation4 + $0x58] sm:$0xff] %vm2428, 0.0
  %2441 = vst.msk [vmem:[#allocation4 + $0x60] sm:$0xff] %vm2428, 0.0
  %2442 = vst.msk [vmem:[#allocation4 + $0x68] sm:$0xff] %vm2428, 0.0
  %2443 = vst.msk [vmem:[#allocation4 + $0x70] sm:$0xff] %vm2428, 0.0
  %2444 = vst.msk [vmem:[#allocation4 + $0x78] sm:$0xff] %vm2428, 0.0
  %2445 = vst.msk [vmem:[#allocation5] sm:$0xff] %vm2428, 0.0
  %2446 = vst.msk [vmem:[#allocation5 + $0x8] sm:$0xff] %vm2428, 0.0
  %2447 = vst.msk [vmem:[#allocation5 + $0x10] sm:$0xff] %vm2428, 0.0
  %2448 = vst.msk [vmem:[#allocation5 + $0x18] sm:$0xff] %vm2428, 0.0
  %2449 = vst.msk [vmem:[#allocation5 + $0x20] sm:$0xff] %vm2428, 0.0
  %2450 = vst.msk [vmem:[#allocation5 + $0x28] sm:$0xff] %vm2428, 0.0
  %2451 = vst.msk [vmem:[#allocation5 + $0x30] sm:$0xff] %vm2428, 0.0
  %2452 = vst.msk [vmem:[#allocation5 + $0x38] sm:$0xff] %vm2428, 0.0
  %2453 = vst.msk [vmem:[#allocation5 + $0x40] sm:$0xff] %vm2428, 0.0
  %2454 = vst.msk [vmem:[#allocation5 + $0x48] sm:$0xff] %vm2428, 0.0
  %2455 = vst.msk [vmem:[#allocation5 + $0x50] sm:$0xff] %vm2428, 0.0
  %2456 = vst.msk [vmem:[#allocation5 + $0x58] sm:$0xff] %vm2428, 0.0
  %2457 = vst.msk [vmem:[#allocation5 + $0x60] sm:$0xff] %vm2428, 0.0
  %2458 = vst.msk [vmem:[#allocation5 + $0x68] sm:$0xff] %vm2428, 0.0
  %2459 = vst.msk [vmem:[#allocation5 + $0x70] sm:$0xff] %vm2428, 0.0
  %2460 = vst.msk [vmem:[#allocation5 + $0x78] sm:$0xff] %vm2428, 0.0
  loop: start=0, step=1, limit=16
  $region26: #{tpu_custom_call.1} parent=0 // loop_pre_header
    _
  $region27: #{tpu_custom_call.1} parent=0 // loop_header
    %s2462 = sphi 0, %s2466
    %p2463 = scmp.ge.s32.totalorder %s2462, 16
  $region28: #{tpu_custom_call.1} parent=0 // loop_header_branch
    %2465 = sbr.rel (%p2463) target = $region32
  $region29: #{tpu_custom_call.1} parent=0 // loop_body
    %s2467 = smul.u32 %s2462, 8
    %s2468 = scalar_lea.vmem [#allocation3], %s2467
    %v2469 = vld [vmem:[%s2468] sm:$0xff]
    %2470 = vxpose.xlu0.b32.start [1/16] %v2469, 128
    %2471 = vxpose.xlu0.b32.cont [2/16] 0.0, 128
    %2472 = vxpose.xlu0.b32.cont [3/16] 0.0, 128
    %2473 = vxpose.xlu0.b32.cont [4/16] 0.0, 128
    %2474 = vxpose.xlu0.b32.cont [5/16] 0.0, 128
    %2475 = vxpose.xlu0.b32.cont [6/16] 0.0, 128
    %2476 = vxpose.xlu0.b32.cont [7/16] 0.0, 128
    %2477 = vxpose.xlu0.b32.cont [8/16] 0.0, 128
    %2478 = vxpose.xlu0.b32.cont [9/16] 0.0, 128
    %2479 = vxpose.xlu0.b32.cont [10/16] 0.0, 128
    %2480 = vxpose.xlu0.b32.cont [11/16] 0.0, 128
    %2481 = vxpose.xlu0.b32.cont [12/16] 0.0, 128
    %2482 = vxpose.xlu0.b32.cont [13/16] 0.0, 128
    %2483 = vxpose.xlu0.b32.cont [14/16] 0.0, 128
    %2484 = vxpose.xlu0.b32.cont [15/16] 0.0, 128
    %2485 = vxpose.xlu0.b32.end [16/16] 0.0, 128
    %v2486 = vpop.trf.xlu0
    %v2487 = vpop.trf.xlu0
    %v2488 = vpop.trf.xlu0
    %v2489 = vpop.trf.xlu0
    %v2490 = vpop.trf.xlu0
    %v2491 = vpop.trf.xlu0
    %v2492 = vpop.trf.xlu0
    %v2493 = vpop.trf.xlu0
    %v2494 = vpop.trf.xlu0
    %v2495 = vpop.trf.xlu0
    %v2496 = vpop.trf.xlu0
    %v2497 = vpop.trf.xlu0
    %v2498 = vpop.trf.xlu0
    %v2499 = vpop.trf.xlu0
    %v2500 = vpop.trf.xlu0
    %v2501 = vpop.trf.xlu0
    %v2502 = vld [vmem:[#allocation2] sm:$0xff]
    %v2503 = vld [vmem:[#allocation2 + $0x8] sm:$0xff]
    %v2504 = vld [vmem:[#allocation2 + $0x10] sm:$0xff]
    %v2505 = vld [vmem:[#allocation2 + $0x18] sm:$0xff]
    %v2506 = vld [vmem:[#allocation2 + $0x20] sm:$0xff]
    %v2507 = vld [vmem:[#allocation2 + $0x28] sm:$0xff]
    %v2508 = vld [vmem:[#allocation2 + $0x30] sm:$0xff]
    %v2509 = vld [vmem:[#allocation2 + $0x38] sm:$0xff]
    %v2510 = vld [vmem:[#allocation2 + $0x40] sm:$0xff]
    %v2511 = vld [vmem:[#allocation2 + $0x48] sm:$0xff]
    %v2512 = vld [vmem:[#allocation2 + $0x50] sm:$0xff]
    %v2513 = vld [vmem:[#allocation2 + $0x58] sm:$0xff]
    %v2514 = vld [vmem:[#allocation2 + $0x60] sm:$0xff]
    %v2515 = vld [vmem:[#allocation2 + $0x68] sm:$0xff]
    %v2516 = vld [vmem:[#allocation2 + $0x70] sm:$0xff]
    %v2517 = vld [vmem:[#allocation2 + $0x78] sm:$0xff]
    %v2518 = vld [vmem:[#allocation2 + $0x80] sm:$0xff]
    %v2519 = vld [vmem:[#allocation2 + $0x88] sm:$0xff]
    %v2520 = vld [vmem:[#allocation2 + $0x90] sm:$0xff]
    %v2521 = vld [vmem:[#allocation2 + $0x98] sm:$0xff]
    %v2522 = vld [vmem:[#allocation2 + $0xa0] sm:$0xff]
    %v2523 = vld [vmem:[#allocation2 + $0xa8] sm:$0xff]
    %v2524 = vld [vmem:[#allocation2 + $0xb0] sm:$0xff]
    %v2525 = vld [vmem:[#allocation2 + $0xb8] sm:$0xff]
    %v2526 = vld [vmem:[#allocation2 + $0xc0] sm:$0xff]
    %v2527 = vld [vmem:[#allocation2 + $0xc8] sm:$0xff]
    %v2528 = vld [vmem:[#allocation2 + $0xd0] sm:$0xff]
    %v2529 = vld [vmem:[#allocation2 + $0xd8] sm:$0xff]
    %v2530 = vld [vmem:[#allocation2 + $0xe0] sm:$0xff]
    %v2531 = vld [vmem:[#allocation2 + $0xe8] sm:$0xff]
    %v2532 = vld [vmem:[#allocation2 + $0xf0] sm:$0xff]
    %v2533 = vld [vmem:[#allocation2 + $0xf8] sm:$0xff]
    %v2534 = vld [vmem:[#allocation2 + $0x100] sm:$0xff]
    %v2535 = vld [vmem:[#allocation2 + $0x108] sm:$0xff]
    %v2536 = vld [vmem:[#allocation2 + $0x110] sm:$0xff]
    %v2537 = vld [vmem:[#allocation2 + $0x118] sm:$0xff]
    %v2538 = vld [vmem:[#allocation2 + $0x120] sm:$0xff]
    %v2539 = vld [vmem:[#allocation2 + $0x128] sm:$0xff]
    %v2540 = vld [vmem:[#allocation2 + $0x130] sm:$0xff]
    %v2541 = vld [vmem:[#allocation2 + $0x138] sm:$0xff]
    %v2542 = vld [vmem:[#allocation2 + $0x140] sm:$0xff]
    %v2543 = vld [vmem:[#allocation2 + $0x148] sm:$0xff]
    %v2544 = vld [vmem:[#allocation2 + $0x150] sm:$0xff]
    %v2545 = vld [vmem:[#allocation2 + $0x158] sm:$0xff]
    %v2546 = vld [vmem:[#allocation2 + $0x160] sm:$0xff]
    %v2547 = vld [vmem:[#allocation2 + $0x168] sm:$0xff]
    %v2548 = vld [vmem:[#allocation2 + $0x170] sm:$0xff]
    %v2549 = vld [vmem:[#allocation2 + $0x178] sm:$0xff]
    %v2550 = vld [vmem:[#allocation2 + $0x180] sm:$0xff]
    %v2551 = vld [vmem:[#allocation2 + $0x188] sm:$0xff]
    %v2552 = vld [vmem:[#allocation2 + $0x190] sm:$0xff]
    %v2553 = vld [vmem:[#allocation2 + $0x198] sm:$0xff]
    %v2554 = vld [vmem:[#allocation2 + $0x1a0] sm:$0xff]
    %v2555 = vld [vmem:[#allocation2 + $0x1a8] sm:$0xff]
    %v2556 = vld [vmem:[#allocation2 + $0x1b0] sm:$0xff]
    %v2557 = vld [vmem:[#allocation2 + $0x1b8] sm:$0xff]
    %v2558 = vld [vmem:[#allocation2 + $0x1c0] sm:$0xff]
    %v2559 = vld [vmem:[#allocation2 + $0x1c8] sm:$0xff]
    %v2560 = vld [vmem:[#allocation2 + $0x1d0] sm:$0xff]
    %v2561 = vld [vmem:[#allocation2 + $0x1d8] sm:$0xff]
    %v2562 = vld [vmem:[#allocation2 + $0x1e0] sm:$0xff]
    %v2563 = vld [vmem:[#allocation2 + $0x1e8] sm:$0xff]
    %v2564 = vld [vmem:[#allocation2 + $0x1f0] sm:$0xff]
    %v2565 = vld [vmem:[#allocation2 + $0x1f8] sm:$0xff]
    %v2566 = vld [vmem:[#allocation2 + $0x200] sm:$0xff]
    %v2567 = vld [vmem:[#allocation2 + $0x208] sm:$0xff]
    %v2568 = vld [vmem:[#allocation2 + $0x210] sm:$0xff]
    %v2569 = vld [vmem:[#allocation2 + $0x218] sm:$0xff]
    %v2570 = vld [vmem:[#allocation2 + $0x220] sm:$0xff]
    %v2571 = vld [vmem:[#allocation2 + $0x228] sm:$0xff]
    %v2572 = vld [vmem:[#allocation2 + $0x230] sm:$0xff]
    %v2573 = vld [vmem:[#allocation2 + $0x238] sm:$0xff]
    %v2574 = vld [vmem:[#allocation2 + $0x240] sm:$0xff]
    %v2575 = vld [vmem:[#allocation2 + $0x248] sm:$0xff]
    %v2576 = vld [vmem:[#allocation2 + $0x250] sm:$0xff]
    %v2577 = vld [vmem:[#allocation2 + $0x258] sm:$0xff]
    %v2578 = vld [vmem:[#allocation2 + $0x260] sm:$0xff]
    %v2579 = vld [vmem:[#allocation2 + $0x268] sm:$0xff]
    %v2580 = vld [vmem:[#allocation2 + $0x270] sm:$0xff]
    %v2581 = vld [vmem:[#allocation2 + $0x278] sm:$0xff]
    %v2582 = vld [vmem:[#allocation2 + $0x280] sm:$0xff]
    %v2583 = vld [vmem:[#allocation2 + $0x288] sm:$0xff]
    %v2584 = vld [vmem:[#allocation2 + $0x290] sm:$0xff]
    %v2585 = vld [vmem:[#allocation2 + $0x298] sm:$0xff]
    %v2586 = vld [vmem:[#allocation2 + $0x2a0] sm:$0xff]
    %v2587 = vld [vmem:[#allocation2 + $0x2a8] sm:$0xff]
    %v2588 = vld [vmem:[#allocation2 + $0x2b0] sm:$0xff]
    %v2589 = vld [vmem:[#allocation2 + $0x2b8] sm:$0xff]
    %v2590 = vld [vmem:[#allocation2 + $0x2c0] sm:$0xff]
    %v2591 = vld [vmem:[#allocation2 + $0x2c8] sm:$0xff]
    %v2592 = vld [vmem:[#allocation2 + $0x2d0] sm:$0xff]
    %v2593 = vld [vmem:[#allocation2 + $0x2d8] sm:$0xff]
    %v2594 = vld [vmem:[#allocation2 + $0x2e0] sm:$0xff]
    %v2595 = vld [vmem:[#allocation2 + $0x2e8] sm:$0xff]
    %v2596 = vld [vmem:[#allocation2 + $0x2f0] sm:$0xff]
    %v2597 = vld [vmem:[#allocation2 + $0x2f8] sm:$0xff]
    %v2598 = vld [vmem:[#allocation2 + $0x300] sm:$0xff]
    %v2599 = vld [vmem:[#allocation2 + $0x308] sm:$0xff]
    %v2600 = vld [vmem:[#allocation2 + $0x310] sm:$0xff]
    %v2601 = vld [vmem:[#allocation2 + $0x318] sm:$0xff]
    %v2602 = vld [vmem:[#allocation2 + $0x320] sm:$0xff]
    %v2603 = vld [vmem:[#allocation2 + $0x328] sm:$0xff]
    %v2604 = vld [vmem:[#allocation2 + $0x330] sm:$0xff]
    %v2605 = vld [vmem:[#allocation2 + $0x338] sm:$0xff]
    %v2606 = vld [vmem:[#allocation2 + $0x340] sm:$0xff]
    %v2607 = vld [vmem:[#allocation2 + $0x348] sm:$0xff]
    %v2608 = vld [vmem:[#allocation2 + $0x350] sm:$0xff]
    %v2609 = vld [vmem:[#allocation2 + $0x358] sm:$0xff]
    %v2610 = vld [vmem:[#allocation2 + $0x360] sm:$0xff]
    %v2611 = vld [vmem:[#allocation2 + $0x368] sm:$0xff]
    %v2612 = vld [vmem:[#allocation2 + $0x370] sm:$0xff]
    %v2613 = vld [vmem:[#allocation2 + $0x378] sm:$0xff]
    %v2614 = vld [vmem:[#allocation2 + $0x380] sm:$0xff]
    %v2615 = vld [vmem:[#allocation2 + $0x388] sm:$0xff]
    %v2616 = vld [vmem:[#allocation2 + $0x390] sm:$0xff]
    %v2617 = vld [vmem:[#allocation2 + $0x398] sm:$0xff]
    %v2618 = vld [vmem:[#allocation2 + $0x3a0] sm:$0xff]
    %v2619 = vld [vmem:[#allocation2 + $0x3a8] sm:$0xff]
    %v2620 = vld [vmem:[#allocation2 + $0x3b0] sm:$0xff]
    %v2621 = vld [vmem:[#allocation2 + $0x3b8] sm:$0xff]
    %v2622 = vld [vmem:[#allocation2 + $0x3c0] sm:$0xff]
    %v2623 = vld [vmem:[#allocation2 + $0x3c8] sm:$0xff]
    %v2624 = vld [vmem:[#allocation2 + $0x3d0] sm:$0xff]
    %v2625 = vld [vmem:[#allocation2 + $0x3d8] sm:$0xff]
    %v2626 = vld [vmem:[#allocation2 + $0x3e0] sm:$0xff]
    %v2627 = vld [vmem:[#allocation2 + $0x3e8] sm:$0xff]
    %v2628 = vld [vmem:[#allocation2 + $0x3f0] sm:$0xff]
    %v2629 = vld [vmem:[#allocation2 + $0x3f8] sm:$0xff]
    %v2630 = vlaneseq
    %v2631 = vshrl.u32 %v2630, 7
    %v2632 = vsub.s32 0, %v2631
    %v2633 = vrot.slane %v2486, %v2632
    %2635 = vbcast.lane.b32.xlu0 %v2633, 256
    %v2636 = vpop.permute.xlu0 %2635
    %v2637 = vlaneseq
    %v2638 = vshrl.u32 %v2637, 7
    %v2639 = vsub.s32 1, %v2638
    %v2640 = vrot.slane %v2486, %v2639
    %2642 = vbcast.lane.b32.xlu0 %v2640, 256
    %v2643 = vpop.permute.xlu0 %2642
    %v2644 = vlaneseq
    %v2645 = vshrl.u32 %v2644, 7
    %v2646 = vsub.s32 2, %v2645
    %v2647 = vrot.slane %v2486, %v2646
    %2649 = vbcast.lane.b32.xlu0 %v2647, 256
    %v2650 = vpop.permute.xlu0 %2649
    %v2651 = vlaneseq
    %v2652 = vshrl.u32 %v2651, 7
    %v2653 = vsub.s32 3, %v2652
    %v2654 = vrot.slane %v2486, %v2653
    %2656 = vbcast.lane.b32.xlu0 %v2654, 256
    %v2657 = vpop.permute.xlu0 %2656
    %v2658 = vlaneseq
    %v2659 = vshrl.u32 %v2658, 7
    %v2660 = vsub.s32 4, %v2659
    %v2661 = vrot.slane %v2486, %v2660
    %2663 = vbcast.lane.b32.xlu0 %v2661, 256
    %v2664 = vpop.permute.xlu0 %2663
    %v2665 = vlaneseq
    %v2666 = vshrl.u32 %v2665, 7
    %v2667 = vsub.s32 5, %v2666
    %v2668 = vrot.slane %v2486, %v2667
    %2670 = vbcast.lane.b32.xlu0 %v2668, 256
    %v2671 = vpop.permute.xlu0 %2670
    %v2672 = vlaneseq
    %v2673 = vshrl.u32 %v2672, 7
    %v2674 = vsub.s32 6, %v2673
    %v2675 = vrot.slane %v2486, %v2674
    %2677 = vbcast.lane.b32.xlu0 %v2675, 256
    %v2678 = vpop.permute.xlu0 %2677
    %v2679 = vlaneseq
    %v2680 = vshrl.u32 %v2679, 7
    %v2681 = vsub.s32 7, %v2680
    %v2682 = vrot.slane %v2486, %v2681
    %2684 = vbcast.lane.b32.xlu0 %v2682, 256
    %v2685 = vpop.permute.xlu0 %2684
    %v2686 = vlaneseq
    %v2687 = vshrl.u32 %v2686, 7
    %v2688 = vsub.s32 0, %v2687
    %v2689 = vrot.slane %v2487, %v2688
    %2691 = vbcast.lane.b32.xlu0 %v2689, 256
    %v2692 = vpop.permute.xlu0 %2691
    %v2693 = vlaneseq
    %v2694 = vshrl.u32 %v2693, 7
    %v2695 = vsub.s32 1, %v2694
    %v2696 = vrot.slane %v2487, %v2695
    %2698 = vbcast.lane.b32.xlu0 %v2696, 256
    %v2699 = vpop.permute.xlu0 %2698
    %v2700 = vlaneseq
    %v2701 = vshrl.u32 %v2700, 7
    %v2702 = vsub.s32 2, %v2701
    %v2703 = vrot.slane %v2487, %v2702
    %2705 = vbcast.lane.b32.xlu0 %v2703, 256
    %v2706 = vpop.permute.xlu0 %2705
    %v2707 = vlaneseq
    %v2708 = vshrl.u32 %v2707, 7
    %v2709 = vsub.s32 3, %v2708
    %v2710 = vrot.slane %v2487, %v2709
    %2712 = vbcast.lane.b32.xlu0 %v2710, 256
    %v2713 = vpop.permute.xlu0 %2712
    %v2714 = vlaneseq
    %v2715 = vshrl.u32 %v2714, 7
    %v2716 = vsub.s32 4, %v2715
    %v2717 = vrot.slane %v2487, %v2716
    %2719 = vbcast.lane.b32.xlu0 %v2717, 256
    %v2720 = vpop.permute.xlu0 %2719
    %v2721 = vlaneseq
    %v2722 = vshrl.u32 %v2721, 7
    %v2723 = vsub.s32 5, %v2722
    %v2724 = vrot.slane %v2487, %v2723
    %2726 = vbcast.lane.b32.xlu0 %v2724, 256
    %v2727 = vpop.permute.xlu0 %2726
    %v2728 = vlaneseq
    %v2729 = vshrl.u32 %v2728, 7
    %v2730 = vsub.s32 6, %v2729
    %v2731 = vrot.slane %v2487, %v2730
    %2733 = vbcast.lane.b32.xlu0 %v2731, 256
    %v2734 = vpop.permute.xlu0 %2733
    %v2735 = vlaneseq
    %v2736 = vshrl.u32 %v2735, 7
    %v2737 = vsub.s32 7, %v2736
    %v2738 = vrot.slane %v2487, %v2737
    %2740 = vbcast.lane.b32.xlu0 %v2738, 256
    %v2741 = vpop.permute.xlu0 %2740
    %v2742 = vlaneseq
    %v2743 = vshrl.u32 %v2742, 7
    %v2744 = vsub.s32 0, %v2743
    %v2745 = vrot.slane %v2488, %v2744
    %2747 = vbcast.lane.b32.xlu0 %v2745, 256
    %v2748 = vpop.permute.xlu0 %2747
    %v2749 = vlaneseq
    %v2750 = vshrl.u32 %v2749, 7
    %v2751 = vsub.s32 1, %v2750
    %v2752 = vrot.slane %v2488, %v2751
    %2754 = vbcast.lane.b32.xlu0 %v2752, 256
    %v2755 = vpop.permute.xlu0 %2754
    %v2756 = vlaneseq
    %v2757 = vshrl.u32 %v2756, 7
    %v2758 = vsub.s32 2, %v2757
    %v2759 = vrot.slane %v2488, %v2758
    %2761 = vbcast.lane.b32.xlu0 %v2759, 256
    %v2762 = vpop.permute.xlu0 %2761
    %v2763 = vlaneseq
    %v2764 = vshrl.u32 %v2763, 7
    %v2765 = vsub.s32 3, %v2764
    %v2766 = vrot.slane %v2488, %v2765
    %2768 = vbcast.lane.b32.xlu0 %v2766, 256
    %v2769 = vpop.permute.xlu0 %2768
    %v2770 = vlaneseq
    %v2771 = vshrl.u32 %v2770, 7
    %v2772 = vsub.s32 4, %v2771
    %v2773 = vrot.slane %v2488, %v2772
    %2775 = vbcast.lane.b32.xlu0 %v2773, 256
    %v2776 = vpop.permute.xlu0 %2775
    %v2777 = vlaneseq
    %v2778 = vshrl.u32 %v2777, 7
    %v2779 = vsub.s32 5, %v2778
    %v2780 = vrot.slane %v2488, %v2779
    %2782 = vbcast.lane.b32.xlu0 %v2780, 256
    %v2783 = vpop.permute.xlu0 %2782
    %v2784 = vlaneseq
    %v2785 = vshrl.u32 %v2784, 7
    %v2786 = vsub.s32 6, %v2785
    %v2787 = vrot.slane %v2488, %v2786
    %2789 = vbcast.lane.b32.xlu0 %v2787, 256
    %v2790 = vpop.permute.xlu0 %2789
    %v2791 = vlaneseq
    %v2792 = vshrl.u32 %v2791, 7
    %v2793 = vsub.s32 7, %v2792
    %v2794 = vrot.slane %v2488, %v2793
    %2796 = vbcast.lane.b32.xlu0 %v2794, 256
    %v2797 = vpop.permute.xlu0 %2796
    %v2798 = vlaneseq
    %v2799 = vshrl.u32 %v2798, 7
    %v2800 = vsub.s32 0, %v2799
    %v2801 = vrot.slane %v2489, %v2800
    %2803 = vbcast.lane.b32.xlu0 %v2801, 256
    %v2804 = vpop.permute.xlu0 %2803
    %v2805 = vlaneseq
    %v2806 = vshrl.u32 %v2805, 7
    %v2807 = vsub.s32 1, %v2806
    %v2808 = vrot.slane %v2489, %v2807
    %2810 = vbcast.lane.b32.xlu0 %v2808, 256
    %v2811 = vpop.permute.xlu0 %2810
    %v2812 = vlaneseq
    %v2813 = vshrl.u32 %v2812, 7
    %v2814 = vsub.s32 2, %v2813
    %v2815 = vrot.slane %v2489, %v2814
    %2817 = vbcast.lane.b32.xlu0 %v2815, 256
    %v2818 = vpop.permute.xlu0 %2817
    %v2819 = vlaneseq
    %v2820 = vshrl.u32 %v2819, 7
    %v2821 = vsub.s32 3, %v2820
    %v2822 = vrot.slane %v2489, %v2821
    %2824 = vbcast.lane.b32.xlu0 %v2822, 256
    %v2825 = vpop.permute.xlu0 %2824
    %v2826 = vlaneseq
    %v2827 = vshrl.u32 %v2826, 7
    %v2828 = vsub.s32 4, %v2827
    %v2829 = vrot.slane %v2489, %v2828
    %2831 = vbcast.lane.b32.xlu0 %v2829, 256
    %v2832 = vpop.permute.xlu0 %2831
    %v2833 = vlaneseq
    %v2834 = vshrl.u32 %v2833, 7
    %v2835 = vsub.s32 5, %v2834
    %v2836 = vrot.slane %v2489, %v2835
    %2838 = vbcast.lane.b32.xlu0 %v2836, 256
    %v2839 = vpop.permute.xlu0 %2838
    %v2840 = vlaneseq
    %v2841 = vshrl.u32 %v2840, 7
    %v2842 = vsub.s32 6, %v2841
    %v2843 = vrot.slane %v2489, %v2842
    %2845 = vbcast.lane.b32.xlu0 %v2843, 256
    %v2846 = vpop.permute.xlu0 %2845
    %v2847 = vlaneseq
    %v2848 = vshrl.u32 %v2847, 7
    %v2849 = vsub.s32 7, %v2848
    %v2850 = vrot.slane %v2489, %v2849
    %2852 = vbcast.lane.b32.xlu0 %v2850, 256
    %v2853 = vpop.permute.xlu0 %2852
    %v2854 = vlaneseq
    %v2855 = vshrl.u32 %v2854, 7
    %v2856 = vsub.s32 0, %v2855
    %v2857 = vrot.slane %v2490, %v2856
    %2859 = vbcast.lane.b32.xlu0 %v2857, 256
    %v2860 = vpop.permute.xlu0 %2859
    %v2861 = vlaneseq
    %v2862 = vshrl.u32 %v2861, 7
    %v2863 = vsub.s32 1, %v2862
    %v2864 = vrot.slane %v2490, %v2863
    %2866 = vbcast.lane.b32.xlu0 %v2864, 256
    %v2867 = vpop.permute.xlu0 %2866
    %v2868 = vlaneseq
    %v2869 = vshrl.u32 %v2868, 7
    %v2870 = vsub.s32 2, %v2869
    %v2871 = vrot.slane %v2490, %v2870
    %2873 = vbcast.lane.b32.xlu0 %v2871, 256
    %v2874 = vpop.permute.xlu0 %2873
    %v2875 = vlaneseq
    %v2876 = vshrl.u32 %v2875, 7
    %v2877 = vsub.s32 3, %v2876
    %v2878 = vrot.slane %v2490, %v2877
    %2880 = vbcast.lane.b32.xlu0 %v2878, 256
    %v2881 = vpop.permute.xlu0 %2880
    %v2882 = vlaneseq
    %v2883 = vshrl.u32 %v2882, 7
    %v2884 = vsub.s32 4, %v2883
    %v2885 = vrot.slane %v2490, %v2884
    %2887 = vbcast.lane.b32.xlu0 %v2885, 256
    %v2888 = vpop.permute.xlu0 %2887
    %v2889 = vlaneseq
    %v2890 = vshrl.u32 %v2889, 7
    %v2891 = vsub.s32 5, %v2890
    %v2892 = vrot.slane %v2490, %v2891
    %2894 = vbcast.lane.b32.xlu0 %v2892, 256
    %v2895 = vpop.permute.xlu0 %2894
    %v2896 = vlaneseq
    %v2897 = vshrl.u32 %v2896, 7
    %v2898 = vsub.s32 6, %v2897
    %v2899 = vrot.slane %v2490, %v2898
    %2901 = vbcast.lane.b32.xlu0 %v2899, 256
    %v2902 = vpop.permute.xlu0 %2901
    %v2903 = vlaneseq
    %v2904 = vshrl.u32 %v2903, 7
    %v2905 = vsub.s32 7, %v2904
    %v2906 = vrot.slane %v2490, %v2905
    %2908 = vbcast.lane.b32.xlu0 %v2906, 256
    %v2909 = vpop.permute.xlu0 %2908
    %v2910 = vlaneseq
    %v2911 = vshrl.u32 %v2910, 7
    %v2912 = vsub.s32 0, %v2911
    %v2913 = vrot.slane %v2491, %v2912
    %2915 = vbcast.lane.b32.xlu0 %v2913, 256
    %v2916 = vpop.permute.xlu0 %2915
    %v2917 = vlaneseq
    %v2918 = vshrl.u32 %v2917, 7
    %v2919 = vsub.s32 1, %v2918
    %v2920 = vrot.slane %v2491, %v2919
    %2922 = vbcast.lane.b32.xlu0 %v2920, 256
    %v2923 = vpop.permute.xlu0 %2922
    %v2924 = vlaneseq
    %v2925 = vshrl.u32 %v2924, 7
    %v2926 = vsub.s32 2, %v2925
    %v2927 = vrot.slane %v2491, %v2926
    %2929 = vbcast.lane.b32.xlu0 %v2927, 256
    %v2930 = vpop.permute.xlu0 %2929
    %v2931 = vlaneseq
    %v2932 = vshrl.u32 %v2931, 7
    %v2933 = vsub.s32 3, %v2932
    %v2934 = vrot.slane %v2491, %v2933
    %2936 = vbcast.lane.b32.xlu0 %v2934, 256
    %v2937 = vpop.permute.xlu0 %2936
    %v2938 = vlaneseq
    %v2939 = vshrl.u32 %v2938, 7
    %v2940 = vsub.s32 4, %v2939
    %v2941 = vrot.slane %v2491, %v2940
    %2943 = vbcast.lane.b32.xlu0 %v2941, 256
    %v2944 = vpop.permute.xlu0 %2943
    %v2945 = vlaneseq
    %v2946 = vshrl.u32 %v2945, 7
    %v2947 = vsub.s32 5, %v2946
    %v2948 = vrot.slane %v2491, %v2947
    %2950 = vbcast.lane.b32.xlu0 %v2948, 256
    %v2951 = vpop.permute.xlu0 %2950
    %v2952 = vlaneseq
    %v2953 = vshrl.u32 %v2952, 7
    %v2954 = vsub.s32 6, %v2953
    %v2955 = vrot.slane %v2491, %v2954
    %2957 = vbcast.lane.b32.xlu0 %v2955, 256
    %v2958 = vpop.permute.xlu0 %2957
    %v2959 = vlaneseq
    %v2960 = vshrl.u32 %v2959, 7
    %v2961 = vsub.s32 7, %v2960
    %v2962 = vrot.slane %v2491, %v2961
    %2964 = vbcast.lane.b32.xlu0 %v2962, 256
    %v2965 = vpop.permute.xlu0 %2964
    %v2966 = vlaneseq
    %v2967 = vshrl.u32 %v2966, 7
    %v2968 = vsub.s32 0, %v2967
    %v2969 = vrot.slane %v2492, %v2968
    %2971 = vbcast.lane.b32.xlu0 %v2969, 256
    %v2972 = vpop.permute.xlu0 %2971
    %v2973 = vlaneseq
    %v2974 = vshrl.u32 %v2973, 7
    %v2975 = vsub.s32 1, %v2974
    %v2976 = vrot.slane %v2492, %v2975
    %2978 = vbcast.lane.b32.xlu0 %v2976, 256
    %v2979 = vpop.permute.xlu0 %2978
    %v2980 = vlaneseq
    %v2981 = vshrl.u32 %v2980, 7
    %v2982 = vsub.s32 2, %v2981
    %v2983 = vrot.slane %v2492, %v2982
    %2985 = vbcast.lane.b32.xlu0 %v2983, 256
    %v2986 = vpop.permute.xlu0 %2985
    %v2987 = vlaneseq
    %v2988 = vshrl.u32 %v2987, 7
    %v2989 = vsub.s32 3, %v2988
    %v2990 = vrot.slane %v2492, %v2989
    %2992 = vbcast.lane.b32.xlu0 %v2990, 256
    %v2993 = vpop.permute.xlu0 %2992
    %v2994 = vlaneseq
    %v2995 = vshrl.u32 %v2994, 7
    %v2996 = vsub.s32 4, %v2995
    %v2997 = vrot.slane %v2492, %v2996
    %2999 = vbcast.lane.b32.xlu0 %v2997, 256
    %v3000 = vpop.permute.xlu0 %2999
    %v3001 = vlaneseq
    %v3002 = vshrl.u32 %v3001, 7
    %v3003 = vsub.s32 5, %v3002
    %v3004 = vrot.slane %v2492, %v3003
    %3006 = vbcast.lane.b32.xlu0 %v3004, 256
    %v3007 = vpop.permute.xlu0 %3006
    %v3008 = vlaneseq
    %v3009 = vshrl.u32 %v3008, 7
    %v3010 = vsub.s32 6, %v3009
    %v3011 = vrot.slane %v2492, %v3010
    %3013 = vbcast.lane.b32.xlu0 %v3011, 256
    %v3014 = vpop.permute.xlu0 %3013
    %v3015 = vlaneseq
    %v3016 = vshrl.u32 %v3015, 7
    %v3017 = vsub.s32 7, %v3016
    %v3018 = vrot.slane %v2492, %v3017
    %3020 = vbcast.lane.b32.xlu0 %v3018, 256
    %v3021 = vpop.permute.xlu0 %3020
    %v3022 = vlaneseq
    %v3023 = vshrl.u32 %v3022, 7
    %v3024 = vsub.s32 0, %v3023
    %v3025 = vrot.slane %v2493, %v3024
    %3027 = vbcast.lane.b32.xlu0 %v3025, 256
    %v3028 = vpop.permute.xlu0 %3027
    %v3029 = vlaneseq
    %v3030 = vshrl.u32 %v3029, 7
    %v3031 = vsub.s32 1, %v3030
    %v3032 = vrot.slane %v2493, %v3031
    %3034 = vbcast.lane.b32.xlu0 %v3032, 256
    %v3035 = vpop.permute.xlu0 %3034
    %v3036 = vlaneseq
    %v3037 = vshrl.u32 %v3036, 7
    %v3038 = vsub.s32 2, %v3037
    %v3039 = vrot.slane %v2493, %v3038
    %3041 = vbcast.lane.b32.xlu0 %v3039, 256
    %v3042 = vpop.permute.xlu0 %3041
    %v3043 = vlaneseq
    %v3044 = vshrl.u32 %v3043, 7
    %v3045 = vsub.s32 3, %v3044
    %v3046 = vrot.slane %v2493, %v3045
    %3048 = vbcast.lane.b32.xlu0 %v3046, 256
    %v3049 = vpop.permute.xlu0 %3048
    %v3050 = vlaneseq
    %v3051 = vshrl.u32 %v3050, 7
    %v3052 = vsub.s32 4, %v3051
    %v3053 = vrot.slane %v2493, %v3052
    %3055 = vbcast.lane.b32.xlu0 %v3053, 256
    %v3056 = vpop.permute.xlu0 %3055
    %v3057 = vlaneseq
    %v3058 = vshrl.u32 %v3057, 7
    %v3059 = vsub.s32 5, %v3058
    %v3060 = vrot.slane %v2493, %v3059
    %3062 = vbcast.lane.b32.xlu0 %v3060, 256
    %v3063 = vpop.permute.xlu0 %3062
    %v3064 = vlaneseq
    %v3065 = vshrl.u32 %v3064, 7
    %v3066 = vsub.s32 6, %v3065
    %v3067 = vrot.slane %v2493, %v3066
    %3069 = vbcast.lane.b32.xlu0 %v3067, 256
    %v3070 = vpop.permute.xlu0 %3069
    %v3071 = vlaneseq
    %v3072 = vshrl.u32 %v3071, 7
    %v3073 = vsub.s32 7, %v3072
    %v3074 = vrot.slane %v2493, %v3073
    %3076 = vbcast.lane.b32.xlu0 %v3074, 256
    %v3077 = vpop.permute.xlu0 %3076
    %v3078 = vlaneseq
    %v3079 = vshrl.u32 %v3078, 7
    %v3080 = vsub.s32 0, %v3079
    %v3081 = vrot.slane %v2494, %v3080
    %3083 = vbcast.lane.b32.xlu0 %v3081, 256
    %v3084 = vpop.permute.xlu0 %3083
    %v3085 = vlaneseq
    %v3086 = vshrl.u32 %v3085, 7
    %v3087 = vsub.s32 1, %v3086
    %v3088 = vrot.slane %v2494, %v3087
    %3090 = vbcast.lane.b32.xlu0 %v3088, 256
    %v3091 = vpop.permute.xlu0 %3090
    %v3092 = vlaneseq
    %v3093 = vshrl.u32 %v3092, 7
    %v3094 = vsub.s32 2, %v3093
    %v3095 = vrot.slane %v2494, %v3094
    %3097 = vbcast.lane.b32.xlu0 %v3095, 256
    %v3098 = vpop.permute.xlu0 %3097
    %v3099 = vlaneseq
    %v3100 = vshrl.u32 %v3099, 7
    %v3101 = vsub.s32 3, %v3100
    %v3102 = vrot.slane %v2494, %v3101
    %3104 = vbcast.lane.b32.xlu0 %v3102, 256
    %v3105 = vpop.permute.xlu0 %3104
    %v3106 = vlaneseq
    %v3107 = vshrl.u32 %v3106, 7
    %v3108 = vsub.s32 4, %v3107
    %v3109 = vrot.slane %v2494, %v3108
    %3111 = vbcast.lane.b32.xlu0 %v3109, 256
    %v3112 = vpop.permute.xlu0 %3111
    %v3113 = vlaneseq
    %v3114 = vshrl.u32 %v3113, 7
    %v3115 = vsub.s32 5, %v3114
    %v3116 = vrot.slane %v2494, %v3115
    %3118 = vbcast.lane.b32.xlu0 %v3116, 256
    %v3119 = vpop.permute.xlu0 %3118
    %v3120 = vlaneseq
    %v3121 = vshrl.u32 %v3120, 7
    %v3122 = vsub.s32 6, %v3121
    %v3123 = vrot.slane %v2494, %v3122
    %3125 = vbcast.lane.b32.xlu0 %v3123, 256
    %v3126 = vpop.permute.xlu0 %3125
    %v3127 = vlaneseq
    %v3128 = vshrl.u32 %v3127, 7
    %v3129 = vsub.s32 7, %v3128
    %v3130 = vrot.slane %v2494, %v3129
    %3132 = vbcast.lane.b32.xlu0 %v3130, 256
    %v3133 = vpop.permute.xlu0 %3132
    %v3134 = vlaneseq
    %v3135 = vshrl.u32 %v3134, 7
    %v3136 = vsub.s32 0, %v3135
    %v3137 = vrot.slane %v2495, %v3136
    %3139 = vbcast.lane.b32.xlu0 %v3137, 256
    %v3140 = vpop.permute.xlu0 %3139
    %v3141 = vlaneseq
    %v3142 = vshrl.u32 %v3141, 7
    %v3143 = vsub.s32 1, %v3142
    %v3144 = vrot.slane %v2495, %v3143
    %3146 = vbcast.lane.b32.xlu0 %v3144, 256
    %v3147 = vpop.permute.xlu0 %3146
    %v3148 = vlaneseq
    %v3149 = vshrl.u32 %v3148, 7
    %v3150 = vsub.s32 2, %v3149
    %v3151 = vrot.slane %v2495, %v3150
    %3153 = vbcast.lane.b32.xlu0 %v3151, 256
    %v3154 = vpop.permute.xlu0 %3153
    %v3155 = vlaneseq
    %v3156 = vshrl.u32 %v3155, 7
    %v3157 = vsub.s32 3, %v3156
    %v3158 = vrot.slane %v2495, %v3157
    %3160 = vbcast.lane.b32.xlu0 %v3158, 256
    %v3161 = vpop.permute.xlu0 %3160
    %v3162 = vlaneseq
    %v3163 = vshrl.u32 %v3162, 7
    %v3164 = vsub.s32 4, %v3163
    %v3165 = vrot.slane %v2495, %v3164
    %3167 = vbcast.lane.b32.xlu0 %v3165, 256
    %v3168 = vpop.permute.xlu0 %3167
    %v3169 = vlaneseq
    %v3170 = vshrl.u32 %v3169, 7
    %v3171 = vsub.s32 5, %v3170
    %v3172 = vrot.slane %v2495, %v3171
    %3174 = vbcast.lane.b32.xlu0 %v3172, 256
    %v3175 = vpop.permute.xlu0 %3174
    %v3176 = vlaneseq
    %v3177 = vshrl.u32 %v3176, 7
    %v3178 = vsub.s32 6, %v3177
    %v3179 = vrot.slane %v2495, %v3178
    %3181 = vbcast.lane.b32.xlu0 %v3179, 256
    %v3182 = vpop.permute.xlu0 %3181
    %v3183 = vlaneseq
    %v3184 = vshrl.u32 %v3183, 7
    %v3185 = vsub.s32 7, %v3184
    %v3186 = vrot.slane %v2495, %v3185
    %3188 = vbcast.lane.b32.xlu0 %v3186, 256
    %v3189 = vpop.permute.xlu0 %3188
    %v3190 = vlaneseq
    %v3191 = vshrl.u32 %v3190, 7
    %v3192 = vsub.s32 0, %v3191
    %v3193 = vrot.slane %v2496, %v3192
    %3195 = vbcast.lane.b32.xlu0 %v3193, 256
    %v3196 = vpop.permute.xlu0 %3195
    %v3197 = vlaneseq
    %v3198 = vshrl.u32 %v3197, 7
    %v3199 = vsub.s32 1, %v3198
    %v3200 = vrot.slane %v2496, %v3199
    %3202 = vbcast.lane.b32.xlu0 %v3200, 256
    %v3203 = vpop.permute.xlu0 %3202
    %v3204 = vlaneseq
    %v3205 = vshrl.u32 %v3204, 7
    %v3206 = vsub.s32 2, %v3205
    %v3207 = vrot.slane %v2496, %v3206
    %3209 = vbcast.lane.b32.xlu0 %v3207, 256
    %v3210 = vpop.permute.xlu0 %3209
    %v3211 = vlaneseq
    %v3212 = vshrl.u32 %v3211, 7
    %v3213 = vsub.s32 3, %v3212
    %v3214 = vrot.slane %v2496, %v3213
    %3216 = vbcast.lane.b32.xlu0 %v3214, 256
    %v3217 = vpop.permute.xlu0 %3216
    %v3218 = vlaneseq
    %v3219 = vshrl.u32 %v3218, 7
    %v3220 = vsub.s32 4, %v3219
    %v3221 = vrot.slane %v2496, %v3220
    %3223 = vbcast.lane.b32.xlu0 %v3221, 256
    %v3224 = vpop.permute.xlu0 %3223
    %v3225 = vlaneseq
    %v3226 = vshrl.u32 %v3225, 7
    %v3227 = vsub.s32 5, %v3226
    %v3228 = vrot.slane %v2496, %v3227
    %3230 = vbcast.lane.b32.xlu0 %v3228, 256
    %v3231 = vpop.permute.xlu0 %3230
    %v3232 = vlaneseq
    %v3233 = vshrl.u32 %v3232, 7
    %v3234 = vsub.s32 6, %v3233
    %v3235 = vrot.slane %v2496, %v3234
    %3237 = vbcast.lane.b32.xlu0 %v3235, 256
    %v3238 = vpop.permute.xlu0 %3237
    %v3239 = vlaneseq
    %v3240 = vshrl.u32 %v3239, 7
    %v3241 = vsub.s32 7, %v3240
    %v3242 = vrot.slane %v2496, %v3241
    %3244 = vbcast.lane.b32.xlu0 %v3242, 256
    %v3245 = vpop.permute.xlu0 %3244
    %v3246 = vlaneseq
    %v3247 = vshrl.u32 %v3246, 7
    %v3248 = vsub.s32 0, %v3247
    %v3249 = vrot.slane %v2497, %v3248
    %3251 = vbcast.lane.b32.xlu0 %v3249, 256
    %v3252 = vpop.permute.xlu0 %3251
    %v3253 = vlaneseq
    %v3254 = vshrl.u32 %v3253, 7
    %v3255 = vsub.s32 1, %v3254
    %v3256 = vrot.slane %v2497, %v3255
    %3258 = vbcast.lane.b32.xlu0 %v3256, 256
    %v3259 = vpop.permute.xlu0 %3258
    %v3260 = vlaneseq
    %v3261 = vshrl.u32 %v3260, 7
    %v3262 = vsub.s32 2, %v3261
    %v3263 = vrot.slane %v2497, %v3262
    %3265 = vbcast.lane.b32.xlu0 %v3263, 256
    %v3266 = vpop.permute.xlu0 %3265
    %v3267 = vlaneseq
    %v3268 = vshrl.u32 %v3267, 7
    %v3269 = vsub.s32 3, %v3268
    %v3270 = vrot.slane %v2497, %v3269
    %3272 = vbcast.lane.b32.xlu0 %v3270, 256
    %v3273 = vpop.permute.xlu0 %3272
    %v3274 = vlaneseq
    %v3275 = vshrl.u32 %v3274, 7
    %v3276 = vsub.s32 4, %v3275
    %v3277 = vrot.slane %v2497, %v3276
    %3279 = vbcast.lane.b32.xlu0 %v3277, 256
    %v3280 = vpop.permute.xlu0 %3279
    %v3281 = vlaneseq
    %v3282 = vshrl.u32 %v3281, 7
    %v3283 = vsub.s32 5, %v3282
    %v3284 = vrot.slane %v2497, %v3283
    %3286 = vbcast.lane.b32.xlu0 %v3284, 256
    %v3287 = vpop.permute.xlu0 %3286
    %v3288 = vlaneseq
    %v3289 = vshrl.u32 %v3288, 7
    %v3290 = vsub.s32 6, %v3289
    %v3291 = vrot.slane %v2497, %v3290
    %3293 = vbcast.lane.b32.xlu0 %v3291, 256
    %v3294 = vpop.permute.xlu0 %3293
    %v3295 = vlaneseq
    %v3296 = vshrl.u32 %v3295, 7
    %v3297 = vsub.s32 7, %v3296
    %v3298 = vrot.slane %v2497, %v3297
    %3300 = vbcast.lane.b32.xlu0 %v3298, 256
    %v3301 = vpop.permute.xlu0 %3300
    %v3302 = vlaneseq
    %v3303 = vshrl.u32 %v3302, 7
    %v3304 = vsub.s32 0, %v3303
    %v3305 = vrot.slane %v2498, %v3304
    %3307 = vbcast.lane.b32.xlu0 %v3305, 256
    %v3308 = vpop.permute.xlu0 %3307
    %v3309 = vlaneseq
    %v3310 = vshrl.u32 %v3309, 7
    %v3311 = vsub.s32 1, %v3310
    %v3312 = vrot.slane %v2498, %v3311
    %3314 = vbcast.lane.b32.xlu0 %v3312, 256
    %v3315 = vpop.permute.xlu0 %3314
    %v3316 = vlaneseq
    %v3317 = vshrl.u32 %v3316, 7
    %v3318 = vsub.s32 2, %v3317
    %v3319 = vrot.slane %v2498, %v3318
    %3321 = vbcast.lane.b32.xlu0 %v3319, 256
    %v3322 = vpop.permute.xlu0 %3321
    %v3323 = vlaneseq
    %v3324 = vshrl.u32 %v3323, 7
    %v3325 = vsub.s32 3, %v3324
    %v3326 = vrot.slane %v2498, %v3325
    %3328 = vbcast.lane.b32.xlu0 %v3326, 256
    %v3329 = vpop.permute.xlu0 %3328
    %v3330 = vlaneseq
    %v3331 = vshrl.u32 %v3330, 7
    %v3332 = vsub.s32 4, %v3331
    %v3333 = vrot.slane %v2498, %v3332
    %3335 = vbcast.lane.b32.xlu0 %v3333, 256
    %v3336 = vpop.permute.xlu0 %3335
    %v3337 = vlaneseq
    %v3338 = vshrl.u32 %v3337, 7
    %v3339 = vsub.s32 5, %v3338
    %v3340 = vrot.slane %v2498, %v3339
    %3342 = vbcast.lane.b32.xlu0 %v3340, 256
    %v3343 = vpop.permute.xlu0 %3342
    %v3344 = vlaneseq
    %v3345 = vshrl.u32 %v3344, 7
    %v3346 = vsub.s32 6, %v3345
    %v3347 = vrot.slane %v2498, %v3346
    %3349 = vbcast.lane.b32.xlu0 %v3347, 256
    %v3350 = vpop.permute.xlu0 %3349
    %v3351 = vlaneseq
    %v3352 = vshrl.u32 %v3351, 7
    %v3353 = vsub.s32 7, %v3352
    %v3354 = vrot.slane %v2498, %v3353
    %3356 = vbcast.lane.b32.xlu0 %v3354, 256
    %v3357 = vpop.permute.xlu0 %3356
    %v3358 = vlaneseq
    %v3359 = vshrl.u32 %v3358, 7
    %v3360 = vsub.s32 0, %v3359
    %v3361 = vrot.slane %v2499, %v3360
    %3363 = vbcast.lane.b32.xlu0 %v3361, 256
    %v3364 = vpop.permute.xlu0 %3363
    %v3365 = vlaneseq
    %v3366 = vshrl.u32 %v3365, 7
    %v3367 = vsub.s32 1, %v3366
    %v3368 = vrot.slane %v2499, %v3367
    %3370 = vbcast.lane.b32.xlu0 %v3368, 256
    %v3371 = vpop.permute.xlu0 %3370
    %v3372 = vlaneseq
    %v3373 = vshrl.u32 %v3372, 7
    %v3374 = vsub.s32 2, %v3373
    %v3375 = vrot.slane %v2499, %v3374
    %3377 = vbcast.lane.b32.xlu0 %v3375, 256
    %v3378 = vpop.permute.xlu0 %3377
    %v3379 = vlaneseq
    %v3380 = vshrl.u32 %v3379, 7
    %v3381 = vsub.s32 3, %v3380
    %v3382 = vrot.slane %v2499, %v3381
    %3384 = vbcast.lane.b32.xlu0 %v3382, 256
    %v3385 = vpop.permute.xlu0 %3384
    %v3386 = vlaneseq
    %v3387 = vshrl.u32 %v3386, 7
    %v3388 = vsub.s32 4, %v3387
    %v3389 = vrot.slane %v2499, %v3388
    %3391 = vbcast.lane.b32.xlu0 %v3389, 256
    %v3392 = vpop.permute.xlu0 %3391
    %v3393 = vlaneseq
    %v3394 = vshrl.u32 %v3393, 7
    %v3395 = vsub.s32 5, %v3394
    %v3396 = vrot.slane %v2499, %v3395
    %3398 = vbcast.lane.b32.xlu0 %v3396, 256
    %v3399 = vpop.permute.xlu0 %3398
    %v3400 = vlaneseq
    %v3401 = vshrl.u32 %v3400, 7
    %v3402 = vsub.s32 6, %v3401
    %v3403 = vrot.slane %v2499, %v3402
    %3405 = vbcast.lane.b32.xlu0 %v3403, 256
    %v3406 = vpop.permute.xlu0 %3405
    %v3407 = vlaneseq
    %v3408 = vshrl.u32 %v3407, 7
    %v3409 = vsub.s32 7, %v3408
    %v3410 = vrot.slane %v2499, %v3409
    %3412 = vbcast.lane.b32.xlu0 %v3410, 256
    %v3413 = vpop.permute.xlu0 %3412
    %v3414 = vlaneseq
    %v3415 = vshrl.u32 %v3414, 7
    %v3416 = vsub.s32 0, %v3415
    %v3417 = vrot.slane %v2500, %v3416
    %3419 = vbcast.lane.b32.xlu0 %v3417, 256
    %v3420 = vpop.permute.xlu0 %3419
    %v3421 = vlaneseq
    %v3422 = vshrl.u32 %v3421, 7
    %v3423 = vsub.s32 1, %v3422
    %v3424 = vrot.slane %v2500, %v3423
    %3426 = vbcast.lane.b32.xlu0 %v3424, 256
    %v3427 = vpop.permute.xlu0 %3426
    %v3428 = vlaneseq
    %v3429 = vshrl.u32 %v3428, 7
    %v3430 = vsub.s32 2, %v3429
    %v3431 = vrot.slane %v2500, %v3430
    %3433 = vbcast.lane.b32.xlu0 %v3431, 256
    %v3434 = vpop.permute.xlu0 %3433
    %v3435 = vlaneseq
    %v3436 = vshrl.u32 %v3435, 7
    %v3437 = vsub.s32 3, %v3436
    %v3438 = vrot.slane %v2500, %v3437
    %3440 = vbcast.lane.b32.xlu0 %v3438, 256
    %v3441 = vpop.permute.xlu0 %3440
    %v3442 = vlaneseq
    %v3443 = vshrl.u32 %v3442, 7
    %v3444 = vsub.s32 4, %v3443
    %v3445 = vrot.slane %v2500, %v3444
    %3447 = vbcast.lane.b32.xlu0 %v3445, 256
    %v3448 = vpop.permute.xlu0 %3447
    %v3449 = vlaneseq
    %v3450 = vshrl.u32 %v3449, 7
    %v3451 = vsub.s32 5, %v3450
    %v3452 = vrot.slane %v2500, %v3451
    %3454 = vbcast.lane.b32.xlu0 %v3452, 256
    %v3455 = vpop.permute.xlu0 %3454
    %v3456 = vlaneseq
    %v3457 = vshrl.u32 %v3456, 7
    %v3458 = vsub.s32 6, %v3457
    %v3459 = vrot.slane %v2500, %v3458
    %3461 = vbcast.lane.b32.xlu0 %v3459, 256
    %v3462 = vpop.permute.xlu0 %3461
    %v3463 = vlaneseq
    %v3464 = vshrl.u32 %v3463, 7
    %v3465 = vsub.s32 7, %v3464
    %v3466 = vrot.slane %v2500, %v3465
    %3468 = vbcast.lane.b32.xlu0 %v3466, 256
    %v3469 = vpop.permute.xlu0 %3468
    %v3470 = vlaneseq
    %v3471 = vshrl.u32 %v3470, 7
    %v3472 = vsub.s32 0, %v3471
    %v3473 = vrot.slane %v2501, %v3472
    %3475 = vbcast.lane.b32.xlu0 %v3473, 256
    %v3476 = vpop.permute.xlu0 %3475
    %v3477 = vlaneseq
    %v3478 = vshrl.u32 %v3477, 7
    %v3479 = vsub.s32 1, %v3478
    %v3480 = vrot.slane %v2501, %v3479
    %3482 = vbcast.lane.b32.xlu0 %v3480, 256
    %v3483 = vpop.permute.xlu0 %3482
    %v3484 = vlaneseq
    %v3485 = vshrl.u32 %v3484, 7
    %v3486 = vsub.s32 2, %v3485
    %v3487 = vrot.slane %v2501, %v3486
    %3489 = vbcast.lane.b32.xlu0 %v3487, 256
    %v3490 = vpop.permute.xlu0 %3489
    %v3491 = vlaneseq
    %v3492 = vshrl.u32 %v3491, 7
    %v3493 = vsub.s32 3, %v3492
    %v3494 = vrot.slane %v2501, %v3493
    %3496 = vbcast.lane.b32.xlu0 %v3494, 256
    %v3497 = vpop.permute.xlu0 %3496
    %v3498 = vlaneseq
    %v3499 = vshrl.u32 %v3498, 7
    %v3500 = vsub.s32 4, %v3499
    %v3501 = vrot.slane %v2501, %v3500
    %3503 = vbcast.lane.b32.xlu0 %v3501, 256
    %v3504 = vpop.permute.xlu0 %3503
    %v3505 = vlaneseq
    %v3506 = vshrl.u32 %v3505, 7
    %v3507 = vsub.s32 5, %v3506
    %v3508 = vrot.slane %v2501, %v3507
    %3510 = vbcast.lane.b32.xlu0 %v3508, 256
    %v3511 = vpop.permute.xlu0 %3510
    %v3512 = vlaneseq
    %v3513 = vshrl.u32 %v3512, 7
    %v3514 = vsub.s32 6, %v3513
    %v3515 = vrot.slane %v2501, %v3514
    %3517 = vbcast.lane.b32.xlu0 %v3515, 256
    %v3518 = vpop.permute.xlu0 %3517
    %v3519 = vlaneseq
    %v3520 = vshrl.u32 %v3519, 7
    %v3521 = vsub.s32 7, %v3520
    %v3522 = vrot.slane %v2501, %v3521
    %3524 = vbcast.lane.b32.xlu0 %v3522, 256
    %v3525 = vpop.permute.xlu0 %3524
    %v3526 = vsub.f32 %v2502, %v2636
    %v3527 = vsub.f32 %v2503, %v2643
    %v3528 = vsub.f32 %v2504, %v2650
    %v3529 = vsub.f32 %v2505, %v2657
    %v3530 = vsub.f32 %v2506, %v2664
    %v3531 = vsub.f32 %v2507, %v2671
    %v3532 = vsub.f32 %v2508, %v2678
    %v3533 = vsub.f32 %v2509, %v2685
    %v3534 = vsub.f32 %v2510, %v2692
    %v3535 = vsub.f32 %v2511, %v2699
    %v3536 = vsub.f32 %v2512, %v2706
    %v3537 = vsub.f32 %v2513, %v2713
    %v3538 = vsub.f32 %v2514, %v2720
    %v3539 = vsub.f32 %v2515, %v2727
    %v3540 = vsub.f32 %v2516, %v2734
    %v3541 = vsub.f32 %v2517, %v2741
    %v3542 = vsub.f32 %v2518, %v2748
    %v3543 = vsub.f32 %v2519, %v2755
    %v3544 = vsub.f32 %v2520, %v2762
    %v3545 = vsub.f32 %v2521, %v2769
    %v3546 = vsub.f32 %v2522, %v2776
    %v3547 = vsub.f32 %v2523, %v2783
    %v3548 = vsub.f32 %v2524, %v2790
    %v3549 = vsub.f32 %v2525, %v2797
    %v3550 = vsub.f32 %v2526, %v2804
    %v3551 = vsub.f32 %v2527, %v2811
    %v3552 = vsub.f32 %v2528, %v2818
    %v3553 = vsub.f32 %v2529, %v2825
    %v3554 = vsub.f32 %v2530, %v2832
    %v3555 = vsub.f32 %v2531, %v2839
    %v3556 = vsub.f32 %v2532, %v2846
    %v3557 = vsub.f32 %v2533, %v2853
    %v3558 = vsub.f32 %v2534, %v2860
    %v3559 = vsub.f32 %v2535, %v2867
    %v3560 = vsub.f32 %v2536, %v2874
    %v3561 = vsub.f32 %v2537, %v2881
    %v3562 = vsub.f32 %v2538, %v2888
    %v3563 = vsub.f32 %v2539, %v2895
    %v3564 = vsub.f32 %v2540, %v2902
    %v3565 = vsub.f32 %v2541, %v2909
    %v3566 = vsub.f32 %v2542, %v2916
    %v3567 = vsub.f32 %v2543, %v2923
    %v3568 = vsub.f32 %v2544, %v2930
    %v3569 = vsub.f32 %v2545, %v2937
    %v3570 = vsub.f32 %v2546, %v2944
    %v3571 = vsub.f32 %v2547, %v2951
    %v3572 = vsub.f32 %v2548, %v2958
    %v3573 = vsub.f32 %v2549, %v2965
    %v3574 = vsub.f32 %v2550, %v2972
    %v3575 = vsub.f32 %v2551, %v2979
    %v3576 = vsub.f32 %v2552, %v2986
    %v3577 = vsub.f32 %v2553, %v2993
    %v3578 = vsub.f32 %v2554, %v3000
    %v3579 = vsub.f32 %v2555, %v3007
    %v3580 = vsub.f32 %v2556, %v3014
    %v3581 = vsub.f32 %v2557, %v3021
    %v3582 = vsub.f32 %v2558, %v3028
    %v3583 = vsub.f32 %v2559, %v3035
    %v3584 = vsub.f32 %v2560, %v3042
    %v3585 = vsub.f32 %v2561, %v3049
    %v3586 = vsub.f32 %v2562, %v3056
    %v3587 = vsub.f32 %v2563, %v3063
    %v3588 = vsub.f32 %v2564, %v3070
    %v3589 = vsub.f32 %v2565, %v3077
    %v3590 = vsub.f32 %v2566, %v3084
    %v3591 = vsub.f32 %v2567, %v3091
    %v3592 = vsub.f32 %v2568, %v3098
    %v3593 = vsub.f32 %v2569, %v3105
    %v3594 = vsub.f32 %v2570, %v3112
    %v3595 = vsub.f32 %v2571, %v3119
    %v3596 = vsub.f32 %v2572, %v3126
    %v3597 = vsub.f32 %v2573, %v3133
    %v3598 = vsub.f32 %v2574, %v3140
    %v3599 = vsub.f32 %v2575, %v3147
    %v3600 = vsub.f32 %v2576, %v3154
    %v3601 = vsub.f32 %v2577, %v3161
    %v3602 = vsub.f32 %v2578, %v3168
    %v3603 = vsub.f32 %v2579, %v3175
    %v3604 = vsub.f32 %v2580, %v3182
    %v3605 = vsub.f32 %v2581, %v3189
    %v3606 = vsub.f32 %v2582, %v3196
    %v3607 = vsub.f32 %v2583, %v3203
    %v3608 = vsub.f32 %v2584, %v3210
    %v3609 = vsub.f32 %v2585, %v3217
    %v3610 = vsub.f32 %v2586, %v3224
    %v3611 = vsub.f32 %v2587, %v3231
    %v3612 = vsub.f32 %v2588, %v3238
    %v3613 = vsub.f32 %v2589, %v3245
    %v3614 = vsub.f32 %v2590, %v3252
    %v3615 = vsub.f32 %v2591, %v3259
    %v3616 = vsub.f32 %v2592, %v3266
    %v3617 = vsub.f32 %v2593, %v3273
    %v3618 = vsub.f32 %v2594, %v3280
    %v3619 = vsub.f32 %v2595, %v3287
    %v3620 = vsub.f32 %v2596, %v3294
    %v3621 = vsub.f32 %v2597, %v3301
    %v3622 = vsub.f32 %v2598, %v3308
    %v3623 = vsub.f32 %v2599, %v3315
    %v3624 = vsub.f32 %v2600, %v3322
    %v3625 = vsub.f32 %v2601, %v3329
    %v3626 = vsub.f32 %v2602, %v3336
    %v3627 = vsub.f32 %v2603, %v3343
    %v3628 = vsub.f32 %v2604, %v3350
    %v3629 = vsub.f32 %v2605, %v3357
    %v3630 = vsub.f32 %v2606, %v3364
    %v3631 = vsub.f32 %v2607, %v3371
    %v3632 = vsub.f32 %v2608, %v3378
    %v3633 = vsub.f32 %v2609, %v3385
    %v3634 = vsub.f32 %v2610, %v3392
    %v3635 = vsub.f32 %v2611, %v3399
    %v3636 = vsub.f32 %v2612, %v3406
    %v3637 = vsub.f32 %v2613, %v3413
    %v3638 = vsub.f32 %v2614, %v3420
    %v3639 = vsub.f32 %v2615, %v3427
    %v3640 = vsub.f32 %v2616, %v3434
    %v3641 = vsub.f32 %v2617, %v3441
    %v3642 = vsub.f32 %v2618, %v3448
    %v3643 = vsub.f32 %v2619, %v3455
    %v3644 = vsub.f32 %v2620, %v3462
    %v3645 = vsub.f32 %v2621, %v3469
    %v3646 = vsub.f32 %v2622, %v3476
    %v3647 = vsub.f32 %v2623, %v3483
    %v3648 = vsub.f32 %v2624, %v3490
    %v3649 = vsub.f32 %v2625, %v3497
    %v3650 = vsub.f32 %v2626, %v3504
    %v3651 = vsub.f32 %v2627, %v3511
    %v3652 = vsub.f32 %v2628, %v3518
    %v3653 = vsub.f32 %v2629, %v3525
    %v3654 = vmax.f32 %v3526, 0.0
    %v3655 = vmax.f32 %v3527, 0.0
    %v3656 = vmax.f32 %v3528, 0.0
    %v3657 = vmax.f32 %v3529, 0.0
    %v3658 = vmax.f32 %v3530, 0.0
    %v3659 = vmax.f32 %v3531, 0.0
    %v3660 = vmax.f32 %v3532, 0.0
    %v3661 = vmax.f32 %v3533, 0.0
    %v3662 = vmax.f32 %v3534, 0.0
    %v3663 = vmax.f32 %v3535, 0.0
    %v3664 = vmax.f32 %v3536, 0.0
    %v3665 = vmax.f32 %v3537, 0.0
    %v3666 = vmax.f32 %v3538, 0.0
    %v3667 = vmax.f32 %v3539, 0.0
    %v3668 = vmax.f32 %v3540, 0.0
    %v3669 = vmax.f32 %v3541, 0.0
    %v3670 = vmax.f32 %v3542, 0.0
    %v3671 = vmax.f32 %v3543, 0.0
    %v3672 = vmax.f32 %v3544, 0.0
    %v3673 = vmax.f32 %v3545, 0.0
    %v3674 = vmax.f32 %v3546, 0.0
    %v3675 = vmax.f32 %v3547, 0.0
    %v3676 = vmax.f32 %v3548, 0.0
    %v3677 = vmax.f32 %v3549, 0.0
    %v3678 = vmax.f32 %v3550, 0.0
    %v3679 = vmax.f32 %v3551, 0.0
    %v3680 = vmax.f32 %v3552, 0.0
    %v3681 = vmax.f32 %v3553, 0.0
    %v3682 = vmax.f32 %v3554, 0.0
    %v3683 = vmax.f32 %v3555, 0.0
    %v3684 = vmax.f32 %v3556, 0.0
    %v3685 = vmax.f32 %v3557, 0.0
    %v3686 = vmax.f32 %v3558, 0.0
    %v3687 = vmax.f32 %v3559, 0.0
    %v3688 = vmax.f32 %v3560, 0.0
    %v3689 = vmax.f32 %v3561, 0.0
    %v3690 = vmax.f32 %v3562, 0.0
    %v3691 = vmax.f32 %v3563, 0.0
    %v3692 = vmax.f32 %v3564, 0.0
    %v3693 = vmax.f32 %v3565, 0.0
    %v3694 = vmax.f32 %v3566, 0.0
    %v3695 = vmax.f32 %v3567, 0.0
    %v3696 = vmax.f32 %v3568, 0.0
    %v3697 = vmax.f32 %v3569, 0.0
    %v3698 = vmax.f32 %v3570, 0.0
    %v3699 = vmax.f32 %v3571, 0.0
    %v3700 = vmax.f32 %v3572, 0.0
    %v3701 = vmax.f32 %v3573, 0.0
    %v3702 = vmax.f32 %v3574, 0.0
    %v3703 = vmax.f32 %v3575, 0.0
    %v3704 = vmax.f32 %v3576, 0.0
    %v3705 = vmax.f32 %v3577, 0.0
    %v3706 = vmax.f32 %v3578, 0.0
    %v3707 = vmax.f32 %v3579, 0.0
    %v3708 = vmax.f32 %v3580, 0.0
    %v3709 = vmax.f32 %v3581, 0.0
    %v3710 = vmax.f32 %v3582, 0.0
    %v3711 = vmax.f32 %v3583, 0.0
    %v3712 = vmax.f32 %v3584, 0.0
    %v3713 = vmax.f32 %v3585, 0.0
    %v3714 = vmax.f32 %v3586, 0.0
    %v3715 = vmax.f32 %v3587, 0.0
    %v3716 = vmax.f32 %v3588, 0.0
    %v3717 = vmax.f32 %v3589, 0.0
    %v3718 = vmax.f32 %v3590, 0.0
    %v3719 = vmax.f32 %v3591, 0.0
    %v3720 = vmax.f32 %v3592, 0.0
    %v3721 = vmax.f32 %v3593, 0.0
    %v3722 = vmax.f32 %v3594, 0.0
    %v3723 = vmax.f32 %v3595, 0.0
    %v3724 = vmax.f32 %v3596, 0.0
    %v3725 = vmax.f32 %v3597, 0.0
    %v3726 = vmax.f32 %v3598, 0.0
    %v3727 = vmax.f32 %v3599, 0.0
    %v3728 = vmax.f32 %v3600, 0.0
    %v3729 = vmax.f32 %v3601, 0.0
    %v3730 = vmax.f32 %v3602, 0.0
    %v3731 = vmax.f32 %v3603, 0.0
    %v3732 = vmax.f32 %v3604, 0.0
    %v3733 = vmax.f32 %v3605, 0.0
    %v3734 = vmax.f32 %v3606, 0.0
    %v3735 = vmax.f32 %v3607, 0.0
    %v3736 = vmax.f32 %v3608, 0.0
    %v3737 = vmax.f32 %v3609, 0.0
    %v3738 = vmax.f32 %v3610, 0.0
    %v3739 = vmax.f32 %v3611, 0.0
    %v3740 = vmax.f32 %v3612, 0.0
    %v3741 = vmax.f32 %v3613, 0.0
    %v3742 = vmax.f32 %v3614, 0.0
    %v3743 = vmax.f32 %v3615, 0.0
    %v3744 = vmax.f32 %v3616, 0.0
    %v3745 = vmax.f32 %v3617, 0.0
    %v3746 = vmax.f32 %v3618, 0.0
    %v3747 = vmax.f32 %v3619, 0.0
    %v3748 = vmax.f32 %v3620, 0.0
    %v3749 = vmax.f32 %v3621, 0.0
    %v3750 = vmax.f32 %v3622, 0.0
    %v3751 = vmax.f32 %v3623, 0.0
    %v3752 = vmax.f32 %v3624, 0.0
    %v3753 = vmax.f32 %v3625, 0.0
    %v3754 = vmax.f32 %v3626, 0.0
    %v3755 = vmax.f32 %v3627, 0.0
    %v3756 = vmax.f32 %v3628, 0.0
    %v3757 = vmax.f32 %v3629, 0.0
    %v3758 = vmax.f32 %v3630, 0.0
    %v3759 = vmax.f32 %v3631, 0.0
    %v3760 = vmax.f32 %v3632, 0.0
    %v3761 = vmax.f32 %v3633, 0.0
    %v3762 = vmax.f32 %v3634, 0.0
    %v3763 = vmax.f32 %v3635, 0.0
    %v3764 = vmax.f32 %v3636, 0.0
    %v3765 = vmax.f32 %v3637, 0.0
    %v3766 = vmax.f32 %v3638, 0.0
    %v3767 = vmax.f32 %v3639, 0.0
    %v3768 = vmax.f32 %v3640, 0.0
    %v3769 = vmax.f32 %v3641, 0.0
    %v3770 = vmax.f32 %v3642, 0.0
    %v3771 = vmax.f32 %v3643, 0.0
    %v3772 = vmax.f32 %v3644, 0.0
    %v3773 = vmax.f32 %v3645, 0.0
    %v3774 = vmax.f32 %v3646, 0.0
    %v3775 = vmax.f32 %v3647, 0.0
    %v3776 = vmax.f32 %v3648, 0.0
    %v3777 = vmax.f32 %v3649, 0.0
    %v3778 = vmax.f32 %v3650, 0.0
    %v3779 = vmax.f32 %v3651, 0.0
    %v3780 = vmax.f32 %v3652, 0.0
    %v3781 = vmax.f32 %v3653, 0.0
    %v3782 = vld [vmem:[#allocation4] sm:$0xff]
    %v3783 = vld [vmem:[#allocation4 + $0x8] sm:$0xff]
    %v3784 = vld [vmem:[#allocation4 + $0x10] sm:$0xff]
    %v3785 = vld [vmem:[#allocation4 + $0x18] sm:$0xff]
    %v3786 = vld [vmem:[#allocation4 + $0x20] sm:$0xff]
    %v3787 = vld [vmem:[#allocation4 + $0x28] sm:$0xff]
    %v3788 = vld [vmem:[#allocation4 + $0x30] sm:$0xff]
    %v3789 = vld [vmem:[#allocation4 + $0x38] sm:$0xff]
    %v3790 = vld [vmem:[#allocation4 + $0x40] sm:$0xff]
    %v3791 = vld [vmem:[#allocation4 + $0x48] sm:$0xff]
    %v3792 = vld [vmem:[#allocation4 + $0x50] sm:$0xff]
    %v3793 = vld [vmem:[#allocation4 + $0x58] sm:$0xff]
    %v3794 = vld [vmem:[#allocation4 + $0x60] sm:$0xff]
    %v3795 = vld [vmem:[#allocation4 + $0x68] sm:$0xff]
    %v3796 = vld [vmem:[#allocation4 + $0x70] sm:$0xff]
    %v3797 = vld [vmem:[#allocation4 + $0x78] sm:$0xff]
    %3798 = vadd.xlane.f32.xlu0 %v3654
    %v3799 = vpop.xlane.xlu0 %3798
    %3800 = vadd.xlane.f32.xlu0 %v3655
    %v3801 = vpop.xlane.xlu0 %3800
    %3802 = vadd.xlane.f32.xlu0 %v3656
    %v3803 = vpop.xlane.xlu0 %3802
    %3804 = vadd.xlane.f32.xlu0 %v3657
    %v3805 = vpop.xlane.xlu0 %3804
    %3806 = vadd.xlane.f32.xlu0 %v3658
    %v3807 = vpop.xlane.xlu0 %3806
    %3808 = vadd.xlane.f32.xlu0 %v3659
    %v3809 = vpop.xlane.xlu0 %3808
    %3810 = vadd.xlane.f32.xlu0 %v3660
    %v3811 = vpop.xlane.xlu0 %3810
    %3812 = vadd.xlane.f32.xlu0 %v3661
    %v3813 = vpop.xlane.xlu0 %3812
    %3814 = vadd.xlane.f32.xlu0 %v3662
    %v3815 = vpop.xlane.xlu0 %3814
    %3816 = vadd.xlane.f32.xlu0 %v3663
    %v3817 = vpop.xlane.xlu0 %3816
    %3818 = vadd.xlane.f32.xlu0 %v3664
    %v3819 = vpop.xlane.xlu0 %3818
    %3820 = vadd.xlane.f32.xlu0 %v3665
    %v3821 = vpop.xlane.xlu0 %3820
    %3822 = vadd.xlane.f32.xlu0 %v3666
    %v3823 = vpop.xlane.xlu0 %3822
    %3824 = vadd.xlane.f32.xlu0 %v3667
    %v3825 = vpop.xlane.xlu0 %3824
    %3826 = vadd.xlane.f32.xlu0 %v3668
    %v3827 = vpop.xlane.xlu0 %3826
    %3828 = vadd.xlane.f32.xlu0 %v3669
    %v3829 = vpop.xlane.xlu0 %3828
    %3830 = vadd.xlane.f32.xlu0 %v3670
    %v3831 = vpop.xlane.xlu0 %3830
    %3832 = vadd.xlane.f32.xlu0 %v3671
    %v3833 = vpop.xlane.xlu0 %3832
    %3834 = vadd.xlane.f32.xlu0 %v3672
    %v3835 = vpop.xlane.xlu0 %3834
    %3836 = vadd.xlane.f32.xlu0 %v3673
    %v3837 = vpop.xlane.xlu0 %3836
    %3838 = vadd.xlane.f32.xlu0 %v3674
    %v3839 = vpop.xlane.xlu0 %3838
    %3840 = vadd.xlane.f32.xlu0 %v3675
    %v3841 = vpop.xlane.xlu0 %3840
    %3842 = vadd.xlane.f32.xlu0 %v3676
    %v3843 = vpop.xlane.xlu0 %3842
    %3844 = vadd.xlane.f32.xlu0 %v3677
    %v3845 = vpop.xlane.xlu0 %3844
    %3846 = vadd.xlane.f32.xlu0 %v3678
    %v3847 = vpop.xlane.xlu0 %3846
    %3848 = vadd.xlane.f32.xlu0 %v3679
    %v3849 = vpop.xlane.xlu0 %3848
    %3850 = vadd.xlane.f32.xlu0 %v3680
    %v3851 = vpop.xlane.xlu0 %3850
    %3852 = vadd.xlane.f32.xlu0 %v3681
    %v3853 = vpop.xlane.xlu0 %3852
    %3854 = vadd.xlane.f32.xlu0 %v3682
    %v3855 = vpop.xlane.xlu0 %3854
    %3856 = vadd.xlane.f32.xlu0 %v3683
    %v3857 = vpop.xlane.xlu0 %3856
    %3858 = vadd.xlane.f32.xlu0 %v3684
    %v3859 = vpop.xlane.xlu0 %3858
    %3860 = vadd.xlane.f32.xlu0 %v3685
    %v3861 = vpop.xlane.xlu0 %3860
    %3862 = vadd.xlane.f32.xlu0 %v3686
    %v3863 = vpop.xlane.xlu0 %3862
    %3864 = vadd.xlane.f32.xlu0 %v3687
    %v3865 = vpop.xlane.xlu0 %3864
    %3866 = vadd.xlane.f32.xlu0 %v3688
    %v3867 = vpop.xlane.xlu0 %3866
    %3868 = vadd.xlane.f32.xlu0 %v3689
    %v3869 = vpop.xlane.xlu0 %3868
    %3870 = vadd.xlane.f32.xlu0 %v3690
    %v3871 = vpop.xlane.xlu0 %3870
    %3872 = vadd.xlane.f32.xlu0 %v3691
    %v3873 = vpop.xlane.xlu0 %3872
    %3874 = vadd.xlane.f32.xlu0 %v3692
    %v3875 = vpop.xlane.xlu0 %3874
    %3876 = vadd.xlane.f32.xlu0 %v3693
    %v3877 = vpop.xlane.xlu0 %3876
    %3878 = vadd.xlane.f32.xlu0 %v3694
    %v3879 = vpop.xlane.xlu0 %3878
    %3880 = vadd.xlane.f32.xlu0 %v3695
    %v3881 = vpop.xlane.xlu0 %3880
    %3882 = vadd.xlane.f32.xlu0 %v3696
    %v3883 = vpop.xlane.xlu0 %3882
    %3884 = vadd.xlane.f32.xlu0 %v3697
    %v3885 = vpop.xlane.xlu0 %3884
    %3886 = vadd.xlane.f32.xlu0 %v3698
    %v3887 = vpop.xlane.xlu0 %3886
    %3888 = vadd.xlane.f32.xlu0 %v3699
    %v3889 = vpop.xlane.xlu0 %3888
    %3890 = vadd.xlane.f32.xlu0 %v3700
    %v3891 = vpop.xlane.xlu0 %3890
    %3892 = vadd.xlane.f32.xlu0 %v3701
    %v3893 = vpop.xlane.xlu0 %3892
    %3894 = vadd.xlane.f32.xlu0 %v3702
    %v3895 = vpop.xlane.xlu0 %3894
    %3896 = vadd.xlane.f32.xlu0 %v3703
    %v3897 = vpop.xlane.xlu0 %3896
    %3898 = vadd.xlane.f32.xlu0 %v3704
    %v3899 = vpop.xlane.xlu0 %3898
    %3900 = vadd.xlane.f32.xlu0 %v3705
    %v3901 = vpop.xlane.xlu0 %3900
    %3902 = vadd.xlane.f32.xlu0 %v3706
    %v3903 = vpop.xlane.xlu0 %3902
    %3904 = vadd.xlane.f32.xlu0 %v3707
    %v3905 = vpop.xlane.xlu0 %3904
    %3906 = vadd.xlane.f32.xlu0 %v3708
    %v3907 = vpop.xlane.xlu0 %3906
    %3908 = vadd.xlane.f32.xlu0 %v3709
    %v3909 = vpop.xlane.xlu0 %3908
    %3910 = vadd.xlane.f32.xlu0 %v3710
    %v3911 = vpop.xlane.xlu0 %3910
    %3912 = vadd.xlane.f32.xlu0 %v3711
    %v3913 = vpop.xlane.xlu0 %3912
    %3914 = vadd.xlane.f32.xlu0 %v3712
    %v3915 = vpop.xlane.xlu0 %3914
    %3916 = vadd.xlane.f32.xlu0 %v3713
    %v3917 = vpop.xlane.xlu0 %3916
    %3918 = vadd.xlane.f32.xlu0 %v3714
    %v3919 = vpop.xlane.xlu0 %3918
    %3920 = vadd.xlane.f32.xlu0 %v3715
    %v3921 = vpop.xlane.xlu0 %3920
    %3922 = vadd.xlane.f32.xlu0 %v3716
    %v3923 = vpop.xlane.xlu0 %3922
    %3924 = vadd.xlane.f32.xlu0 %v3717
    %v3925 = vpop.xlane.xlu0 %3924
    %3926 = vadd.xlane.f32.xlu0 %v3718
    %v3927 = vpop.xlane.xlu0 %3926
    %3928 = vadd.xlane.f32.xlu0 %v3719
    %v3929 = vpop.xlane.xlu0 %3928
    %3930 = vadd.xlane.f32.xlu0 %v3720
    %v3931 = vpop.xlane.xlu0 %3930
    %3932 = vadd.xlane.f32.xlu0 %v3721
    %v3933 = vpop.xlane.xlu0 %3932
    %3934 = vadd.xlane.f32.xlu0 %v3722
    %v3935 = vpop.xlane.xlu0 %3934
    %3936 = vadd.xlane.f32.xlu0 %v3723
    %v3937 = vpop.xlane.xlu0 %3936
    %3938 = vadd.xlane.f32.xlu0 %v3724
    %v3939 = vpop.xlane.xlu0 %3938
    %3940 = vadd.xlane.f32.xlu0 %v3725
    %v3941 = vpop.xlane.xlu0 %3940
    %3942 = vadd.xlane.f32.xlu0 %v3726
    %v3943 = vpop.xlane.xlu0 %3942
    %3944 = vadd.xlane.f32.xlu0 %v3727
    %v3945 = vpop.xlane.xlu0 %3944
    %3946 = vadd.xlane.f32.xlu0 %v3728
    %v3947 = vpop.xlane.xlu0 %3946
    %3948 = vadd.xlane.f32.xlu0 %v3729
    %v3949 = vpop.xlane.xlu0 %3948
    %3950 = vadd.xlane.f32.xlu0 %v3730
    %v3951 = vpop.xlane.xlu0 %3950
    %3952 = vadd.xlane.f32.xlu0 %v3731
    %v3953 = vpop.xlane.xlu0 %3952
    %3954 = vadd.xlane.f32.xlu0 %v3732
    %v3955 = vpop.xlane.xlu0 %3954
    %3956 = vadd.xlane.f32.xlu0 %v3733
    %v3957 = vpop.xlane.xlu0 %3956
    %3958 = vadd.xlane.f32.xlu0 %v3734
    %v3959 = vpop.xlane.xlu0 %3958
    %3960 = vadd.xlane.f32.xlu0 %v3735
    %v3961 = vpop.xlane.xlu0 %3960
    %3962 = vadd.xlane.f32.xlu0 %v3736
    %v3963 = vpop.xlane.xlu0 %3962
    %3964 = vadd.xlane.f32.xlu0 %v3737
    %v3965 = vpop.xlane.xlu0 %3964
    %3966 = vadd.xlane.f32.xlu0 %v3738
    %v3967 = vpop.xlane.xlu0 %3966
    %3968 = vadd.xlane.f32.xlu0 %v3739
    %v3969 = vpop.xlane.xlu0 %3968
    %3970 = vadd.xlane.f32.xlu0 %v3740
    %v3971 = vpop.xlane.xlu0 %3970
    %3972 = vadd.xlane.f32.xlu0 %v3741
    %v3973 = vpop.xlane.xlu0 %3972
    %3974 = vadd.xlane.f32.xlu0 %v3742
    %v3975 = vpop.xlane.xlu0 %3974
    %3976 = vadd.xlane.f32.xlu0 %v3743
    %v3977 = vpop.xlane.xlu0 %3976
    %3978 = vadd.xlane.f32.xlu0 %v3744
    %v3979 = vpop.xlane.xlu0 %3978
    %3980 = vadd.xlane.f32.xlu0 %v3745
    %v3981 = vpop.xlane.xlu0 %3980
    %3982 = vadd.xlane.f32.xlu0 %v3746
    %v3983 = vpop.xlane.xlu0 %3982
    %3984 = vadd.xlane.f32.xlu0 %v3747
    %v3985 = vpop.xlane.xlu0 %3984
    %3986 = vadd.xlane.f32.xlu0 %v3748
    %v3987 = vpop.xlane.xlu0 %3986
    %3988 = vadd.xlane.f32.xlu0 %v3749
    %v3989 = vpop.xlane.xlu0 %3988
    %3990 = vadd.xlane.f32.xlu0 %v3750
    %v3991 = vpop.xlane.xlu0 %3990
    %3992 = vadd.xlane.f32.xlu0 %v3751
    %v3993 = vpop.xlane.xlu0 %3992
    %3994 = vadd.xlane.f32.xlu0 %v3752
    %v3995 = vpop.xlane.xlu0 %3994
    %3996 = vadd.xlane.f32.xlu0 %v3753
    %v3997 = vpop.xlane.xlu0 %3996
    %3998 = vadd.xlane.f32.xlu0 %v3754
    %v3999 = vpop.xlane.xlu0 %3998
    %4000 = vadd.xlane.f32.xlu0 %v3755
    %v4001 = vpop.xlane.xlu0 %4000
    %4002 = vadd.xlane.f32.xlu0 %v3756
    %v4003 = vpop.xlane.xlu0 %4002
    %4004 = vadd.xlane.f32.xlu0 %v3757
    %v4005 = vpop.xlane.xlu0 %4004
    %4006 = vadd.xlane.f32.xlu0 %v3758
    %v4007 = vpop.xlane.xlu0 %4006
    %4008 = vadd.xlane.f32.xlu0 %v3759
    %v4009 = vpop.xlane.xlu0 %4008
    %4010 = vadd.xlane.f32.xlu0 %v3760
    %v4011 = vpop.xlane.xlu0 %4010
    %4012 = vadd.xlane.f32.xlu0 %v3761
    %v4013 = vpop.xlane.xlu0 %4012
    %4014 = vadd.xlane.f32.xlu0 %v3762
    %v4015 = vpop.xlane.xlu0 %4014
    %4016 = vadd.xlane.f32.xlu0 %v3763
    %v4017 = vpop.xlane.xlu0 %4016
    %4018 = vadd.xlane.f32.xlu0 %v3764
    %v4019 = vpop.xlane.xlu0 %4018
    %4020 = vadd.xlane.f32.xlu0 %v3765
    %v4021 = vpop.xlane.xlu0 %4020
    %4022 = vadd.xlane.f32.xlu0 %v3766
    %v4023 = vpop.xlane.xlu0 %4022
    %4024 = vadd.xlane.f32.xlu0 %v3767
    %v4025 = vpop.xlane.xlu0 %4024
    %4026 = vadd.xlane.f32.xlu0 %v3768
    %v4027 = vpop.xlane.xlu0 %4026
    %4028 = vadd.xlane.f32.xlu0 %v3769
    %v4029 = vpop.xlane.xlu0 %4028
    %4030 = vadd.xlane.f32.xlu0 %v3770
    %v4031 = vpop.xlane.xlu0 %4030
    %4032 = vadd.xlane.f32.xlu0 %v3771
    %v4033 = vpop.xlane.xlu0 %4032
    %4034 = vadd.xlane.f32.xlu0 %v3772
    %v4035 = vpop.xlane.xlu0 %4034
    %4036 = vadd.xlane.f32.xlu0 %v3773
    %v4037 = vpop.xlane.xlu0 %4036
    %4038 = vadd.xlane.f32.xlu0 %v3774
    %v4039 = vpop.xlane.xlu0 %4038
    %4040 = vadd.xlane.f32.xlu0 %v3775
    %v4041 = vpop.xlane.xlu0 %4040
    %4042 = vadd.xlane.f32.xlu0 %v3776
    %v4043 = vpop.xlane.xlu0 %4042
    %4044 = vadd.xlane.f32.xlu0 %v3777
    %v4045 = vpop.xlane.xlu0 %4044
    %4046 = vadd.xlane.f32.xlu0 %v3778
    %v4047 = vpop.xlane.xlu0 %4046
    %4048 = vadd.xlane.f32.xlu0 %v3779
    %v4049 = vpop.xlane.xlu0 %4048
    %4050 = vadd.xlane.f32.xlu0 %v3780
    %v4051 = vpop.xlane.xlu0 %4050
    %4052 = vadd.xlane.f32.xlu0 %v3781
    %v4053 = vpop.xlane.xlu0 %4052
    %v4182 = vlaneseq
    %v4183 = vshrl.u32 %v4182, 7
    %v4184 = vsub.s32 %v582, %v4183
    %v4185 = vrot.slane %v3799, %v4184
    %v4186 = vlaneseq
    %v4187 = vshrl.u32 %v4186, 7
    %v4188 = vsub.s32 %v582, %v4187
    %v4189 = vrot.slane %v3801, %v4188
    %v4190 = vlaneseq
    %v4191 = vshrl.u32 %v4190, 7
    %v4192 = vsub.s32 %v582, %v4191
    %v4193 = vrot.slane %v3803, %v4192
    %v4194 = vlaneseq
    %v4195 = vshrl.u32 %v4194, 7
    %v4196 = vsub.s32 %v582, %v4195
    %v4197 = vrot.slane %v3805, %v4196
    %v4198 = vlaneseq
    %v4199 = vshrl.u32 %v4198, 7
    %v4200 = vsub.s32 %v582, %v4199
    %v4201 = vrot.slane %v3807, %v4200
    %v4202 = vlaneseq
    %v4203 = vshrl.u32 %v4202, 7
    %v4204 = vsub.s32 %v582, %v4203
    %v4205 = vrot.slane %v3809, %v4204
    %v4206 = vlaneseq
    %v4207 = vshrl.u32 %v4206, 7
    %v4208 = vsub.s32 %v582, %v4207
    %v4209 = vrot.slane %v3811, %v4208
    %v4210 = vlaneseq
    %v4211 = vshrl.u32 %v4210, 7
    %v4212 = vsub.s32 %v582, %v4211
    %v4213 = vrot.slane %v3813, %v4212
    %v4214 = vlaneseq
    %v4215 = vshrl.u32 %v4214, 7
    %v4216 = vsub.s32 %v582, %v4215
    %v4217 = vrot.slane %v3815, %v4216
    %v4218 = vlaneseq
    %v4219 = vshrl.u32 %v4218, 7
    %v4220 = vsub.s32 %v582, %v4219
    %v4221 = vrot.slane %v3817, %v4220
    %v4222 = vlaneseq
    %v4223 = vshrl.u32 %v4222, 7
    %v4224 = vsub.s32 %v582, %v4223
    %v4225 = vrot.slane %v3819, %v4224
    %v4226 = vlaneseq
    %v4227 = vshrl.u32 %v4226, 7
    %v4228 = vsub.s32 %v582, %v4227
    %v4229 = vrot.slane %v3821, %v4228
    %v4230 = vlaneseq
    %v4231 = vshrl.u32 %v4230, 7
    %v4232 = vsub.s32 %v582, %v4231
    %v4233 = vrot.slane %v3823, %v4232
    %v4234 = vlaneseq
    %v4235 = vshrl.u32 %v4234, 7
    %v4236 = vsub.s32 %v582, %v4235
    %v4237 = vrot.slane %v3825, %v4236
    %v4238 = vlaneseq
    %v4239 = vshrl.u32 %v4238, 7
    %v4240 = vsub.s32 %v582, %v4239
    %v4241 = vrot.slane %v3827, %v4240
    %v4242 = vlaneseq
    %v4243 = vshrl.u32 %v4242, 7
    %v4244 = vsub.s32 %v582, %v4243
    %v4245 = vrot.slane %v3829, %v4244
    %v4246 = vlaneseq
    %v4247 = vshrl.u32 %v4246, 7
    %v4248 = vsub.s32 %v582, %v4247
    %v4249 = vrot.slane %v3831, %v4248
    %v4250 = vlaneseq
    %v4251 = vshrl.u32 %v4250, 7
    %v4252 = vsub.s32 %v582, %v4251
    %v4253 = vrot.slane %v3833, %v4252
    %v4254 = vlaneseq
    %v4255 = vshrl.u32 %v4254, 7
    %v4256 = vsub.s32 %v582, %v4255
    %v4257 = vrot.slane %v3835, %v4256
    %v4258 = vlaneseq
    %v4259 = vshrl.u32 %v4258, 7
    %v4260 = vsub.s32 %v582, %v4259
    %v4261 = vrot.slane %v3837, %v4260
    %v4262 = vlaneseq
    %v4263 = vshrl.u32 %v4262, 7
    %v4264 = vsub.s32 %v582, %v4263
    %v4265 = vrot.slane %v3839, %v4264
    %v4266 = vlaneseq
    %v4267 = vshrl.u32 %v4266, 7
    %v4268 = vsub.s32 %v582, %v4267
    %v4269 = vrot.slane %v3841, %v4268
    %v4270 = vlaneseq
    %v4271 = vshrl.u32 %v4270, 7
    %v4272 = vsub.s32 %v582, %v4271
    %v4273 = vrot.slane %v3843, %v4272
    %v4274 = vlaneseq
    %v4275 = vshrl.u32 %v4274, 7
    %v4276 = vsub.s32 %v582, %v4275
    %v4277 = vrot.slane %v3845, %v4276
    %v4278 = vlaneseq
    %v4279 = vshrl.u32 %v4278, 7
    %v4280 = vsub.s32 %v582, %v4279
    %v4281 = vrot.slane %v3847, %v4280
    %v4282 = vlaneseq
    %v4283 = vshrl.u32 %v4282, 7
    %v4284 = vsub.s32 %v582, %v4283
    %v4285 = vrot.slane %v3849, %v4284
    %v4286 = vlaneseq
    %v4287 = vshrl.u32 %v4286, 7
    %v4288 = vsub.s32 %v582, %v4287
    %v4289 = vrot.slane %v3851, %v4288
    %v4290 = vlaneseq
    %v4291 = vshrl.u32 %v4290, 7
    %v4292 = vsub.s32 %v582, %v4291
    %v4293 = vrot.slane %v3853, %v4292
    %v4294 = vlaneseq
    %v4295 = vshrl.u32 %v4294, 7
    %v4296 = vsub.s32 %v582, %v4295
    %v4297 = vrot.slane %v3855, %v4296
    %v4298 = vlaneseq
    %v4299 = vshrl.u32 %v4298, 7
    %v4300 = vsub.s32 %v582, %v4299
    %v4301 = vrot.slane %v3857, %v4300
    %v4302 = vlaneseq
    %v4303 = vshrl.u32 %v4302, 7
    %v4304 = vsub.s32 %v582, %v4303
    %v4305 = vrot.slane %v3859, %v4304
    %v4306 = vlaneseq
    %v4307 = vshrl.u32 %v4306, 7
    %v4308 = vsub.s32 %v582, %v4307
    %v4309 = vrot.slane %v3861, %v4308
    %v4310 = vlaneseq
    %v4311 = vshrl.u32 %v4310, 7
    %v4312 = vsub.s32 %v582, %v4311
    %v4313 = vrot.slane %v3863, %v4312
    %v4314 = vlaneseq
    %v4315 = vshrl.u32 %v4314, 7
    %v4316 = vsub.s32 %v582, %v4315
    %v4317 = vrot.slane %v3865, %v4316
    %v4318 = vlaneseq
    %v4319 = vshrl.u32 %v4318, 7
    %v4320 = vsub.s32 %v582, %v4319
    %v4321 = vrot.slane %v3867, %v4320
    %v4322 = vlaneseq
    %v4323 = vshrl.u32 %v4322, 7
    %v4324 = vsub.s32 %v582, %v4323
    %v4325 = vrot.slane %v3869, %v4324
    %v4326 = vlaneseq
    %v4327 = vshrl.u32 %v4326, 7
    %v4328 = vsub.s32 %v582, %v4327
    %v4329 = vrot.slane %v3871, %v4328
    %v4330 = vlaneseq
    %v4331 = vshrl.u32 %v4330, 7
    %v4332 = vsub.s32 %v582, %v4331
    %v4333 = vrot.slane %v3873, %v4332
    %v4334 = vlaneseq
    %v4335 = vshrl.u32 %v4334, 7
    %v4336 = vsub.s32 %v582, %v4335
    %v4337 = vrot.slane %v3875, %v4336
    %v4338 = vlaneseq
    %v4339 = vshrl.u32 %v4338, 7
    %v4340 = vsub.s32 %v582, %v4339
    %v4341 = vrot.slane %v3877, %v4340
    %v4342 = vlaneseq
    %v4343 = vshrl.u32 %v4342, 7
    %v4344 = vsub.s32 %v582, %v4343
    %v4345 = vrot.slane %v3879, %v4344
    %v4346 = vlaneseq
    %v4347 = vshrl.u32 %v4346, 7
    %v4348 = vsub.s32 %v582, %v4347
    %v4349 = vrot.slane %v3881, %v4348
    %v4350 = vlaneseq
    %v4351 = vshrl.u32 %v4350, 7
    %v4352 = vsub.s32 %v582, %v4351
    %v4353 = vrot.slane %v3883, %v4352
    %v4354 = vlaneseq
    %v4355 = vshrl.u32 %v4354, 7
    %v4356 = vsub.s32 %v582, %v4355
    %v4357 = vrot.slane %v3885, %v4356
    %v4358 = vlaneseq
    %v4359 = vshrl.u32 %v4358, 7
    %v4360 = vsub.s32 %v582, %v4359
    %v4361 = vrot.slane %v3887, %v4360
    %v4362 = vlaneseq
    %v4363 = vshrl.u32 %v4362, 7
    %v4364 = vsub.s32 %v582, %v4363
    %v4365 = vrot.slane %v3889, %v4364
    %v4366 = vlaneseq
    %v4367 = vshrl.u32 %v4366, 7
    %v4368 = vsub.s32 %v582, %v4367
    %v4369 = vrot.slane %v3891, %v4368
    %v4370 = vlaneseq
    %v4371 = vshrl.u32 %v4370, 7
    %v4372 = vsub.s32 %v582, %v4371
    %v4373 = vrot.slane %v3893, %v4372
    %v4374 = vlaneseq
    %v4375 = vshrl.u32 %v4374, 7
    %v4376 = vsub.s32 %v582, %v4375
    %v4377 = vrot.slane %v3895, %v4376
    %v4378 = vlaneseq
    %v4379 = vshrl.u32 %v4378, 7
    %v4380 = vsub.s32 %v582, %v4379
    %v4381 = vrot.slane %v3897, %v4380
    %v4382 = vlaneseq
    %v4383 = vshrl.u32 %v4382, 7
    %v4384 = vsub.s32 %v582, %v4383
    %v4385 = vrot.slane %v3899, %v4384
    %v4386 = vlaneseq
    %v4387 = vshrl.u32 %v4386, 7
    %v4388 = vsub.s32 %v582, %v4387
    %v4389 = vrot.slane %v3901, %v4388
    %v4390 = vlaneseq
    %v4391 = vshrl.u32 %v4390, 7
    %v4392 = vsub.s32 %v582, %v4391
    %v4393 = vrot.slane %v3903, %v4392
    %v4394 = vlaneseq
    %v4395 = vshrl.u32 %v4394, 7
    %v4396 = vsub.s32 %v582, %v4395
    %v4397 = vrot.slane %v3905, %v4396
    %v4398 = vlaneseq
    %v4399 = vshrl.u32 %v4398, 7
    %v4400 = vsub.s32 %v582, %v4399
    %v4401 = vrot.slane %v3907, %v4400
    %v4402 = vlaneseq
    %v4403 = vshrl.u32 %v4402, 7
    %v4404 = vsub.s32 %v582, %v4403
    %v4405 = vrot.slane %v3909, %v4404
    %v4406 = vlaneseq
    %v4407 = vshrl.u32 %v4406, 7
    %v4408 = vsub.s32 %v582, %v4407
    %v4409 = vrot.slane %v3911, %v4408
    %v4410 = vlaneseq
    %v4411 = vshrl.u32 %v4410, 7
    %v4412 = vsub.s32 %v582, %v4411
    %v4413 = vrot.slane %v3913, %v4412
    %v4414 = vlaneseq
    %v4415 = vshrl.u32 %v4414, 7
    %v4416 = vsub.s32 %v582, %v4415
    %v4417 = vrot.slane %v3915, %v4416
    %v4418 = vlaneseq
    %v4419 = vshrl.u32 %v4418, 7
    %v4420 = vsub.s32 %v582, %v4419
    %v4421 = vrot.slane %v3917, %v4420
    %v4422 = vlaneseq
    %v4423 = vshrl.u32 %v4422, 7
    %v4424 = vsub.s32 %v582, %v4423
    %v4425 = vrot.slane %v3919, %v4424
    %v4426 = vlaneseq
    %v4427 = vshrl.u32 %v4426, 7
    %v4428 = vsub.s32 %v582, %v4427
    %v4429 = vrot.slane %v3921, %v4428
    %v4430 = vlaneseq
    %v4431 = vshrl.u32 %v4430, 7
    %v4432 = vsub.s32 %v582, %v4431
    %v4433 = vrot.slane %v3923, %v4432
    %v4434 = vlaneseq
    %v4435 = vshrl.u32 %v4434, 7
    %v4436 = vsub.s32 %v582, %v4435
    %v4437 = vrot.slane %v3925, %v4436
    %v4438 = vlaneseq
    %v4439 = vshrl.u32 %v4438, 7
    %v4440 = vsub.s32 %v582, %v4439
    %v4441 = vrot.slane %v3927, %v4440
    %v4442 = vlaneseq
    %v4443 = vshrl.u32 %v4442, 7
    %v4444 = vsub.s32 %v582, %v4443
    %v4445 = vrot.slane %v3929, %v4444
    %v4446 = vlaneseq
    %v4447 = vshrl.u32 %v4446, 7
    %v4448 = vsub.s32 %v582, %v4447
    %v4449 = vrot.slane %v3931, %v4448
    %v4450 = vlaneseq
    %v4451 = vshrl.u32 %v4450, 7
    %v4452 = vsub.s32 %v582, %v4451
    %v4453 = vrot.slane %v3933, %v4452
    %v4454 = vlaneseq
    %v4455 = vshrl.u32 %v4454, 7
    %v4456 = vsub.s32 %v582, %v4455
    %v4457 = vrot.slane %v3935, %v4456
    %v4458 = vlaneseq
    %v4459 = vshrl.u32 %v4458, 7
    %v4460 = vsub.s32 %v582, %v4459
    %v4461 = vrot.slane %v3937, %v4460
    %v4462 = vlaneseq
    %v4463 = vshrl.u32 %v4462, 7
    %v4464 = vsub.s32 %v582, %v4463
    %v4465 = vrot.slane %v3939, %v4464
    %v4466 = vlaneseq
    %v4467 = vshrl.u32 %v4466, 7
    %v4468 = vsub.s32 %v582, %v4467
    %v4469 = vrot.slane %v3941, %v4468
    %v4470 = vlaneseq
    %v4471 = vshrl.u32 %v4470, 7
    %v4472 = vsub.s32 %v582, %v4471
    %v4473 = vrot.slane %v3943, %v4472
    %v4474 = vlaneseq
    %v4475 = vshrl.u32 %v4474, 7
    %v4476 = vsub.s32 %v582, %v4475
    %v4477 = vrot.slane %v3945, %v4476
    %v4478 = vlaneseq
    %v4479 = vshrl.u32 %v4478, 7
    %v4480 = vsub.s32 %v582, %v4479
    %v4481 = vrot.slane %v3947, %v4480
    %v4482 = vlaneseq
    %v4483 = vshrl.u32 %v4482, 7
    %v4484 = vsub.s32 %v582, %v4483
    %v4485 = vrot.slane %v3949, %v4484
    %v4486 = vlaneseq
    %v4487 = vshrl.u32 %v4486, 7
    %v4488 = vsub.s32 %v582, %v4487
    %v4489 = vrot.slane %v3951, %v4488
    %v4490 = vlaneseq
    %v4491 = vshrl.u32 %v4490, 7
    %v4492 = vsub.s32 %v582, %v4491
    %v4493 = vrot.slane %v3953, %v4492
    %v4494 = vlaneseq
    %v4495 = vshrl.u32 %v4494, 7
    %v4496 = vsub.s32 %v582, %v4495
    %v4497 = vrot.slane %v3955, %v4496
    %v4498 = vlaneseq
    %v4499 = vshrl.u32 %v4498, 7
    %v4500 = vsub.s32 %v582, %v4499
    %v4501 = vrot.slane %v3957, %v4500
    %v4502 = vlaneseq
    %v4503 = vshrl.u32 %v4502, 7
    %v4504 = vsub.s32 %v582, %v4503
    %v4505 = vrot.slane %v3959, %v4504
    %v4506 = vlaneseq
    %v4507 = vshrl.u32 %v4506, 7
    %v4508 = vsub.s32 %v582, %v4507
    %v4509 = vrot.slane %v3961, %v4508
    %v4510 = vlaneseq
    %v4511 = vshrl.u32 %v4510, 7
    %v4512 = vsub.s32 %v582, %v4511
    %v4513 = vrot.slane %v3963, %v4512
    %v4514 = vlaneseq
    %v4515 = vshrl.u32 %v4514, 7
    %v4516 = vsub.s32 %v582, %v4515
    %v4517 = vrot.slane %v3965, %v4516
    %v4518 = vlaneseq
    %v4519 = vshrl.u32 %v4518, 7
    %v4520 = vsub.s32 %v582, %v4519
    %v4521 = vrot.slane %v3967, %v4520
    %v4522 = vlaneseq
    %v4523 = vshrl.u32 %v4522, 7
    %v4524 = vsub.s32 %v582, %v4523
    %v4525 = vrot.slane %v3969, %v4524
    %v4526 = vlaneseq
    %v4527 = vshrl.u32 %v4526, 7
    %v4528 = vsub.s32 %v582, %v4527
    %v4529 = vrot.slane %v3971, %v4528
    %v4530 = vlaneseq
    %v4531 = vshrl.u32 %v4530, 7
    %v4532 = vsub.s32 %v582, %v4531
    %v4533 = vrot.slane %v3973, %v4532
    %v4534 = vlaneseq
    %v4535 = vshrl.u32 %v4534, 7
    %v4536 = vsub.s32 %v582, %v4535
    %v4537 = vrot.slane %v3975, %v4536
    %v4538 = vlaneseq
    %v4539 = vshrl.u32 %v4538, 7
    %v4540 = vsub.s32 %v582, %v4539
    %v4541 = vrot.slane %v3977, %v4540
    %v4542 = vlaneseq
    %v4543 = vshrl.u32 %v4542, 7
    %v4544 = vsub.s32 %v582, %v4543
    %v4545 = vrot.slane %v3979, %v4544
    %v4546 = vlaneseq
    %v4547 = vshrl.u32 %v4546, 7
    %v4548 = vsub.s32 %v582, %v4547
    %v4549 = vrot.slane %v3981, %v4548
    %v4550 = vlaneseq
    %v4551 = vshrl.u32 %v4550, 7
    %v4552 = vsub.s32 %v582, %v4551
    %v4553 = vrot.slane %v3983, %v4552
    %v4554 = vlaneseq
    %v4555 = vshrl.u32 %v4554, 7
    %v4556 = vsub.s32 %v582, %v4555
    %v4557 = vrot.slane %v3985, %v4556
    %v4558 = vlaneseq
    %v4559 = vshrl.u32 %v4558, 7
    %v4560 = vsub.s32 %v582, %v4559
    %v4561 = vrot.slane %v3987, %v4560
    %v4562 = vlaneseq
    %v4563 = vshrl.u32 %v4562, 7
    %v4564 = vsub.s32 %v582, %v4563
    %v4565 = vrot.slane %v3989, %v4564
    %v4566 = vlaneseq
    %v4567 = vshrl.u32 %v4566, 7
    %v4568 = vsub.s32 %v582, %v4567
    %v4569 = vrot.slane %v3991, %v4568
    %v4570 = vlaneseq
    %v4571 = vshrl.u32 %v4570, 7
    %v4572 = vsub.s32 %v582, %v4571
    %v4573 = vrot.slane %v3993, %v4572
    %v4574 = vlaneseq
    %v4575 = vshrl.u32 %v4574, 7
    %v4576 = vsub.s32 %v582, %v4575
    %v4577 = vrot.slane %v3995, %v4576
    %v4578 = vlaneseq
    %v4579 = vshrl.u32 %v4578, 7
    %v4580 = vsub.s32 %v582, %v4579
    %v4581 = vrot.slane %v3997, %v4580
    %v4582 = vlaneseq
    %v4583 = vshrl.u32 %v4582, 7
    %v4584 = vsub.s32 %v582, %v4583
    %v4585 = vrot.slane %v3999, %v4584
    %v4586 = vlaneseq
    %v4587 = vshrl.u32 %v4586, 7
    %v4588 = vsub.s32 %v582, %v4587
    %v4589 = vrot.slane %v4001, %v4588
    %v4590 = vlaneseq
    %v4591 = vshrl.u32 %v4590, 7
    %v4592 = vsub.s32 %v582, %v4591
    %v4593 = vrot.slane %v4003, %v4592
    %v4594 = vlaneseq
    %v4595 = vshrl.u32 %v4594, 7
    %v4596 = vsub.s32 %v582, %v4595
    %v4597 = vrot.slane %v4005, %v4596
    %v4598 = vlaneseq
    %v4599 = vshrl.u32 %v4598, 7
    %v4600 = vsub.s32 %v582, %v4599
    %v4601 = vrot.slane %v4007, %v4600
    %v4602 = vlaneseq
    %v4603 = vshrl.u32 %v4602, 7
    %v4604 = vsub.s32 %v582, %v4603
    %v4605 = vrot.slane %v4009, %v4604
    %v4606 = vlaneseq
    %v4607 = vshrl.u32 %v4606, 7
    %v4608 = vsub.s32 %v582, %v4607
    %v4609 = vrot.slane %v4011, %v4608
    %v4610 = vlaneseq
    %v4611 = vshrl.u32 %v4610, 7
    %v4612 = vsub.s32 %v582, %v4611
    %v4613 = vrot.slane %v4013, %v4612
    %v4614 = vlaneseq
    %v4615 = vshrl.u32 %v4614, 7
    %v4616 = vsub.s32 %v582, %v4615
    %v4617 = vrot.slane %v4015, %v4616
    %v4618 = vlaneseq
    %v4619 = vshrl.u32 %v4618, 7
    %v4620 = vsub.s32 %v582, %v4619
    %v4621 = vrot.slane %v4017, %v4620
    %v4622 = vlaneseq
    %v4623 = vshrl.u32 %v4622, 7
    %v4624 = vsub.s32 %v582, %v4623
    %v4625 = vrot.slane %v4019, %v4624
    %v4626 = vlaneseq
    %v4627 = vshrl.u32 %v4626, 7
    %v4628 = vsub.s32 %v582, %v4627
    %v4629 = vrot.slane %v4021, %v4628
    %v4630 = vlaneseq
    %v4631 = vshrl.u32 %v4630, 7
    %v4632 = vsub.s32 %v582, %v4631
    %v4633 = vrot.slane %v4023, %v4632
    %v4634 = vlaneseq
    %v4635 = vshrl.u32 %v4634, 7
    %v4636 = vsub.s32 %v582, %v4635
    %v4637 = vrot.slane %v4025, %v4636
    %v4638 = vlaneseq
    %v4639 = vshrl.u32 %v4638, 7
    %v4640 = vsub.s32 %v582, %v4639
    %v4641 = vrot.slane %v4027, %v4640
    %v4642 = vlaneseq
    %v4643 = vshrl.u32 %v4642, 7
    %v4644 = vsub.s32 %v582, %v4643
    %v4645 = vrot.slane %v4029, %v4644
    %v4646 = vlaneseq
    %v4647 = vshrl.u32 %v4646, 7
    %v4648 = vsub.s32 %v582, %v4647
    %v4649 = vrot.slane %v4031, %v4648
    %v4650 = vlaneseq
    %v4651 = vshrl.u32 %v4650, 7
    %v4652 = vsub.s32 %v582, %v4651
    %v4653 = vrot.slane %v4033, %v4652
    %v4654 = vlaneseq
    %v4655 = vshrl.u32 %v4654, 7
    %v4656 = vsub.s32 %v582, %v4655
    %v4657 = vrot.slane %v4035, %v4656
    %v4658 = vlaneseq
    %v4659 = vshrl.u32 %v4658, 7
    %v4660 = vsub.s32 %v582, %v4659
    %v4661 = vrot.slane %v4037, %v4660
    %v4662 = vlaneseq
    %v4663 = vshrl.u32 %v4662, 7
    %v4664 = vsub.s32 %v582, %v4663
    %v4665 = vrot.slane %v4039, %v4664
    %v4666 = vlaneseq
    %v4667 = vshrl.u32 %v4666, 7
    %v4668 = vsub.s32 %v582, %v4667
    %v4669 = vrot.slane %v4041, %v4668
    %v4670 = vlaneseq
    %v4671 = vshrl.u32 %v4670, 7
    %v4672 = vsub.s32 %v582, %v4671
    %v4673 = vrot.slane %v4043, %v4672
    %v4674 = vlaneseq
    %v4675 = vshrl.u32 %v4674, 7
    %v4676 = vsub.s32 %v582, %v4675
    %v4677 = vrot.slane %v4045, %v4676
    %v4678 = vlaneseq
    %v4679 = vshrl.u32 %v4678, 7
    %v4680 = vsub.s32 %v582, %v4679
    %v4681 = vrot.slane %v4047, %v4680
    %v4682 = vlaneseq
    %v4683 = vshrl.u32 %v4682, 7
    %v4684 = vsub.s32 %v582, %v4683
    %v4685 = vrot.slane %v4049, %v4684
    %v4686 = vlaneseq
    %v4687 = vshrl.u32 %v4686, 7
    %v4688 = vsub.s32 %v582, %v4687
    %v4689 = vrot.slane %v4051, %v4688
    %v4690 = vlaneseq
    %v4691 = vshrl.u32 %v4690, 7
    %v4692 = vsub.s32 %v582, %v4691
    %v4693 = vrot.slane %v4053, %v4692
    %vm4694 = vcmask 1041409
    %v4695 = vsel %vm4694, %v4189, %v4185
    %vm4696 = vcmask 1042434
    %v4697 = vsel %vm4696, %v4193, %v4695
    %vm4698 = vcmask 1043459
    %v4699 = vsel %vm4698, %v4197, %v4697
    %vm4700 = vcmask 1044484
    %v4701 = vsel %vm4700, %v4201, %v4699
    %vm4702 = vcmask 1045509
    %v4703 = vsel %vm4702, %v4205, %v4701
    %vm4704 = vcmask 1046534
    %v4705 = vsel %vm4704, %v4209, %v4703
    %vm4706 = vcmask 1047559
    %v4707 = vsel %vm4706, %v4213, %v4705
    %v4708 = vsel %vm4694, %v4221, %v4217
    %v4709 = vsel %vm4696, %v4225, %v4708
    %v4710 = vsel %vm4698, %v4229, %v4709
    %v4711 = vsel %vm4700, %v4233, %v4710
    %v4712 = vsel %vm4702, %v4237, %v4711
    %v4713 = vsel %vm4704, %v4241, %v4712
    %v4714 = vsel %vm4706, %v4245, %v4713
    %v4715 = vsel %vm4694, %v4253, %v4249
    %v4716 = vsel %vm4696, %v4257, %v4715
    %v4717 = vsel %vm4698, %v4261, %v4716
    %v4718 = vsel %vm4700, %v4265, %v4717
    %v4719 = vsel %vm4702, %v4269, %v4718
    %v4720 = vsel %vm4704, %v4273, %v4719
    %v4721 = vsel %vm4706, %v4277, %v4720
    %v4722 = vsel %vm4694, %v4285, %v4281
    %v4723 = vsel %vm4696, %v4289, %v4722
    %v4724 = vsel %vm4698, %v4293, %v4723
    %v4725 = vsel %vm4700, %v4297, %v4724
    %v4726 = vsel %vm4702, %v4301, %v4725
    %v4727 = vsel %vm4704, %v4305, %v4726
    %v4728 = vsel %vm4706, %v4309, %v4727
    %v4729 = vsel %vm4694, %v4317, %v4313
    %v4730 = vsel %vm4696, %v4321, %v4729
    %v4731 = vsel %vm4698, %v4325, %v4730
    %v4732 = vsel %vm4700, %v4329, %v4731
    %v4733 = vsel %vm4702, %v4333, %v4732
    %v4734 = vsel %vm4704, %v4337, %v4733
    %v4735 = vsel %vm4706, %v4341, %v4734
    %v4736 = vsel %vm4694, %v4349, %v4345
    %v4737 = vsel %vm4696, %v4353, %v4736
    %v4738 = vsel %vm4698, %v4357, %v4737
    %v4739 = vsel %vm4700, %v4361, %v4738
    %v4740 = vsel %vm4702, %v4365, %v4739
    %v4741 = vsel %vm4704, %v4369, %v4740
    %v4742 = vsel %vm4706, %v4373, %v4741
    %v4743 = vsel %vm4694, %v4381, %v4377
    %v4744 = vsel %vm4696, %v4385, %v4743
    %v4745 = vsel %vm4698, %v4389, %v4744
    %v4746 = vsel %vm4700, %v4393, %v4745
    %v4747 = vsel %vm4702, %v4397, %v4746
    %v4748 = vsel %vm4704, %v4401, %v4747
    %v4749 = vsel %vm4706, %v4405, %v4748
    %v4750 = vsel %vm4694, %v4413, %v4409
    %v4751 = vsel %vm4696, %v4417, %v4750
    %v4752 = vsel %vm4698, %v4421, %v4751
    %v4753 = vsel %vm4700, %v4425, %v4752
    %v4754 = vsel %vm4702, %v4429, %v4753
    %v4755 = vsel %vm4704, %v4433, %v4754
    %v4756 = vsel %vm4706, %v4437, %v4755
    %v4757 = vsel %vm4694, %v4445, %v4441
    %v4758 = vsel %vm4696, %v4449, %v4757
    %v4759 = vsel %vm4698, %v4453, %v4758
    %v4760 = vsel %vm4700, %v4457, %v4759
    %v4761 = vsel %vm4702, %v4461, %v4760
    %v4762 = vsel %vm4704, %v4465, %v4761
    %v4763 = vsel %vm4706, %v4469, %v4762
    %v4764 = vsel %vm4694, %v4477, %v4473
    %v4765 = vsel %vm4696, %v4481, %v4764
    %v4766 = vsel %vm4698, %v4485, %v4765
    %v4767 = vsel %vm4700, %v4489, %v4766
    %v4768 = vsel %vm4702, %v4493, %v4767
    %v4769 = vsel %vm4704, %v4497, %v4768
    %v4770 = vsel %vm4706, %v4501, %v4769
    %v4771 = vsel %vm4694, %v4509, %v4505
    %v4772 = vsel %vm4696, %v4513, %v4771
    %v4773 = vsel %vm4698, %v4517, %v4772
    %v4774 = vsel %vm4700, %v4521, %v4773
    %v4775 = vsel %vm4702, %v4525, %v4774
    %v4776 = vsel %vm4704, %v4529, %v4775
    %v4777 = vsel %vm4706, %v4533, %v4776
    %v4778 = vsel %vm4694, %v4541, %v4537
    %v4779 = vsel %vm4696, %v4545, %v4778
    %v4780 = vsel %vm4698, %v4549, %v4779
    %v4781 = vsel %vm4700, %v4553, %v4780
    %v4782 = vsel %vm4702, %v4557, %v4781
    %v4783 = vsel %vm4704, %v4561, %v4782
    %v4784 = vsel %vm4706, %v4565, %v4783
    %v4785 = vsel %vm4694, %v4573, %v4569
    %v4786 = vsel %vm4696, %v4577, %v4785
    %v4787 = vsel %vm4698, %v4581, %v4786
    %v4788 = vsel %vm4700, %v4585, %v4787
    %v4789 = vsel %vm4702, %v4589, %v4788
    %v4790 = vsel %vm4704, %v4593, %v4789
    %v4791 = vsel %vm4706, %v4597, %v4790
    %v4792 = vsel %vm4694, %v4605, %v4601
    %v4793 = vsel %vm4696, %v4609, %v4792
    %v4794 = vsel %vm4698, %v4613, %v4793
    %v4795 = vsel %vm4700, %v4617, %v4794
    %v4796 = vsel %vm4702, %v4621, %v4795
    %v4797 = vsel %vm4704, %v4625, %v4796
    %v4798 = vsel %vm4706, %v4629, %v4797
    %v4799 = vsel %vm4694, %v4637, %v4633
    %v4800 = vsel %vm4696, %v4641, %v4799
    %v4801 = vsel %vm4698, %v4645, %v4800
    %v4802 = vsel %vm4700, %v4649, %v4801
    %v4803 = vsel %vm4702, %v4653, %v4802
    %v4804 = vsel %vm4704, %v4657, %v4803
    %v4805 = vsel %vm4706, %v4661, %v4804
    %v4806 = vsel %vm4694, %v4669, %v4665
    %v4807 = vsel %vm4696, %v4673, %v4806
    %v4808 = vsel %vm4698, %v4677, %v4807
    %v4809 = vsel %vm4700, %v4681, %v4808
    %v4810 = vsel %vm4702, %v4685, %v4809
    %v4811 = vsel %vm4704, %v4689, %v4810
    %v4812 = vsel %vm4706, %v4693, %v4811
    %v4829 = vadd.f32 %v3782, %v4707
    %v4830 = vadd.f32 %v3783, %v4714
    %v4831 = vadd.f32 %v3784, %v4721
    %v4832 = vadd.f32 %v3785, %v4728
    %v4833 = vadd.f32 %v3786, %v4735
    %v4834 = vadd.f32 %v3787, %v4742
    %v4835 = vadd.f32 %v3788, %v4749
    %v4836 = vadd.f32 %v3789, %v4756
    %v4837 = vadd.f32 %v3790, %v4763
    %v4838 = vadd.f32 %v3791, %v4770
    %v4839 = vadd.f32 %v3792, %v4777
    %v4840 = vadd.f32 %v3793, %v4784
    %v4841 = vadd.f32 %v3794, %v4791
    %v4842 = vadd.f32 %v3795, %v4798
    %v4843 = vadd.f32 %v3796, %v4805
    %v4844 = vadd.f32 %v3797, %v4812
    %4845 = vst.msk [vmem:[#allocation4] sm:$0xff] %vm2428, %v4829
    %4846 = vst.msk [vmem:[#allocation4 + $0x8] sm:$0xff] %vm2428, %v4830
    %4847 = vst.msk [vmem:[#allocation4 + $0x10] sm:$0xff] %vm2428, %v4831
    %4848 = vst.msk [vmem:[#allocation4 + $0x18] sm:$0xff] %vm2428, %v4832
    %4849 = vst.msk [vmem:[#allocation4 + $0x20] sm:$0xff] %vm2428, %v4833
    %4850 = vst.msk [vmem:[#allocation4 + $0x28] sm:$0xff] %vm2428, %v4834
    %4851 = vst.msk [vmem:[#allocation4 + $0x30] sm:$0xff] %vm2428, %v4835
    %4852 = vst.msk [vmem:[#allocation4 + $0x38] sm:$0xff] %vm2428, %v4836
    %4853 = vst.msk [vmem:[#allocation4 + $0x40] sm:$0xff] %vm2428, %v4837
    %4854 = vst.msk [vmem:[#allocation4 + $0x48] sm:$0xff] %vm2428, %v4838
    %4855 = vst.msk [vmem:[#allocation4 + $0x50] sm:$0xff] %vm2428, %v4839
    %4856 = vst.msk [vmem:[#allocation4 + $0x58] sm:$0xff] %vm2428, %v4840
    %4857 = vst.msk [vmem:[#allocation4 + $0x60] sm:$0xff] %vm2428, %v4841
    %4858 = vst.msk [vmem:[#allocation4 + $0x68] sm:$0xff] %vm2428, %v4842
    %4859 = vst.msk [vmem:[#allocation4 + $0x70] sm:$0xff] %vm2428, %v4843
    %4860 = vst.msk [vmem:[#allocation4 + $0x78] sm:$0xff] %vm2428, %v4844
    %v4861 = vld [vmem:[#allocation5] sm:$0xff]
    %v4862 = vld [vmem:[#allocation5 + $0x8] sm:$0xff]
    %v4863 = vld [vmem:[#allocation5 + $0x10] sm:$0xff]
    %v4864 = vld [vmem:[#allocation5 + $0x18] sm:$0xff]
    %v4865 = vld [vmem:[#allocation5 + $0x20] sm:$0xff]
    %v4866 = vld [vmem:[#allocation5 + $0x28] sm:$0xff]
    %v4867 = vld [vmem:[#allocation5 + $0x30] sm:$0xff]
    %v4868 = vld [vmem:[#allocation5 + $0x38] sm:$0xff]
    %v4869 = vld [vmem:[#allocation5 + $0x40] sm:$0xff]
    %v4870 = vld [vmem:[#allocation5 + $0x48] sm:$0xff]
    %v4871 = vld [vmem:[#allocation5 + $0x50] sm:$0xff]
    %v4872 = vld [vmem:[#allocation5 + $0x58] sm:$0xff]
    %v4873 = vld [vmem:[#allocation5 + $0x60] sm:$0xff]
    %v4874 = vld [vmem:[#allocation5 + $0x68] sm:$0xff]
    %v4875 = vld [vmem:[#allocation5 + $0x70] sm:$0xff]
    %v4876 = vld [vmem:[#allocation5 + $0x78] sm:$0xff]
    %vm4877 = vcmp.gt.f32.partialorder %v3654, 1e-16
    %vm4878 = vcmp.gt.f32.partialorder %v3655, 1e-16
    %vm4879 = vcmp.gt.f32.partialorder %v3656, 1e-16
    %vm4880 = vcmp.gt.f32.partialorder %v3657, 1e-16
    %vm4881 = vcmp.gt.f32.partialorder %v3658, 1e-16
    %vm4882 = vcmp.gt.f32.partialorder %v3659, 1e-16
    %vm4883 = vcmp.gt.f32.partialorder %v3660, 1e-16
    %vm4884 = vcmp.gt.f32.partialorder %v3661, 1e-16
    %vm4885 = vcmp.gt.f32.partialorder %v3662, 1e-16
    %vm4886 = vcmp.gt.f32.partialorder %v3663, 1e-16
    %vm4887 = vcmp.gt.f32.partialorder %v3664, 1e-16
    %vm4888 = vcmp.gt.f32.partialorder %v3665, 1e-16
    %vm4889 = vcmp.gt.f32.partialorder %v3666, 1e-16
    %vm4890 = vcmp.gt.f32.partialorder %v3667, 1e-16
    %vm4891 = vcmp.gt.f32.partialorder %v3668, 1e-16
    %vm4892 = vcmp.gt.f32.partialorder %v3669, 1e-16
    %vm4893 = vcmp.gt.f32.partialorder %v3670, 1e-16
    %vm4894 = vcmp.gt.f32.partialorder %v3671, 1e-16
    %vm4895 = vcmp.gt.f32.partialorder %v3672, 1e-16
    %vm4896 = vcmp.gt.f32.partialorder %v3673, 1e-16
    %vm4897 = vcmp.gt.f32.partialorder %v3674, 1e-16
    %vm4898 = vcmp.gt.f32.partialorder %v3675, 1e-16
    %vm4899 = vcmp.gt.f32.partialorder %v3676, 1e-16
    %vm4900 = vcmp.gt.f32.partialorder %v3677, 1e-16
    %vm4901 = vcmp.gt.f32.partialorder %v3678, 1e-16
    %vm4902 = vcmp.gt.f32.partialorder %v3679, 1e-16
    %vm4903 = vcmp.gt.f32.partialorder %v3680, 1e-16
    %vm4904 = vcmp.gt.f32.partialorder %v3681, 1e-16
    %vm4905 = vcmp.gt.f32.partialorder %v3682, 1e-16
    %vm4906 = vcmp.gt.f32.partialorder %v3683, 1e-16
    %vm4907 = vcmp.gt.f32.partialorder %v3684, 1e-16
    %vm4908 = vcmp.gt.f32.partialorder %v3685, 1e-16
    %vm4909 = vcmp.gt.f32.partialorder %v3686, 1e-16
    %vm4910 = vcmp.gt.f32.partialorder %v3687, 1e-16
    %vm4911 = vcmp.gt.f32.partialorder %v3688, 1e-16
    %vm4912 = vcmp.gt.f32.partialorder %v3689, 1e-16
    %vm4913 = vcmp.gt.f32.partialorder %v3690, 1e-16
    %vm4914 = vcmp.gt.f32.partialorder %v3691, 1e-16
    %vm4915 = vcmp.gt.f32.partialorder %v3692, 1e-16
    %vm4916 = vcmp.gt.f32.partialorder %v3693, 1e-16
    %vm4917 = vcmp.gt.f32.partialorder %v3694, 1e-16
    %vm4918 = vcmp.gt.f32.partialorder %v3695, 1e-16
    %vm4919 = vcmp.gt.f32.partialorder %v3696, 1e-16
    %vm4920 = vcmp.gt.f32.partialorder %v3697, 1e-16
    %vm4921 = vcmp.gt.f32.partialorder %v3698, 1e-16
    %vm4922 = vcmp.gt.f32.partialorder %v3699, 1e-16
    %vm4923 = vcmp.gt.f32.partialorder %v3700, 1e-16
    %vm4924 = vcmp.gt.f32.partialorder %v3701, 1e-16
    %vm4925 = vcmp.gt.f32.partialorder %v3702, 1e-16
    %vm4926 = vcmp.gt.f32.partialorder %v3703, 1e-16
    %vm4927 = vcmp.gt.f32.partialorder %v3704, 1e-16
    %vm4928 = vcmp.gt.f32.partialorder %v3705, 1e-16
    %vm4929 = vcmp.gt.f32.partialorder %v3706, 1e-16
    %vm4930 = vcmp.gt.f32.partialorder %v3707, 1e-16
    %vm4931 = vcmp.gt.f32.partialorder %v3708, 1e-16
    %vm4932 = vcmp.gt.f32.partialorder %v3709, 1e-16
    %vm4933 = vcmp.gt.f32.partialorder %v3710, 1e-16
    %vm4934 = vcmp.gt.f32.partialorder %v3711, 1e-16
    %vm4935 = vcmp.gt.f32.partialorder %v3712, 1e-16
    %vm4936 = vcmp.gt.f32.partialorder %v3713, 1e-16
    %vm4937 = vcmp.gt.f32.partialorder %v3714, 1e-16
    %vm4938 = vcmp.gt.f32.partialorder %v3715, 1e-16
    %vm4939 = vcmp.gt.f32.partialorder %v3716, 1e-16
    %vm4940 = vcmp.gt.f32.partialorder %v3717, 1e-16
    %vm4941 = vcmp.gt.f32.partialorder %v3718, 1e-16
    %vm4942 = vcmp.gt.f32.partialorder %v3719, 1e-16
    %vm4943 = vcmp.gt.f32.partialorder %v3720, 1e-16
    %vm4944 = vcmp.gt.f32.partialorder %v3721, 1e-16
    %vm4945 = vcmp.gt.f32.partialorder %v3722, 1e-16
    %vm4946 = vcmp.gt.f32.partialorder %v3723, 1e-16
    %vm4947 = vcmp.gt.f32.partialorder %v3724, 1e-16
    %vm4948 = vcmp.gt.f32.partialorder %v3725, 1e-16
    %vm4949 = vcmp.gt.f32.partialorder %v3726, 1e-16
    %vm4950 = vcmp.gt.f32.partialorder %v3727, 1e-16
    %vm4951 = vcmp.gt.f32.partialorder %v3728, 1e-16
    %vm4952 = vcmp.gt.f32.partialorder %v3729, 1e-16
    %vm4953 = vcmp.gt.f32.partialorder %v3730, 1e-16
    %vm4954 = vcmp.gt.f32.partialorder %v3731, 1e-16
    %vm4955 = vcmp.gt.f32.partialorder %v3732, 1e-16
    %vm4956 = vcmp.gt.f32.partialorder %v3733, 1e-16
    %vm4957 = vcmp.gt.f32.partialorder %v3734, 1e-16
    %vm4958 = vcmp.gt.f32.partialorder %v3735, 1e-16
    %vm4959 = vcmp.gt.f32.partialorder %v3736, 1e-16
    %vm4960 = vcmp.gt.f32.partialorder %v3737, 1e-16
    %vm4961 = vcmp.gt.f32.partialorder %v3738, 1e-16
    %vm4962 = vcmp.gt.f32.partialorder %v3739, 1e-16
    %vm4963 = vcmp.gt.f32.partialorder %v3740, 1e-16
    %vm4964 = vcmp.gt.f32.partialorder %v3741, 1e-16
    %vm4965 = vcmp.gt.f32.partialorder %v3742, 1e-16
    %vm4966 = vcmp.gt.f32.partialorder %v3743, 1e-16
    %vm4967 = vcmp.gt.f32.partialorder %v3744, 1e-16
    %vm4968 = vcmp.gt.f32.partialorder %v3745, 1e-16
    %vm4969 = vcmp.gt.f32.partialorder %v3746, 1e-16
    %vm4970 = vcmp.gt.f32.partialorder %v3747, 1e-16
    %vm4971 = vcmp.gt.f32.partialorder %v3748, 1e-16
    %vm4972 = vcmp.gt.f32.partialorder %v3749, 1e-16
    %vm4973 = vcmp.gt.f32.partialorder %v3750, 1e-16
    %vm4974 = vcmp.gt.f32.partialorder %v3751, 1e-16
    %vm4975 = vcmp.gt.f32.partialorder %v3752, 1e-16
    %vm4976 = vcmp.gt.f32.partialorder %v3753, 1e-16
    %vm4977 = vcmp.gt.f32.partialorder %v3754, 1e-16
    %vm4978 = vcmp.gt.f32.partialorder %v3755, 1e-16
    %vm4979 = vcmp.gt.f32.partialorder %v3756, 1e-16
    %vm4980 = vcmp.gt.f32.partialorder %v3757, 1e-16
    %vm4981 = vcmp.gt.f32.partialorder %v3758, 1e-16
    %vm4982 = vcmp.gt.f32.partialorder %v3759, 1e-16
    %vm4983 = vcmp.gt.f32.partialorder %v3760, 1e-16
    %vm4984 = vcmp.gt.f32.partialorder %v3761, 1e-16
    %vm4985 = vcmp.gt.f32.partialorder %v3762, 1e-16
    %vm4986 = vcmp.gt.f32.partialorder %v3763, 1e-16
    %vm4987 = vcmp.gt.f32.partialorder %v3764, 1e-16
    %vm4988 = vcmp.gt.f32.partialorder %v3765, 1e-16
    %vm4989 = vcmp.gt.f32.partialorder %v3766, 1e-16
    %vm4990 = vcmp.gt.f32.partialorder %v3767, 1e-16
    %vm4991 = vcmp.gt.f32.partialorder %v3768, 1e-16
    %vm4992 = vcmp.gt.f32.partialorder %v3769, 1e-16
    %vm4993 = vcmp.gt.f32.partialorder %v3770, 1e-16
    %vm4994 = vcmp.gt.f32.partialorder %v3771, 1e-16
    %vm4995 = vcmp.gt.f32.partialorder %v3772, 1e-16
    %vm4996 = vcmp.gt.f32.partialorder %v3773, 1e-16
    %vm4997 = vcmp.gt.f32.partialorder %v3774, 1e-16
    %vm4998 = vcmp.gt.f32.partialorder %v3775, 1e-16
    %vm4999 = vcmp.gt.f32.partialorder %v3776, 1e-16
    %vm5000 = vcmp.gt.f32.partialorder %v3777, 1e-16
    %vm5001 = vcmp.gt.f32.partialorder %v3778, 1e-16
    %vm5002 = vcmp.gt.f32.partialorder %v3779, 1e-16
    %vm5003 = vcmp.gt.f32.partialorder %v3780, 1e-16
    %vm5004 = vcmp.gt.f32.partialorder %v3781, 1e-16
    %v5005 = vsel %vm4877, 1, 0
    %v5006 = vsel %vm4878, 1, 0
    %v5007 = vsel %vm4879, 1, 0
    %v5008 = vsel %vm4880, 1, 0
    %v5009 = vsel %vm4881, 1, 0
    %v5010 = vsel %vm4882, 1, 0
    %v5011 = vsel %vm4883, 1, 0
    %v5012 = vsel %vm4884, 1, 0
    %v5013 = vsel %vm4885, 1, 0
    %v5014 = vsel %vm4886, 1, 0
    %v5015 = vsel %vm4887, 1, 0
    %v5016 = vsel %vm4888, 1, 0
    %v5017 = vsel %vm4889, 1, 0
    %v5018 = vsel %vm4890, 1, 0
    %v5019 = vsel %vm4891, 1, 0
    %v5020 = vsel %vm4892, 1, 0
    %v5021 = vsel %vm4893, 1, 0
    %v5022 = vsel %vm4894, 1, 0
    %v5023 = vsel %vm4895, 1, 0
    %v5024 = vsel %vm4896, 1, 0
    %v5025 = vsel %vm4897, 1, 0
    %v5026 = vsel %vm4898, 1, 0
    %v5027 = vsel %vm4899, 1, 0
    %v5028 = vsel %vm4900, 1, 0
    %v5029 = vsel %vm4901, 1, 0
    %v5030 = vsel %vm4902, 1, 0
    %v5031 = vsel %vm4903, 1, 0
    %v5032 = vsel %vm4904, 1, 0
    %v5033 = vsel %vm4905, 1, 0
    %v5034 = vsel %vm4906, 1, 0
    %v5035 = vsel %vm4907, 1, 0
    %v5036 = vsel %vm4908, 1, 0
    %v5037 = vsel %vm4909, 1, 0
    %v5038 = vsel %vm4910, 1, 0
    %v5039 = vsel %vm4911, 1, 0
    %v5040 = vsel %vm4912, 1, 0
    %v5041 = vsel %vm4913, 1, 0
    %v5042 = vsel %vm4914, 1, 0
    %v5043 = vsel %vm4915, 1, 0
    %v5044 = vsel %vm4916, 1, 0
    %v5045 = vsel %vm4917, 1, 0
    %v5046 = vsel %vm4918, 1, 0
    %v5047 = vsel %vm4919, 1, 0
    %v5048 = vsel %vm4920, 1, 0
    %v5049 = vsel %vm4921, 1, 0
    %v5050 = vsel %vm4922, 1, 0
    %v5051 = vsel %vm4923, 1, 0
    %v5052 = vsel %vm4924, 1, 0
    %v5053 = vsel %vm4925, 1, 0
    %v5054 = vsel %vm4926, 1, 0
    %v5055 = vsel %vm4927, 1, 0
    %v5056 = vsel %vm4928, 1, 0
    %v5057 = vsel %vm4929, 1, 0
    %v5058 = vsel %vm4930, 1, 0
    %v5059 = vsel %vm4931, 1, 0
    %v5060 = vsel %vm4932, 1, 0
    %v5061 = vsel %vm4933, 1, 0
    %v5062 = vsel %vm4934, 1, 0
    %v5063 = vsel %vm4935, 1, 0
    %v5064 = vsel %vm4936, 1, 0
    %v5065 = vsel %vm4937, 1, 0
    %v5066 = vsel %vm4938, 1, 0
    %v5067 = vsel %vm4939, 1, 0
    %v5068 = vsel %vm4940, 1, 0
    %v5069 = vsel %vm4941, 1, 0
    %v5070 = vsel %vm4942, 1, 0
    %v5071 = vsel %vm4943, 1, 0
    %v5072 = vsel %vm4944, 1, 0
    %v5073 = vsel %vm4945, 1, 0
    %v5074 = vsel %vm4946, 1, 0
    %v5075 = vsel %vm4947, 1, 0
    %v5076 = vsel %vm4948, 1, 0
    %v5077 = vsel %vm4949, 1, 0
    %v5078 = vsel %vm4950, 1, 0
    %v5079 = vsel %vm4951, 1, 0
    %v5080 = vsel %vm4952, 1, 0
    %v5081 = vsel %vm4953, 1, 0
    %v5082 = vsel %vm4954, 1, 0
    %v5083 = vsel %vm4955, 1, 0
    %v5084 = vsel %vm4956, 1, 0
    %v5085 = vsel %vm4957, 1, 0
    %v5086 = vsel %vm4958, 1, 0
    %v5087 = vsel %vm4959, 1, 0
    %v5088 = vsel %vm4960, 1, 0
    %v5089 = vsel %vm4961, 1, 0
    %v5090 = vsel %vm4962, 1, 0
    %v5091 = vsel %vm4963, 1, 0
    %v5092 = vsel %vm4964, 1, 0
    %v5093 = vsel %vm4965, 1, 0
    %v5094 = vsel %vm4966, 1, 0
    %v5095 = vsel %vm4967, 1, 0
    %v5096 = vsel %vm4968, 1, 0
    %v5097 = vsel %vm4969, 1, 0
    %v5098 = vsel %vm4970, 1, 0
    %v5099 = vsel %vm4971, 1, 0
    %v5100 = vsel %vm4972, 1, 0
    %v5101 = vsel %vm4973, 1, 0
    %v5102 = vsel %vm4974, 1, 0
    %v5103 = vsel %vm4975, 1, 0
    %v5104 = vsel %vm4976, 1, 0
    %v5105 = vsel %vm4977, 1, 0
    %v5106 = vsel %vm4978, 1, 0
    %v5107 = vsel %vm4979, 1, 0
    %v5108 = vsel %vm4980, 1, 0
    %v5109 = vsel %vm4981, 1, 0
    %v5110 = vsel %vm4982, 1, 0
    %v5111 = vsel %vm4983, 1, 0
    %v5112 = vsel %vm4984, 1, 0
    %v5113 = vsel %vm4985, 1, 0
    %v5114 = vsel %vm4986, 1, 0
    %v5115 = vsel %vm4987, 1, 0
    %v5116 = vsel %vm4988, 1, 0
    %v5117 = vsel %vm4989, 1, 0
    %v5118 = vsel %vm4990, 1, 0
    %v5119 = vsel %vm4991, 1, 0
    %v5120 = vsel %vm4992, 1, 0
    %v5121 = vsel %vm4993, 1, 0
    %v5122 = vsel %vm4994, 1, 0
    %v5123 = vsel %vm4995, 1, 0
    %v5124 = vsel %vm4996, 1, 0
    %v5125 = vsel %vm4997, 1, 0
    %v5126 = vsel %vm4998, 1, 0
    %v5127 = vsel %vm4999, 1, 0
    %v5128 = vsel %vm5000, 1, 0
    %v5129 = vsel %vm5001, 1, 0
    %v5130 = vsel %vm5002, 1, 0
    %v5131 = vsel %vm5003, 1, 0
    %v5132 = vsel %vm5004, 1, 0
    %v5133 = vcvt.s32.f32 %v5005
    %v5134 = vcvt.s32.f32 %v5006
    %v5135 = vcvt.s32.f32 %v5007
    %v5136 = vcvt.s32.f32 %v5008
    %v5137 = vcvt.s32.f32 %v5009
    %v5138 = vcvt.s32.f32 %v5010
    %v5139 = vcvt.s32.f32 %v5011
    %v5140 = vcvt.s32.f32 %v5012
    %v5141 = vcvt.s32.f32 %v5013
    %v5142 = vcvt.s32.f32 %v5014
    %v5143 = vcvt.s32.f32 %v5015
    %v5144 = vcvt.s32.f32 %v5016
    %v5145 = vcvt.s32.f32 %v5017
    %v5146 = vcvt.s32.f32 %v5018
    %v5147 = vcvt.s32.f32 %v5019
    %v5148 = vcvt.s32.f32 %v5020
    %v5149 = vcvt.s32.f32 %v5021
    %v5150 = vcvt.s32.f32 %v5022
    %v5151 = vcvt.s32.f32 %v5023
    %v5152 = vcvt.s32.f32 %v5024
    %v5153 = vcvt.s32.f32 %v5025
    %v5154 = vcvt.s32.f32 %v5026
    %v5155 = vcvt.s32.f32 %v5027
    %v5156 = vcvt.s32.f32 %v5028
    %v5157 = vcvt.s32.f32 %v5029
    %v5158 = vcvt.s32.f32 %v5030
    %v5159 = vcvt.s32.f32 %v5031
    %v5160 = vcvt.s32.f32 %v5032
    %v5161 = vcvt.s32.f32 %v5033
    %v5162 = vcvt.s32.f32 %v5034
    %v5163 = vcvt.s32.f32 %v5035
    %v5164 = vcvt.s32.f32 %v5036
    %v5165 = vcvt.s32.f32 %v5037
    %v5166 = vcvt.s32.f32 %v5038
    %v5167 = vcvt.s32.f32 %v5039
    %v5168 = vcvt.s32.f32 %v5040
    %v5169 = vcvt.s32.f32 %v5041
    %v5170 = vcvt.s32.f32 %v5042
    %v5171 = vcvt.s32.f32 %v5043
    %v5172 = vcvt.s32.f32 %v5044
    %v5173 = vcvt.s32.f32 %v5045
    %v5174 = vcvt.s32.f32 %v5046
    %v5175 = vcvt.s32.f32 %v5047
    %v5176 = vcvt.s32.f32 %v5048
    %v5177 = vcvt.s32.f32 %v5049
    %v5178 = vcvt.s32.f32 %v5050
    %v5179 = vcvt.s32.f32 %v5051
    %v5180 = vcvt.s32.f32 %v5052
    %v5181 = vcvt.s32.f32 %v5053
    %v5182 = vcvt.s32.f32 %v5054
    %v5183 = vcvt.s32.f32 %v5055
    %v5184 = vcvt.s32.f32 %v5056
    %v5185 = vcvt.s32.f32 %v5057
    %v5186 = vcvt.s32.f32 %v5058
    %v5187 = vcvt.s32.f32 %v5059
    %v5188 = vcvt.s32.f32 %v5060
    %v5189 = vcvt.s32.f32 %v5061
    %v5190 = vcvt.s32.f32 %v5062
    %v5191 = vcvt.s32.f32 %v5063
    %v5192 = vcvt.s32.f32 %v5064
    %v5193 = vcvt.s32.f32 %v5065
    %v5194 = vcvt.s32.f32 %v5066
    %v5195 = vcvt.s32.f32 %v5067
    %v5196 = vcvt.s32.f32 %v5068
    %v5197 = vcvt.s32.f32 %v5069
    %v5198 = vcvt.s32.f32 %v5070
    %v5199 = vcvt.s32.f32 %v5071
    %v5200 = vcvt.s32.f32 %v5072
    %v5201 = vcvt.s32.f32 %v5073
    %v5202 = vcvt.s32.f32 %v5074
    %v5203 = vcvt.s32.f32 %v5075
    %v5204 = vcvt.s32.f32 %v5076
    %v5205 = vcvt.s32.f32 %v5077
    %v5206 = vcvt.s32.f32 %v5078
    %v5207 = vcvt.s32.f32 %v5079
    %v5208 = vcvt.s32.f32 %v5080
    %v5209 = vcvt.s32.f32 %v5081
    %v5210 = vcvt.s32.f32 %v5082
    %v5211 = vcvt.s32.f32 %v5083
    %v5212 = vcvt.s32.f32 %v5084
    %v5213 = vcvt.s32.f32 %v5085
    %v5214 = vcvt.s32.f32 %v5086
    %v5215 = vcvt.s32.f32 %v5087
    %v5216 = vcvt.s32.f32 %v5088
    %v5217 = vcvt.s32.f32 %v5089
    %v5218 = vcvt.s32.f32 %v5090
    %v5219 = vcvt.s32.f32 %v5091
    %v5220 = vcvt.s32.f32 %v5092
    %v5221 = vcvt.s32.f32 %v5093
    %v5222 = vcvt.s32.f32 %v5094
    %v5223 = vcvt.s32.f32 %v5095
    %v5224 = vcvt.s32.f32 %v5096
    %v5225 = vcvt.s32.f32 %v5097
    %v5226 = vcvt.s32.f32 %v5098
    %v5227 = vcvt.s32.f32 %v5099
    %v5228 = vcvt.s32.f32 %v5100
    %v5229 = vcvt.s32.f32 %v5101
    %v5230 = vcvt.s32.f32 %v5102
    %v5231 = vcvt.s32.f32 %v5103
    %v5232 = vcvt.s32.f32 %v5104
    %v5233 = vcvt.s32.f32 %v5105
    %v5234 = vcvt.s32.f32 %v5106
    %v5235 = vcvt.s32.f32 %v5107
    %v5236 = vcvt.s32.f32 %v5108
    %v5237 = vcvt.s32.f32 %v5109
    %v5238 = vcvt.s32.f32 %v5110
    %v5239 = vcvt.s32.f32 %v5111
    %v5240 = vcvt.s32.f32 %v5112
    %v5241 = vcvt.s32.f32 %v5113
    %v5242 = vcvt.s32.f32 %v5114
    %v5243 = vcvt.s32.f32 %v5115
    %v5244 = vcvt.s32.f32 %v5116
    %v5245 = vcvt.s32.f32 %v5117
    %v5246 = vcvt.s32.f32 %v5118
    %v5247 = vcvt.s32.f32 %v5119
    %v5248 = vcvt.s32.f32 %v5120
    %v5249 = vcvt.s32.f32 %v5121
    %v5250 = vcvt.s32.f32 %v5122
    %v5251 = vcvt.s32.f32 %v5123
    %v5252 = vcvt.s32.f32 %v5124
    %v5253 = vcvt.s32.f32 %v5125
    %v5254 = vcvt.s32.f32 %v5126
    %v5255 = vcvt.s32.f32 %v5127
    %v5256 = vcvt.s32.f32 %v5128
    %v5257 = vcvt.s32.f32 %v5129
    %v5258 = vcvt.s32.f32 %v5130
    %v5259 = vcvt.s32.f32 %v5131
    %v5260 = vcvt.s32.f32 %v5132
    %5261 = vadd.xlane.f32.xlu0 %v5133
    %v5262 = vpop.xlane.xlu0 %5261
    %5263 = vadd.xlane.f32.xlu0 %v5134
    %v5264 = vpop.xlane.xlu0 %5263
    %5265 = vadd.xlane.f32.xlu0 %v5135
    %v5266 = vpop.xlane.xlu0 %5265
    %5267 = vadd.xlane.f32.xlu0 %v5136
    %v5268 = vpop.xlane.xlu0 %5267
    %5269 = vadd.xlane.f32.xlu0 %v5137
    %v5270 = vpop.xlane.xlu0 %5269
    %5271 = vadd.xlane.f32.xlu0 %v5138
    %v5272 = vpop.xlane.xlu0 %5271
    %5273 = vadd.xlane.f32.xlu0 %v5139
    %v5274 = vpop.xlane.xlu0 %5273
    %5275 = vadd.xlane.f32.xlu0 %v5140
    %v5276 = vpop.xlane.xlu0 %5275
    %5277 = vadd.xlane.f32.xlu0 %v5141
    %v5278 = vpop.xlane.xlu0 %5277
    %5279 = vadd.xlane.f32.xlu0 %v5142
    %v5280 = vpop.xlane.xlu0 %5279
    %5281 = vadd.xlane.f32.xlu0 %v5143
    %v5282 = vpop.xlane.xlu0 %5281
    %5283 = vadd.xlane.f32.xlu0 %v5144
    %v5284 = vpop.xlane.xlu0 %5283
    %5285 = vadd.xlane.f32.xlu0 %v5145
    %v5286 = vpop.xlane.xlu0 %5285
    %5287 = vadd.xlane.f32.xlu0 %v5146
    %v5288 = vpop.xlane.xlu0 %5287
    %5289 = vadd.xlane.f32.xlu0 %v5147
    %v5290 = vpop.xlane.xlu0 %5289
    %5291 = vadd.xlane.f32.xlu0 %v5148
    %v5292 = vpop.xlane.xlu0 %5291
    %5293 = vadd.xlane.f32.xlu0 %v5149
    %v5294 = vpop.xlane.xlu0 %5293
    %5295 = vadd.xlane.f32.xlu0 %v5150
    %v5296 = vpop.xlane.xlu0 %5295
    %5297 = vadd.xlane.f32.xlu0 %v5151
    %v5298 = vpop.xlane.xlu0 %5297
    %5299 = vadd.xlane.f32.xlu0 %v5152
    %v5300 = vpop.xlane.xlu0 %5299
    %5301 = vadd.xlane.f32.xlu0 %v5153
    %v5302 = vpop.xlane.xlu0 %5301
    %5303 = vadd.xlane.f32.xlu0 %v5154
    %v5304 = vpop.xlane.xlu0 %5303
    %5305 = vadd.xlane.f32.xlu0 %v5155
    %v5306 = vpop.xlane.xlu0 %5305
    %5307 = vadd.xlane.f32.xlu0 %v5156
    %v5308 = vpop.xlane.xlu0 %5307
    %5309 = vadd.xlane.f32.xlu0 %v5157
    %v5310 = vpop.xlane.xlu0 %5309
    %5311 = vadd.xlane.f32.xlu0 %v5158
    %v5312 = vpop.xlane.xlu0 %5311
    %5313 = vadd.xlane.f32.xlu0 %v5159
    %v5314 = vpop.xlane.xlu0 %5313
    %5315 = vadd.xlane.f32.xlu0 %v5160
    %v5316 = vpop.xlane.xlu0 %5315
    %5317 = vadd.xlane.f32.xlu0 %v5161
    %v5318 = vpop.xlane.xlu0 %5317
    %5319 = vadd.xlane.f32.xlu0 %v5162
    %v5320 = vpop.xlane.xlu0 %5319
    %5321 = vadd.xlane.f32.xlu0 %v5163
    %v5322 = vpop.xlane.xlu0 %5321
    %5323 = vadd.xlane.f32.xlu0 %v5164
    %v5324 = vpop.xlane.xlu0 %5323
    %5325 = vadd.xlane.f32.xlu0 %v5165
    %v5326 = vpop.xlane.xlu0 %5325
    %5327 = vadd.xlane.f32.xlu0 %v5166
    %v5328 = vpop.xlane.xlu0 %5327
    %5329 = vadd.xlane.f32.xlu0 %v5167
    %v5330 = vpop.xlane.xlu0 %5329
    %5331 = vadd.xlane.f32.xlu0 %v5168
    %v5332 = vpop.xlane.xlu0 %5331
    %5333 = vadd.xlane.f32.xlu0 %v5169
    %v5334 = vpop.xlane.xlu0 %5333
    %5335 = vadd.xlane.f32.xlu0 %v5170
    %v5336 = vpop.xlane.xlu0 %5335
    %5337 = vadd.xlane.f32.xlu0 %v5171
    %v5338 = vpop.xlane.xlu0 %5337
    %5339 = vadd.xlane.f32.xlu0 %v5172
    %v5340 = vpop.xlane.xlu0 %5339
    %5341 = vadd.xlane.f32.xlu0 %v5173
    %v5342 = vpop.xlane.xlu0 %5341
    %5343 = vadd.xlane.f32.xlu0 %v5174
    %v5344 = vpop.xlane.xlu0 %5343
    %5345 = vadd.xlane.f32.xlu0 %v5175
    %v5346 = vpop.xlane.xlu0 %5345
    %5347 = vadd.xlane.f32.xlu0 %v5176
    %v5348 = vpop.xlane.xlu0 %5347
    %5349 = vadd.xlane.f32.xlu0 %v5177
    %v5350 = vpop.xlane.xlu0 %5349
    %5351 = vadd.xlane.f32.xlu0 %v5178
    %v5352 = vpop.xlane.xlu0 %5351
    %5353 = vadd.xlane.f32.xlu0 %v5179
    %v5354 = vpop.xlane.xlu0 %5353
    %5355 = vadd.xlane.f32.xlu0 %v5180
    %v5356 = vpop.xlane.xlu0 %5355
    %5357 = vadd.xlane.f32.xlu0 %v5181
    %v5358 = vpop.xlane.xlu0 %5357
    %5359 = vadd.xlane.f32.xlu0 %v5182
    %v5360 = vpop.xlane.xlu0 %5359
    %5361 = vadd.xlane.f32.xlu0 %v5183
    %v5362 = vpop.xlane.xlu0 %5361
    %5363 = vadd.xlane.f32.xlu0 %v5184
    %v5364 = vpop.xlane.xlu0 %5363
    %5365 = vadd.xlane.f32.xlu0 %v5185
    %v5366 = vpop.xlane.xlu0 %5365
    %5367 = vadd.xlane.f32.xlu0 %v5186
    %v5368 = vpop.xlane.xlu0 %5367
    %5369 = vadd.xlane.f32.xlu0 %v5187
    %v5370 = vpop.xlane.xlu0 %5369
    %5371 = vadd.xlane.f32.xlu0 %v5188
    %v5372 = vpop.xlane.xlu0 %5371
    %5373 = vadd.xlane.f32.xlu0 %v5189
    %v5374 = vpop.xlane.xlu0 %5373
    %5375 = vadd.xlane.f32.xlu0 %v5190
    %v5376 = vpop.xlane.xlu0 %5375
    %5377 = vadd.xlane.f32.xlu0 %v5191
    %v5378 = vpop.xlane.xlu0 %5377
    %5379 = vadd.xlane.f32.xlu0 %v5192
    %v5380 = vpop.xlane.xlu0 %5379
    %5381 = vadd.xlane.f32.xlu0 %v5193
    %v5382 = vpop.xlane.xlu0 %5381
    %5383 = vadd.xlane.f32.xlu0 %v5194
    %v5384 = vpop.xlane.xlu0 %5383
    %5385 = vadd.xlane.f32.xlu0 %v5195
    %v5386 = vpop.xlane.xlu0 %5385
    %5387 = vadd.xlane.f32.xlu0 %v5196
    %v5388 = vpop.xlane.xlu0 %5387
    %5389 = vadd.xlane.f32.xlu0 %v5197
    %v5390 = vpop.xlane.xlu0 %5389
    %5391 = vadd.xlane.f32.xlu0 %v5198
    %v5392 = vpop.xlane.xlu0 %5391
    %5393 = vadd.xlane.f32.xlu0 %v5199
    %v5394 = vpop.xlane.xlu0 %5393
    %5395 = vadd.xlane.f32.xlu0 %v5200
    %v5396 = vpop.xlane.xlu0 %5395
    %5397 = vadd.xlane.f32.xlu0 %v5201
    %v5398 = vpop.xlane.xlu0 %5397
    %5399 = vadd.xlane.f32.xlu0 %v5202
    %v5400 = vpop.xlane.xlu0 %5399
    %5401 = vadd.xlane.f32.xlu0 %v5203
    %v5402 = vpop.xlane.xlu0 %5401
    %5403 = vadd.xlane.f32.xlu0 %v5204
    %v5404 = vpop.xlane.xlu0 %5403
    %5405 = vadd.xlane.f32.xlu0 %v5205
    %v5406 = vpop.xlane.xlu0 %5405
    %5407 = vadd.xlane.f32.xlu0 %v5206
    %v5408 = vpop.xlane.xlu0 %5407
    %5409 = vadd.xlane.f32.xlu0 %v5207
    %v5410 = vpop.xlane.xlu0 %5409
    %5411 = vadd.xlane.f32.xlu0 %v5208
    %v5412 = vpop.xlane.xlu0 %5411
    %5413 = vadd.xlane.f32.xlu0 %v5209
    %v5414 = vpop.xlane.xlu0 %5413
    %5415 = vadd.xlane.f32.xlu0 %v5210
    %v5416 = vpop.xlane.xlu0 %5415
    %5417 = vadd.xlane.f32.xlu0 %v5211
    %v5418 = vpop.xlane.xlu0 %5417
    %5419 = vadd.xlane.f32.xlu0 %v5212
    %v5420 = vpop.xlane.xlu0 %5419
    %5421 = vadd.xlane.f32.xlu0 %v5213
    %v5422 = vpop.xlane.xlu0 %5421
    %5423 = vadd.xlane.f32.xlu0 %v5214
    %v5424 = vpop.xlane.xlu0 %5423
    %5425 = vadd.xlane.f32.xlu0 %v5215
    %v5426 = vpop.xlane.xlu0 %5425
    %5427 = vadd.xlane.f32.xlu0 %v5216
    %v5428 = vpop.xlane.xlu0 %5427
    %5429 = vadd.xlane.f32.xlu0 %v5217
    %v5430 = vpop.xlane.xlu0 %5429
    %5431 = vadd.xlane.f32.xlu0 %v5218
    %v5432 = vpop.xlane.xlu0 %5431
    %5433 = vadd.xlane.f32.xlu0 %v5219
    %v5434 = vpop.xlane.xlu0 %5433
    %5435 = vadd.xlane.f32.xlu0 %v5220
    %v5436 = vpop.xlane.xlu0 %5435
    %5437 = vadd.xlane.f32.xlu0 %v5221
    %v5438 = vpop.xlane.xlu0 %5437
    %5439 = vadd.xlane.f32.xlu0 %v5222
    %v5440 = vpop.xlane.xlu0 %5439
    %5441 = vadd.xlane.f32.xlu0 %v5223
    %v5442 = vpop.xlane.xlu0 %5441
    %5443 = vadd.xlane.f32.xlu0 %v5224
    %v5444 = vpop.xlane.xlu0 %5443
    %5445 = vadd.xlane.f32.xlu0 %v5225
    %v5446 = vpop.xlane.xlu0 %5445
    %5447 = vadd.xlane.f32.xlu0 %v5226
    %v5448 = vpop.xlane.xlu0 %5447
    %5449 = vadd.xlane.f32.xlu0 %v5227
    %v5450 = vpop.xlane.xlu0 %5449
    %5451 = vadd.xlane.f32.xlu0 %v5228
    %v5452 = vpop.xlane.xlu0 %5451
    %5453 = vadd.xlane.f32.xlu0 %v5229
    %v5454 = vpop.xlane.xlu0 %5453
    %5455 = vadd.xlane.f32.xlu0 %v5230
    %v5456 = vpop.xlane.xlu0 %5455
    %5457 = vadd.xlane.f32.xlu0 %v5231
    %v5458 = vpop.xlane.xlu0 %5457
    %5459 = vadd.xlane.f32.xlu0 %v5232
    %v5460 = vpop.xlane.xlu0 %5459
    %5461 = vadd.xlane.f32.xlu0 %v5233
    %v5462 = vpop.xlane.xlu0 %5461
    %5463 = vadd.xlane.f32.xlu0 %v5234
    %v5464 = vpop.xlane.xlu0 %5463
    %5465 = vadd.xlane.f32.xlu0 %v5235
    %v5466 = vpop.xlane.xlu0 %5465
    %5467 = vadd.xlane.f32.xlu0 %v5236
    %v5468 = vpop.xlane.xlu0 %5467
    %5469 = vadd.xlane.f32.xlu0 %v5237
    %v5470 = vpop.xlane.xlu0 %5469
    %5471 = vadd.xlane.f32.xlu0 %v5238
    %v5472 = vpop.xlane.xlu0 %5471
    %5473 = vadd.xlane.f32.xlu0 %v5239
    %v5474 = vpop.xlane.xlu0 %5473
    %5475 = vadd.xlane.f32.xlu0 %v5240
    %v5476 = vpop.xlane.xlu0 %5475
    %5477 = vadd.xlane.f32.xlu0 %v5241
    %v5478 = vpop.xlane.xlu0 %5477
    %5479 = vadd.xlane.f32.xlu0 %v5242
    %v5480 = vpop.xlane.xlu0 %5479
    %5481 = vadd.xlane.f32.xlu0 %v5243
    %v5482 = vpop.xlane.xlu0 %5481
    %5483 = vadd.xlane.f32.xlu0 %v5244
    %v5484 = vpop.xlane.xlu0 %5483
    %5485 = vadd.xlane.f32.xlu0 %v5245
    %v5486 = vpop.xlane.xlu0 %5485
    %5487 = vadd.xlane.f32.xlu0 %v5246
    %v5488 = vpop.xlane.xlu0 %5487
    %5489 = vadd.xlane.f32.xlu0 %v5247
    %v5490 = vpop.xlane.xlu0 %5489
    %5491 = vadd.xlane.f32.xlu0 %v5248
    %v5492 = vpop.xlane.xlu0 %5491
    %5493 = vadd.xlane.f32.xlu0 %v5249
    %v5494 = vpop.xlane.xlu0 %5493
    %5495 = vadd.xlane.f32.xlu0 %v5250
    %v5496 = vpop.xlane.xlu0 %5495
    %5497 = vadd.xlane.f32.xlu0 %v5251
    %v5498 = vpop.xlane.xlu0 %5497
    %5499 = vadd.xlane.f32.xlu0 %v5252
    %v5500 = vpop.xlane.xlu0 %5499
    %5501 = vadd.xlane.f32.xlu0 %v5253
    %v5502 = vpop.xlane.xlu0 %5501
    %5503 = vadd.xlane.f32.xlu0 %v5254
    %v5504 = vpop.xlane.xlu0 %5503
    %5505 = vadd.xlane.f32.xlu0 %v5255
    %v5506 = vpop.xlane.xlu0 %5505
    %5507 = vadd.xlane.f32.xlu0 %v5256
    %v5508 = vpop.xlane.xlu0 %5507
    %5509 = vadd.xlane.f32.xlu0 %v5257
    %v5510 = vpop.xlane.xlu0 %5509
    %5511 = vadd.xlane.f32.xlu0 %v5258
    %v5512 = vpop.xlane.xlu0 %5511
    %5513 = vadd.xlane.f32.xlu0 %v5259
    %v5514 = vpop.xlane.xlu0 %5513
    %5515 = vadd.xlane.f32.xlu0 %v5260
    %v5516 = vpop.xlane.xlu0 %5515
    %v5645 = vlaneseq
    %v5646 = vshrl.u32 %v5645, 7
    %v5647 = vsub.s32 %v582, %v5646
    %v5648 = vrot.slane %v5262, %v5647
    %v5649 = vlaneseq
    %v5650 = vshrl.u32 %v5649, 7
    %v5651 = vsub.s32 %v582, %v5650
    %v5652 = vrot.slane %v5264, %v5651
    %v5653 = vlaneseq
    %v5654 = vshrl.u32 %v5653, 7
    %v5655 = vsub.s32 %v582, %v5654
    %v5656 = vrot.slane %v5266, %v5655
    %v5657 = vlaneseq
    %v5658 = vshrl.u32 %v5657, 7
    %v5659 = vsub.s32 %v582, %v5658
    %v5660 = vrot.slane %v5268, %v5659
    %v5661 = vlaneseq
    %v5662 = vshrl.u32 %v5661, 7
    %v5663 = vsub.s32 %v582, %v5662
    %v5664 = vrot.slane %v5270, %v5663
    %v5665 = vlaneseq
    %v5666 = vshrl.u32 %v5665, 7
    %v5667 = vsub.s32 %v582, %v5666
    %v5668 = vrot.slane %v5272, %v5667
    %v5669 = vlaneseq
    %v5670 = vshrl.u32 %v5669, 7
    %v5671 = vsub.s32 %v582, %v5670
    %v5672 = vrot.slane %v5274, %v5671
    %v5673 = vlaneseq
    %v5674 = vshrl.u32 %v5673, 7
    %v5675 = vsub.s32 %v582, %v5674
    %v5676 = vrot.slane %v5276, %v5675
    %v5677 = vlaneseq
    %v5678 = vshrl.u32 %v5677, 7
    %v5679 = vsub.s32 %v582, %v5678
    %v5680 = vrot.slane %v5278, %v5679
    %v5681 = vlaneseq
    %v5682 = vshrl.u32 %v5681, 7
    %v5683 = vsub.s32 %v582, %v5682
    %v5684 = vrot.slane %v5280, %v5683
    %v5685 = vlaneseq
    %v5686 = vshrl.u32 %v5685, 7
    %v5687 = vsub.s32 %v582, %v5686
    %v5688 = vrot.slane %v5282, %v5687
    %v5689 = vlaneseq
    %v5690 = vshrl.u32 %v5689, 7
    %v5691 = vsub.s32 %v582, %v5690
    %v5692 = vrot.slane %v5284, %v5691
    %v5693 = vlaneseq
    %v5694 = vshrl.u32 %v5693, 7
    %v5695 = vsub.s32 %v582, %v5694
    %v5696 = vrot.slane %v5286, %v5695
    %v5697 = vlaneseq
    %v5698 = vshrl.u32 %v5697, 7
    %v5699 = vsub.s32 %v582, %v5698
    %v5700 = vrot.slane %v5288, %v5699
    %v5701 = vlaneseq
    %v5702 = vshrl.u32 %v5701, 7
    %v5703 = vsub.s32 %v582, %v5702
    %v5704 = vrot.slane %v5290, %v5703
    %v5705 = vlaneseq
    %v5706 = vshrl.u32 %v5705, 7
    %v5707 = vsub.s32 %v582, %v5706
    %v5708 = vrot.slane %v5292, %v5707
    %v5709 = vlaneseq
    %v5710 = vshrl.u32 %v5709, 7
    %v5711 = vsub.s32 %v582, %v5710
    %v5712 = vrot.slane %v5294, %v5711
    %v5713 = vlaneseq
    %v5714 = vshrl.u32 %v5713, 7
    %v5715 = vsub.s32 %v582, %v5714
    %v5716 = vrot.slane %v5296, %v5715
    %v5717 = vlaneseq
    %v5718 = vshrl.u32 %v5717, 7
    %v5719 = vsub.s32 %v582, %v5718
    %v5720 = vrot.slane %v5298, %v5719
    %v5721 = vlaneseq
    %v5722 = vshrl.u32 %v5721, 7
    %v5723 = vsub.s32 %v582, %v5722
    %v5724 = vrot.slane %v5300, %v5723
    %v5725 = vlaneseq
    %v5726 = vshrl.u32 %v5725, 7
    %v5727 = vsub.s32 %v582, %v5726
    %v5728 = vrot.slane %v5302, %v5727
    %v5729 = vlaneseq
    %v5730 = vshrl.u32 %v5729, 7
    %v5731 = vsub.s32 %v582, %v5730
    %v5732 = vrot.slane %v5304, %v5731
    %v5733 = vlaneseq
    %v5734 = vshrl.u32 %v5733, 7
    %v5735 = vsub.s32 %v582, %v5734
    %v5736 = vrot.slane %v5306, %v5735
    %v5737 = vlaneseq
    %v5738 = vshrl.u32 %v5737, 7
    %v5739 = vsub.s32 %v582, %v5738
    %v5740 = vrot.slane %v5308, %v5739
    %v5741 = vlaneseq
    %v5742 = vshrl.u32 %v5741, 7
    %v5743 = vsub.s32 %v582, %v5742
    %v5744 = vrot.slane %v5310, %v5743
    %v5745 = vlaneseq
    %v5746 = vshrl.u32 %v5745, 7
    %v5747 = vsub.s32 %v582, %v5746
    %v5748 = vrot.slane %v5312, %v5747
    %v5749 = vlaneseq
    %v5750 = vshrl.u32 %v5749, 7
    %v5751 = vsub.s32 %v582, %v5750
    %v5752 = vrot.slane %v5314, %v5751
    %v5753 = vlaneseq
    %v5754 = vshrl.u32 %v5753, 7
    %v5755 = vsub.s32 %v582, %v5754
    %v5756 = vrot.slane %v5316, %v5755
    %v5757 = vlaneseq
    %v5758 = vshrl.u32 %v5757, 7
    %v5759 = vsub.s32 %v582, %v5758
    %v5760 = vrot.slane %v5318, %v5759
    %v5761 = vlaneseq
    %v5762 = vshrl.u32 %v5761, 7
    %v5763 = vsub.s32 %v582, %v5762
    %v5764 = vrot.slane %v5320, %v5763
    %v5765 = vlaneseq
    %v5766 = vshrl.u32 %v5765, 7
    %v5767 = vsub.s32 %v582, %v5766
    %v5768 = vrot.slane %v5322, %v5767
    %v5769 = vlaneseq
    %v5770 = vshrl.u32 %v5769, 7
    %v5771 = vsub.s32 %v582, %v5770
    %v5772 = vrot.slane %v5324, %v5771
    %v5773 = vlaneseq
    %v5774 = vshrl.u32 %v5773, 7
    %v5775 = vsub.s32 %v582, %v5774
    %v5776 = vrot.slane %v5326, %v5775
    %v5777 = vlaneseq
    %v5778 = vshrl.u32 %v5777, 7
    %v5779 = vsub.s32 %v582, %v5778
    %v5780 = vrot.slane %v5328, %v5779
    %v5781 = vlaneseq
    %v5782 = vshrl.u32 %v5781, 7
    %v5783 = vsub.s32 %v582, %v5782
    %v5784 = vrot.slane %v5330, %v5783
    %v5785 = vlaneseq
    %v5786 = vshrl.u32 %v5785, 7
    %v5787 = vsub.s32 %v582, %v5786
    %v5788 = vrot.slane %v5332, %v5787
    %v5789 = vlaneseq
    %v5790 = vshrl.u32 %v5789, 7
    %v5791 = vsub.s32 %v582, %v5790
    %v5792 = vrot.slane %v5334, %v5791
    %v5793 = vlaneseq
    %v5794 = vshrl.u32 %v5793, 7
    %v5795 = vsub.s32 %v582, %v5794
    %v5796 = vrot.slane %v5336, %v5795
    %v5797 = vlaneseq
    %v5798 = vshrl.u32 %v5797, 7
    %v5799 = vsub.s32 %v582, %v5798
    %v5800 = vrot.slane %v5338, %v5799
    %v5801 = vlaneseq
    %v5802 = vshrl.u32 %v5801, 7
    %v5803 = vsub.s32 %v582, %v5802
    %v5804 = vrot.slane %v5340, %v5803
    %v5805 = vlaneseq
    %v5806 = vshrl.u32 %v5805, 7
    %v5807 = vsub.s32 %v582, %v5806
    %v5808 = vrot.slane %v5342, %v5807
    %v5809 = vlaneseq
    %v5810 = vshrl.u32 %v5809, 7
    %v5811 = vsub.s32 %v582, %v5810
    %v5812 = vrot.slane %v5344, %v5811
    %v5813 = vlaneseq
    %v5814 = vshrl.u32 %v5813, 7
    %v5815 = vsub.s32 %v582, %v5814
    %v5816 = vrot.slane %v5346, %v5815
    %v5817 = vlaneseq
    %v5818 = vshrl.u32 %v5817, 7
    %v5819 = vsub.s32 %v582, %v5818
    %v5820 = vrot.slane %v5348, %v5819
    %v5821 = vlaneseq
    %v5822 = vshrl.u32 %v5821, 7
    %v5823 = vsub.s32 %v582, %v5822
    %v5824 = vrot.slane %v5350, %v5823
    %v5825 = vlaneseq
    %v5826 = vshrl.u32 %v5825, 7
    %v5827 = vsub.s32 %v582, %v5826
    %v5828 = vrot.slane %v5352, %v5827
    %v5829 = vlaneseq
    %v5830 = vshrl.u32 %v5829, 7
    %v5831 = vsub.s32 %v582, %v5830
    %v5832 = vrot.slane %v5354, %v5831
    %v5833 = vlaneseq
    %v5834 = vshrl.u32 %v5833, 7
    %v5835 = vsub.s32 %v582, %v5834
    %v5836 = vrot.slane %v5356, %v5835
    %v5837 = vlaneseq
    %v5838 = vshrl.u32 %v5837, 7
    %v5839 = vsub.s32 %v582, %v5838
    %v5840 = vrot.slane %v5358, %v5839
    %v5841 = vlaneseq
    %v5842 = vshrl.u32 %v5841, 7
    %v5843 = vsub.s32 %v582, %v5842
    %v5844 = vrot.slane %v5360, %v5843
    %v5845 = vlaneseq
    %v5846 = vshrl.u32 %v5845, 7
    %v5847 = vsub.s32 %v582, %v5846
    %v5848 = vrot.slane %v5362, %v5847
    %v5849 = vlaneseq
    %v5850 = vshrl.u32 %v5849, 7
    %v5851 = vsub.s32 %v582, %v5850
    %v5852 = vrot.slane %v5364, %v5851
    %v5853 = vlaneseq
    %v5854 = vshrl.u32 %v5853, 7
    %v5855 = vsub.s32 %v582, %v5854
    %v5856 = vrot.slane %v5366, %v5855
    %v5857 = vlaneseq
    %v5858 = vshrl.u32 %v5857, 7
    %v5859 = vsub.s32 %v582, %v5858
    %v5860 = vrot.slane %v5368, %v5859
    %v5861 = vlaneseq
    %v5862 = vshrl.u32 %v5861, 7
    %v5863 = vsub.s32 %v582, %v5862
    %v5864 = vrot.slane %v5370, %v5863
    %v5865 = vlaneseq
    %v5866 = vshrl.u32 %v5865, 7
    %v5867 = vsub.s32 %v582, %v5866
    %v5868 = vrot.slane %v5372, %v5867
    %v5869 = vlaneseq
    %v5870 = vshrl.u32 %v5869, 7
    %v5871 = vsub.s32 %v582, %v5870
    %v5872 = vrot.slane %v5374, %v5871
    %v5873 = vlaneseq
    %v5874 = vshrl.u32 %v5873, 7
    %v5875 = vsub.s32 %v582, %v5874
    %v5876 = vrot.slane %v5376, %v5875
    %v5877 = vlaneseq
    %v5878 = vshrl.u32 %v5877, 7
    %v5879 = vsub.s32 %v582, %v5878
    %v5880 = vrot.slane %v5378, %v5879
    %v5881 = vlaneseq
    %v5882 = vshrl.u32 %v5881, 7
    %v5883 = vsub.s32 %v582, %v5882
    %v5884 = vrot.slane %v5380, %v5883
    %v5885 = vlaneseq
    %v5886 = vshrl.u32 %v5885, 7
    %v5887 = vsub.s32 %v582, %v5886
    %v5888 = vrot.slane %v5382, %v5887
    %v5889 = vlaneseq
    %v5890 = vshrl.u32 %v5889, 7
    %v5891 = vsub.s32 %v582, %v5890
    %v5892 = vrot.slane %v5384, %v5891
    %v5893 = vlaneseq
    %v5894 = vshrl.u32 %v5893, 7
    %v5895 = vsub.s32 %v582, %v5894
    %v5896 = vrot.slane %v5386, %v5895
    %v5897 = vlaneseq
    %v5898 = vshrl.u32 %v5897, 7
    %v5899 = vsub.s32 %v582, %v5898
    %v5900 = vrot.slane %v5388, %v5899
    %v5901 = vlaneseq
    %v5902 = vshrl.u32 %v5901, 7
    %v5903 = vsub.s32 %v582, %v5902
    %v5904 = vrot.slane %v5390, %v5903
    %v5905 = vlaneseq
    %v5906 = vshrl.u32 %v5905, 7
    %v5907 = vsub.s32 %v582, %v5906
    %v5908 = vrot.slane %v5392, %v5907
    %v5909 = vlaneseq
    %v5910 = vshrl.u32 %v5909, 7
    %v5911 = vsub.s32 %v582, %v5910
    %v5912 = vrot.slane %v5394, %v5911
    %v5913 = vlaneseq
    %v5914 = vshrl.u32 %v5913, 7
    %v5915 = vsub.s32 %v582, %v5914
    %v5916 = vrot.slane %v5396, %v5915
    %v5917 = vlaneseq
    %v5918 = vshrl.u32 %v5917, 7
    %v5919 = vsub.s32 %v582, %v5918
    %v5920 = vrot.slane %v5398, %v5919
    %v5921 = vlaneseq
    %v5922 = vshrl.u32 %v5921, 7
    %v5923 = vsub.s32 %v582, %v5922
    %v5924 = vrot.slane %v5400, %v5923
    %v5925 = vlaneseq
    %v5926 = vshrl.u32 %v5925, 7
    %v5927 = vsub.s32 %v582, %v5926
    %v5928 = vrot.slane %v5402, %v5927
    %v5929 = vlaneseq
    %v5930 = vshrl.u32 %v5929, 7
    %v5931 = vsub.s32 %v582, %v5930
    %v5932 = vrot.slane %v5404, %v5931
    %v5933 = vlaneseq
    %v5934 = vshrl.u32 %v5933, 7
    %v5935 = vsub.s32 %v582, %v5934
    %v5936 = vrot.slane %v5406, %v5935
    %v5937 = vlaneseq
    %v5938 = vshrl.u32 %v5937, 7
    %v5939 = vsub.s32 %v582, %v5938
    %v5940 = vrot.slane %v5408, %v5939
    %v5941 = vlaneseq
    %v5942 = vshrl.u32 %v5941, 7
    %v5943 = vsub.s32 %v582, %v5942
    %v5944 = vrot.slane %v5410, %v5943
    %v5945 = vlaneseq
    %v5946 = vshrl.u32 %v5945, 7
    %v5947 = vsub.s32 %v582, %v5946
    %v5948 = vrot.slane %v5412, %v5947
    %v5949 = vlaneseq
    %v5950 = vshrl.u32 %v5949, 7
    %v5951 = vsub.s32 %v582, %v5950
    %v5952 = vrot.slane %v5414, %v5951
    %v5953 = vlaneseq
    %v5954 = vshrl.u32 %v5953, 7
    %v5955 = vsub.s32 %v582, %v5954
    %v5956 = vrot.slane %v5416, %v5955
    %v5957 = vlaneseq
    %v5958 = vshrl.u32 %v5957, 7
    %v5959 = vsub.s32 %v582, %v5958
    %v5960 = vrot.slane %v5418, %v5959
    %v5961 = vlaneseq
    %v5962 = vshrl.u32 %v5961, 7
    %v5963 = vsub.s32 %v582, %v5962
    %v5964 = vrot.slane %v5420, %v5963
    %v5965 = vlaneseq
    %v5966 = vshrl.u32 %v5965, 7
    %v5967 = vsub.s32 %v582, %v5966
    %v5968 = vrot.slane %v5422, %v5967
    %v5969 = vlaneseq
    %v5970 = vshrl.u32 %v5969, 7
    %v5971 = vsub.s32 %v582, %v5970
    %v5972 = vrot.slane %v5424, %v5971
    %v5973 = vlaneseq
    %v5974 = vshrl.u32 %v5973, 7
    %v5975 = vsub.s32 %v582, %v5974
    %v5976 = vrot.slane %v5426, %v5975
    %v5977 = vlaneseq
    %v5978 = vshrl.u32 %v5977, 7
    %v5979 = vsub.s32 %v582, %v5978
    %v5980 = vrot.slane %v5428, %v5979
    %v5981 = vlaneseq
    %v5982 = vshrl.u32 %v5981, 7
    %v5983 = vsub.s32 %v582, %v5982
    %v5984 = vrot.slane %v5430, %v5983
    %v5985 = vlaneseq
    %v5986 = vshrl.u32 %v5985, 7
    %v5987 = vsub.s32 %v582, %v5986
    %v5988 = vrot.slane %v5432, %v5987
    %v5989 = vlaneseq
    %v5990 = vshrl.u32 %v5989, 7
    %v5991 = vsub.s32 %v582, %v5990
    %v5992 = vrot.slane %v5434, %v5991
    %v5993 = vlaneseq
    %v5994 = vshrl.u32 %v5993, 7
    %v5995 = vsub.s32 %v582, %v5994
    %v5996 = vrot.slane %v5436, %v5995
    %v5997 = vlaneseq
    %v5998 = vshrl.u32 %v5997, 7
    %v5999 = vsub.s32 %v582, %v5998
    %v6000 = vrot.slane %v5438, %v5999
    %v6001 = vlaneseq
    %v6002 = vshrl.u32 %v6001, 7
    %v6003 = vsub.s32 %v582, %v6002
    %v6004 = vrot.slane %v5440, %v6003
    %v6005 = vlaneseq
    %v6006 = vshrl.u32 %v6005, 7
    %v6007 = vsub.s32 %v582, %v6006
    %v6008 = vrot.slane %v5442, %v6007
    %v6009 = vlaneseq
    %v6010 = vshrl.u32 %v6009, 7
    %v6011 = vsub.s32 %v582, %v6010
    %v6012 = vrot.slane %v5444, %v6011
    %v6013 = vlaneseq
    %v6014 = vshrl.u32 %v6013, 7
    %v6015 = vsub.s32 %v582, %v6014
    %v6016 = vrot.slane %v5446, %v6015
    %v6017 = vlaneseq
    %v6018 = vshrl.u32 %v6017, 7
    %v6019 = vsub.s32 %v582, %v6018
    %v6020 = vrot.slane %v5448, %v6019
    %v6021 = vlaneseq
    %v6022 = vshrl.u32 %v6021, 7
    %v6023 = vsub.s32 %v582, %v6022
    %v6024 = vrot.slane %v5450, %v6023
    %v6025 = vlaneseq
    %v6026 = vshrl.u32 %v6025, 7
    %v6027 = vsub.s32 %v582, %v6026
    %v6028 = vrot.slane %v5452, %v6027
    %v6029 = vlaneseq
    %v6030 = vshrl.u32 %v6029, 7
    %v6031 = vsub.s32 %v582, %v6030
    %v6032 = vrot.slane %v5454, %v6031
    %v6033 = vlaneseq
    %v6034 = vshrl.u32 %v6033, 7
    %v6035 = vsub.s32 %v582, %v6034
    %v6036 = vrot.slane %v5456, %v6035
    %v6037 = vlaneseq
    %v6038 = vshrl.u32 %v6037, 7
    %v6039 = vsub.s32 %v582, %v6038
    %v6040 = vrot.slane %v5458, %v6039
    %v6041 = vlaneseq
    %v6042 = vshrl.u32 %v6041, 7
    %v6043 = vsub.s32 %v582, %v6042
    %v6044 = vrot.slane %v5460, %v6043
    %v6045 = vlaneseq
    %v6046 = vshrl.u32 %v6045, 7
    %v6047 = vsub.s32 %v582, %v6046
    %v6048 = vrot.slane %v5462, %v6047
    %v6049 = vlaneseq
    %v6050 = vshrl.u32 %v6049, 7
    %v6051 = vsub.s32 %v582, %v6050
    %v6052 = vrot.slane %v5464, %v6051
    %v6053 = vlaneseq
    %v6054 = vshrl.u32 %v6053, 7
    %v6055 = vsub.s32 %v582, %v6054
    %v6056 = vrot.slane %v5466, %v6055
    %v6057 = vlaneseq
    %v6058 = vshrl.u32 %v6057, 7
    %v6059 = vsub.s32 %v582, %v6058
    %v6060 = vrot.slane %v5468, %v6059
    %v6061 = vlaneseq
    %v6062 = vshrl.u32 %v6061, 7
    %v6063 = vsub.s32 %v582, %v6062
    %v6064 = vrot.slane %v5470, %v6063
    %v6065 = vlaneseq
    %v6066 = vshrl.u32 %v6065, 7
    %v6067 = vsub.s32 %v582, %v6066
    %v6068 = vrot.slane %v5472, %v6067
    %v6069 = vlaneseq
    %v6070 = vshrl.u32 %v6069, 7
    %v6071 = vsub.s32 %v582, %v6070
    %v6072 = vrot.slane %v5474, %v6071
    %v6073 = vlaneseq
    %v6074 = vshrl.u32 %v6073, 7
    %v6075 = vsub.s32 %v582, %v6074
    %v6076 = vrot.slane %v5476, %v6075
    %v6077 = vlaneseq
    %v6078 = vshrl.u32 %v6077, 7
    %v6079 = vsub.s32 %v582, %v6078
    %v6080 = vrot.slane %v5478, %v6079
    %v6081 = vlaneseq
    %v6082 = vshrl.u32 %v6081, 7
    %v6083 = vsub.s32 %v582, %v6082
    %v6084 = vrot.slane %v5480, %v6083
    %v6085 = vlaneseq
    %v6086 = vshrl.u32 %v6085, 7
    %v6087 = vsub.s32 %v582, %v6086
    %v6088 = vrot.slane %v5482, %v6087
    %v6089 = vlaneseq
    %v6090 = vshrl.u32 %v6089, 7
    %v6091 = vsub.s32 %v582, %v6090
    %v6092 = vrot.slane %v5484, %v6091
    %v6093 = vlaneseq
    %v6094 = vshrl.u32 %v6093, 7
    %v6095 = vsub.s32 %v582, %v6094
    %v6096 = vrot.slane %v5486, %v6095
    %v6097 = vlaneseq
    %v6098 = vshrl.u32 %v6097, 7
    %v6099 = vsub.s32 %v582, %v6098
    %v6100 = vrot.slane %v5488, %v6099
    %v6101 = vlaneseq
    %v6102 = vshrl.u32 %v6101, 7
    %v6103 = vsub.s32 %v582, %v6102
    %v6104 = vrot.slane %v5490, %v6103
    %v6105 = vlaneseq
    %v6106 = vshrl.u32 %v6105, 7
    %v6107 = vsub.s32 %v582, %v6106
    %v6108 = vrot.slane %v5492, %v6107
    %v6109 = vlaneseq
    %v6110 = vshrl.u32 %v6109, 7
    %v6111 = vsub.s32 %v582, %v6110
    %v6112 = vrot.slane %v5494, %v6111
    %v6113 = vlaneseq
    %v6114 = vshrl.u32 %v6113, 7
    %v6115 = vsub.s32 %v582, %v6114
    %v6116 = vrot.slane %v5496, %v6115
    %v6117 = vlaneseq
    %v6118 = vshrl.u32 %v6117, 7
    %v6119 = vsub.s32 %v582, %v6118
    %v6120 = vrot.slane %v5498, %v6119
    %v6121 = vlaneseq
    %v6122 = vshrl.u32 %v6121, 7
    %v6123 = vsub.s32 %v582, %v6122
    %v6124 = vrot.slane %v5500, %v6123
    %v6125 = vlaneseq
    %v6126 = vshrl.u32 %v6125, 7
    %v6127 = vsub.s32 %v582, %v6126
    %v6128 = vrot.slane %v5502, %v6127
    %v6129 = vlaneseq
    %v6130 = vshrl.u32 %v6129, 7
    %v6131 = vsub.s32 %v582, %v6130
    %v6132 = vrot.slane %v5504, %v6131
    %v6133 = vlaneseq
    %v6134 = vshrl.u32 %v6133, 7
    %v6135 = vsub.s32 %v582, %v6134
    %v6136 = vrot.slane %v5506, %v6135
    %v6137 = vlaneseq
    %v6138 = vshrl.u32 %v6137, 7
    %v6139 = vsub.s32 %v582, %v6138
    %v6140 = vrot.slane %v5508, %v6139
    %v6141 = vlaneseq
    %v6142 = vshrl.u32 %v6141, 7
    %v6143 = vsub.s32 %v582, %v6142
    %v6144 = vrot.slane %v5510, %v6143
    %v6145 = vlaneseq
    %v6146 = vshrl.u32 %v6145, 7
    %v6147 = vsub.s32 %v582, %v6146
    %v6148 = vrot.slane %v5512, %v6147
    %v6149 = vlaneseq
    %v6150 = vshrl.u32 %v6149, 7
    %v6151 = vsub.s32 %v582, %v6150
    %v6152 = vrot.slane %v5514, %v6151
    %v6153 = vlaneseq
    %v6154 = vshrl.u32 %v6153, 7
    %v6155 = vsub.s32 %v582, %v6154
    %v6156 = vrot.slane %v5516, %v6155
    %v6157 = vsel %vm4694, %v5652, %v5648
    %v6158 = vsel %vm4696, %v5656, %v6157
    %v6159 = vsel %vm4698, %v5660, %v6158
    %v6160 = vsel %vm4700, %v5664, %v6159
    %v6161 = vsel %vm4702, %v5668, %v6160
    %v6162 = vsel %vm4704, %v5672, %v6161
    %v6163 = vsel %vm4706, %v5676, %v6162
    %v6164 = vsel %vm4694, %v5684, %v5680
    %v6165 = vsel %vm4696, %v5688, %v6164
    %v6166 = vsel %vm4698, %v5692, %v6165
    %v6167 = vsel %vm4700, %v5696, %v6166
    %v6168 = vsel %vm4702, %v5700, %v6167
    %v6169 = vsel %vm4704, %v5704, %v6168
    %v6170 = vsel %vm4706, %v5708, %v6169
    %v6171 = vsel %vm4694, %v5716, %v5712
    %v6172 = vsel %vm4696, %v5720, %v6171
    %v6173 = vsel %vm4698, %v5724, %v6172
    %v6174 = vsel %vm4700, %v5728, %v6173
    %v6175 = vsel %vm4702, %v5732, %v6174
    %v6176 = vsel %vm4704, %v5736, %v6175
    %v6177 = vsel %vm4706, %v5740, %v6176
    %v6178 = vsel %vm4694, %v5748, %v5744
    %v6179 = vsel %vm4696, %v5752, %v6178
    %v6180 = vsel %vm4698, %v5756, %v6179
    %v6181 = vsel %vm4700, %v5760, %v6180
    %v6182 = vsel %vm4702, %v5764, %v6181
    %v6183 = vsel %vm4704, %v5768, %v6182
    %v6184 = vsel %vm4706, %v5772, %v6183
    %v6185 = vsel %vm4694, %v5780, %v5776
    %v6186 = vsel %vm4696, %v5784, %v6185
    %v6187 = vsel %vm4698, %v5788, %v6186
    %v6188 = vsel %vm4700, %v5792, %v6187
    %v6189 = vsel %vm4702, %v5796, %v6188
    %v6190 = vsel %vm4704, %v5800, %v6189
    %v6191 = vsel %vm4706, %v5804, %v6190
    %v6192 = vsel %vm4694, %v5812, %v5808
    %v6193 = vsel %vm4696, %v5816, %v6192
    %v6194 = vsel %vm4698, %v5820, %v6193
    %v6195 = vsel %vm4700, %v5824, %v6194
    %v6196 = vsel %vm4702, %v5828, %v6195
    %v6197 = vsel %vm4704, %v5832, %v6196
    %v6198 = vsel %vm4706, %v5836, %v6197
    %v6199 = vsel %vm4694, %v5844, %v5840
    %v6200 = vsel %vm4696, %v5848, %v6199
    %v6201 = vsel %vm4698, %v5852, %v6200
    %v6202 = vsel %vm4700, %v5856, %v6201
    %v6203 = vsel %vm4702, %v5860, %v6202
    %v6204 = vsel %vm4704, %v5864, %v6203
    %v6205 = vsel %vm4706, %v5868, %v6204
    %v6206 = vsel %vm4694, %v5876, %v5872
    %v6207 = vsel %vm4696, %v5880, %v6206
    %v6208 = vsel %vm4698, %v5884, %v6207
    %v6209 = vsel %vm4700, %v5888, %v6208
    %v6210 = vsel %vm4702, %v5892, %v6209
    %v6211 = vsel %vm4704, %v5896, %v6210
    %v6212 = vsel %vm4706, %v5900, %v6211
    %v6213 = vsel %vm4694, %v5908, %v5904
    %v6214 = vsel %vm4696, %v5912, %v6213
    %v6215 = vsel %vm4698, %v5916, %v6214
    %v6216 = vsel %vm4700, %v5920, %v6215
    %v6217 = vsel %vm4702, %v5924, %v6216
    %v6218 = vsel %vm4704, %v5928, %v6217
    %v6219 = vsel %vm4706, %v5932, %v6218
    %v6220 = vsel %vm4694, %v5940, %v5936
    %v6221 = vsel %vm4696, %v5944, %v6220
    %v6222 = vsel %vm4698, %v5948, %v6221
    %v6223 = vsel %vm4700, %v5952, %v6222
    %v6224 = vsel %vm4702, %v5956, %v6223
    %v6225 = vsel %vm4704, %v5960, %v6224
    %v6226 = vsel %vm4706, %v5964, %v6225
    %v6227 = vsel %vm4694, %v5972, %v5968
    %v6228 = vsel %vm4696, %v5976, %v6227
    %v6229 = vsel %vm4698, %v5980, %v6228
    %v6230 = vsel %vm4700, %v5984, %v6229
    %v6231 = vsel %vm4702, %v5988, %v6230
    %v6232 = vsel %vm4704, %v5992, %v6231
    %v6233 = vsel %vm4706, %v5996, %v6232
    %v6234 = vsel %vm4694, %v6004, %v6000
    %v6235 = vsel %vm4696, %v6008, %v6234
    %v6236 = vsel %vm4698, %v6012, %v6235
    %v6237 = vsel %vm4700, %v6016, %v6236
    %v6238 = vsel %vm4702, %v6020, %v6237
    %v6239 = vsel %vm4704, %v6024, %v6238
    %v6240 = vsel %vm4706, %v6028, %v6239
    %v6241 = vsel %vm4694, %v6036, %v6032
    %v6242 = vsel %vm4696, %v6040, %v6241
    %v6243 = vsel %vm4698, %v6044, %v6242
    %v6244 = vsel %vm4700, %v6048, %v6243
    %v6245 = vsel %vm4702, %v6052, %v6244
    %v6246 = vsel %vm4704, %v6056, %v6245
    %v6247 = vsel %vm4706, %v6060, %v6246
    %v6248 = vsel %vm4694, %v6068, %v6064
    %v6249 = vsel %vm4696, %v6072, %v6248
    %v6250 = vsel %vm4698, %v6076, %v6249
    %v6251 = vsel %vm4700, %v6080, %v6250
    %v6252 = vsel %vm4702, %v6084, %v6251
    %v6253 = vsel %vm4704, %v6088, %v6252
    %v6254 = vsel %vm4706, %v6092, %v6253
    %v6255 = vsel %vm4694, %v6100, %v6096
    %v6256 = vsel %vm4696, %v6104, %v6255
    %v6257 = vsel %vm4698, %v6108, %v6256
    %v6258 = vsel %vm4700, %v6112, %v6257
    %v6259 = vsel %vm4702, %v6116, %v6258
    %v6260 = vsel %vm4704, %v6120, %v6259
    %v6261 = vsel %vm4706, %v6124, %v6260
    %v6262 = vsel %vm4694, %v6132, %v6128
    %v6263 = vsel %vm4696, %v6136, %v6262
    %v6264 = vsel %vm4698, %v6140, %v6263
    %v6265 = vsel %vm4700, %v6144, %v6264
    %v6266 = vsel %vm4702, %v6148, %v6265
    %v6267 = vsel %vm4704, %v6152, %v6266
    %v6268 = vsel %vm4706, %v6156, %v6267
    %v6285 = vadd.f32 %v4861, %v6163
    %v6286 = vadd.f32 %v4862, %v6170
    %v6287 = vadd.f32 %v4863, %v6177
    %v6288 = vadd.f32 %v4864, %v6184
    %v6289 = vadd.f32 %v4865, %v6191
    %v6290 = vadd.f32 %v4866, %v6198
    %v6291 = vadd.f32 %v4867, %v6205
    %v6292 = vadd.f32 %v4868, %v6212
    %v6293 = vadd.f32 %v4869, %v6219
    %v6294 = vadd.f32 %v4870, %v6226
    %v6295 = vadd.f32 %v4871, %v6233
    %v6296 = vadd.f32 %v4872, %v6240
    %v6297 = vadd.f32 %v4873, %v6247
    %v6298 = vadd.f32 %v4874, %v6254
    %v6299 = vadd.f32 %v4875, %v6261
    %v6300 = vadd.f32 %v4876, %v6268
    %6301 = vst.msk [vmem:[#allocation5] sm:$0xff] %vm2428, %v6285
    %6302 = vst.msk [vmem:[#allocation5 + $0x8] sm:$0xff] %vm2428, %v6286
    %6303 = vst.msk [vmem:[#allocation5 + $0x10] sm:$0xff] %vm2428, %v6287
    %6304 = vst.msk [vmem:[#allocation5 + $0x18] sm:$0xff] %vm2428, %v6288
    %6305 = vst.msk [vmem:[#allocation5 + $0x20] sm:$0xff] %vm2428, %v6289
    %6306 = vst.msk [vmem:[#allocation5 + $0x28] sm:$0xff] %vm2428, %v6290
    %6307 = vst.msk [vmem:[#allocation5 + $0x30] sm:$0xff] %vm2428, %v6291
    %6308 = vst.msk [vmem:[#allocation5 + $0x38] sm:$0xff] %vm2428, %v6292
    %6309 = vst.msk [vmem:[#allocation5 + $0x40] sm:$0xff] %vm2428, %v6293
    %6310 = vst.msk [vmem:[#allocation5 + $0x48] sm:$0xff] %vm2428, %v6294
    %6311 = vst.msk [vmem:[#allocation5 + $0x50] sm:$0xff] %vm2428, %v6295
    %6312 = vst.msk [vmem:[#allocation5 + $0x58] sm:$0xff] %vm2428, %v6296
    %6313 = vst.msk [vmem:[#allocation5 + $0x60] sm:$0xff] %vm2428, %v6297
    %6314 = vst.msk [vmem:[#allocation5 + $0x68] sm:$0xff] %vm2428, %v6298
    %6315 = vst.msk [vmem:[#allocation5 + $0x70] sm:$0xff] %vm2428, %v6299
    %6316 = vst.msk [vmem:[#allocation5 + $0x78] sm:$0xff] %vm2428, %v6300
  $region30: #{tpu_custom_call.1} parent=0 // loop_footer
    %s2466 = sadd.s32 1, %s2462
  $region31: #{tpu_custom_call.1} parent=0 // loop_footer_branch
    %2461 = sbr.rel target = $region27
  $region32: #{tpu_custom_call.1} parent=0 // loop_exit
    _
  %v6317 = vld [vmem:[#allocation4] sm:$0xff]
  %v6318 = vld [vmem:[#allocation4 + $0x8] sm:$0xff]
  %v6319 = vld [vmem:[#allocation4 + $0x10] sm:$0xff]
  %v6320 = vld [vmem:[#allocation4 + $0x18] sm:$0xff]
  %v6321 = vld [vmem:[#allocation4 + $0x20] sm:$0xff]
  %v6322 = vld [vmem:[#allocation4 + $0x28] sm:$0xff]
  %v6323 = vld [vmem:[#allocation4 + $0x30] sm:$0xff]
  %v6324 = vld [vmem:[#allocation4 + $0x38] sm:$0xff]
  %v6325 = vld [vmem:[#allocation4 + $0x40] sm:$0xff]
  %v6326 = vld [vmem:[#allocation4 + $0x48] sm:$0xff]
  %v6327 = vld [vmem:[#allocation4 + $0x50] sm:$0xff]
  %v6328 = vld [vmem:[#allocation4 + $0x58] sm:$0xff]
  %v6329 = vld [vmem:[#allocation4 + $0x60] sm:$0xff]
  %v6330 = vld [vmem:[#allocation4 + $0x68] sm:$0xff]
  %v6331 = vld [vmem:[#allocation4 + $0x70] sm:$0xff]
  %v6332 = vld [vmem:[#allocation4 + $0x78] sm:$0xff]
  %v6333 = vsel %vm2428, %v6317, 0.0
  %6334 = vadd.xlane.f32.xlu0 %v6333
  %v6335 = vpop.xlane.xlu0 %6334
  %v6336 = vsel %vm2428, %v6318, 0.0
  %6337 = vadd.xlane.f32.xlu0 %v6336
  %v6338 = vpop.xlane.xlu0 %6337
  %v6339 = vsel %vm2428, %v6319, 0.0
  %6340 = vadd.xlane.f32.xlu0 %v6339
  %v6341 = vpop.xlane.xlu0 %6340
  %v6342 = vsel %vm2428, %v6320, 0.0
  %6343 = vadd.xlane.f32.xlu0 %v6342
  %v6344 = vpop.xlane.xlu0 %6343
  %v6345 = vsel %vm2428, %v6321, 0.0
  %6346 = vadd.xlane.f32.xlu0 %v6345
  %v6347 = vpop.xlane.xlu0 %6346
  %v6348 = vsel %vm2428, %v6322, 0.0
  %6349 = vadd.xlane.f32.xlu0 %v6348
  %v6350 = vpop.xlane.xlu0 %6349
  %v6351 = vsel %vm2428, %v6323, 0.0
  %6352 = vadd.xlane.f32.xlu0 %v6351
  %v6353 = vpop.xlane.xlu0 %6352
  %v6354 = vsel %vm2428, %v6324, 0.0
  %6355 = vadd.xlane.f32.xlu0 %v6354
  %v6356 = vpop.xlane.xlu0 %6355
  %v6357 = vsel %vm2428, %v6325, 0.0
  %6358 = vadd.xlane.f32.xlu0 %v6357
  %v6359 = vpop.xlane.xlu0 %6358
  %v6360 = vsel %vm2428, %v6326, 0.0
  %6361 = vadd.xlane.f32.xlu0 %v6360
  %v6362 = vpop.xlane.xlu0 %6361
  %v6363 = vsel %vm2428, %v6327, 0.0
  %6364 = vadd.xlane.f32.xlu0 %v6363
  %v6365 = vpop.xlane.xlu0 %6364
  %v6366 = vsel %vm2428, %v6328, 0.0
  %6367 = vadd.xlane.f32.xlu0 %v6366
  %v6368 = vpop.xlane.xlu0 %6367
  %v6369 = vsel %vm2428, %v6329, 0.0
  %6370 = vadd.xlane.f32.xlu0 %v6369
  %v6371 = vpop.xlane.xlu0 %6370
  %v6372 = vsel %vm2428, %v6330, 0.0
  %6373 = vadd.xlane.f32.xlu0 %v6372
  %v6374 = vpop.xlane.xlu0 %6373
  %v6375 = vsel %vm2428, %v6331, 0.0
  %6376 = vadd.xlane.f32.xlu0 %v6375
  %v6377 = vpop.xlane.xlu0 %6376
  %v6378 = vsel %vm2428, %v6332, 0.0
  %6379 = vadd.xlane.f32.xlu0 %v6378
  %v6380 = vpop.xlane.xlu0 %6379
  %vm6381 = vcmask 7168
  %6382 = vst.msk [vmem:[%s6] sm:$0xff] %vm6381, %v6335
  %6383 = vst.msk [vmem:[%s6 + $0x8] sm:$0xff] %vm6381, %v6338
  %6384 = vst.msk [vmem:[%s6 + $0x10] sm:$0xff] %vm6381, %v6341
  %6385 = vst.msk [vmem:[%s6 + $0x18] sm:$0xff] %vm6381, %v6344
  %6386 = vst.msk [vmem:[%s6 + $0x20] sm:$0xff] %vm6381, %v6347
  %6387 = vst.msk [vmem:[%s6 + $0x28] sm:$0xff] %vm6381, %v6350
  %6388 = vst.msk [vmem:[%s6 + $0x30] sm:$0xff] %vm6381, %v6353
  %6389 = vst.msk [vmem:[%s6 + $0x38] sm:$0xff] %vm6381, %v6356
  %6390 = vst.msk [vmem:[%s6 + $0x40] sm:$0xff] %vm6381, %v6359
  %6391 = vst.msk [vmem:[%s6 + $0x48] sm:$0xff] %vm6381, %v6362
  %6392 = vst.msk [vmem:[%s6 + $0x50] sm:$0xff] %vm6381, %v6365
  %6393 = vst.msk [vmem:[%s6 + $0x58] sm:$0xff] %vm6381, %v6368
  %6394 = vst.msk [vmem:[%s6 + $0x60] sm:$0xff] %vm6381, %v6371
  %6395 = vst.msk [vmem:[%s6 + $0x68] sm:$0xff] %vm6381, %v6374
  %6396 = vst.msk [vmem:[%s6 + $0x70] sm:$0xff] %vm6381, %v6377
  %6397 = vst.msk [vmem:[%s6 + $0x78] sm:$0xff] %vm6381, %v6380
  %v6398 = vld [vmem:[#allocation5] sm:$0xff]
  %v6399 = vld [vmem:[#allocation5 + $0x8] sm:$0xff]
  %v6400 = vld [vmem:[#allocation5 + $0x10] sm:$0xff]
  %v6401 = vld [vmem:[#allocation5 + $0x18] sm:$0xff]
  %v6402 = vld [vmem:[#allocation5 + $0x20] sm:$0xff]
  %v6403 = vld [vmem:[#allocation5 + $0x28] sm:$0xff]
  %v6404 = vld [vmem:[#allocation5 + $0x30] sm:$0xff]
  %v6405 = vld [vmem:[#allocation5 + $0x38] sm:$0xff]
  %v6406 = vld [vmem:[#allocation5 + $0x40] sm:$0xff]
  %v6407 = vld [vmem:[#allocation5 + $0x48] sm:$0xff]
  %v6408 = vld [vmem:[#allocation5 + $0x50] sm:$0xff]
  %v6409 = vld [vmem:[#allocation5 + $0x58] sm:$0xff]
  %v6410 = vld [vmem:[#allocation5 + $0x60] sm:$0xff]
  %v6411 = vld [vmem:[#allocation5 + $0x68] sm:$0xff]
  %v6412 = vld [vmem:[#allocation5 + $0x70] sm:$0xff]
  %v6413 = vld [vmem:[#allocation5 + $0x78] sm:$0xff]
  %v6414 = vsel %vm2428, %v6398, 0.0
  %6415 = vadd.xlane.f32.xlu0 %v6414
  %v6416 = vpop.xlane.xlu0 %6415
  %v6417 = vsel %vm2428, %v6399, 0.0
  %6418 = vadd.xlane.f32.xlu0 %v6417
  %v6419 = vpop.xlane.xlu0 %6418
  %v6420 = vsel %vm2428, %v6400, 0.0
  %6421 = vadd.xlane.f32.xlu0 %v6420
  %v6422 = vpop.xlane.xlu0 %6421
  %v6423 = vsel %vm2428, %v6401, 0.0
  %6424 = vadd.xlane.f32.xlu0 %v6423
  %v6425 = vpop.xlane.xlu0 %6424
  %v6426 = vsel %vm2428, %v6402, 0.0
  %6427 = vadd.xlane.f32.xlu0 %v6426
  %v6428 = vpop.xlane.xlu0 %6427
  %v6429 = vsel %vm2428, %v6403, 0.0
  %6430 = vadd.xlane.f32.xlu0 %v6429
  %v6431 = vpop.xlane.xlu0 %6430
  %v6432 = vsel %vm2428, %v6404, 0.0
  %6433 = vadd.xlane.f32.xlu0 %v6432
  %v6434 = vpop.xlane.xlu0 %6433
  %v6435 = vsel %vm2428, %v6405, 0.0
  %6436 = vadd.xlane.f32.xlu0 %v6435
  %v6437 = vpop.xlane.xlu0 %6436
  %v6438 = vsel %vm2428, %v6406, 0.0
  %6439 = vadd.xlane.f32.xlu0 %v6438
  %v6440 = vpop.xlane.xlu0 %6439
  %v6441 = vsel %vm2428, %v6407, 0.0
  %6442 = vadd.xlane.f32.xlu0 %v6441
  %v6443 = vpop.xlane.xlu0 %6442
  %v6444 = vsel %vm2428, %v6408, 0.0
  %6445 = vadd.xlane.f32.xlu0 %v6444
  %v6446 = vpop.xlane.xlu0 %6445
  %v6447 = vsel %vm2428, %v6409, 0.0
  %6448 = vadd.xlane.f32.xlu0 %v6447
  %v6449 = vpop.xlane.xlu0 %6448
  %v6450 = vsel %vm2428, %v6410, 0.0
  %6451 = vadd.xlane.f32.xlu0 %v6450
  %v6452 = vpop.xlane.xlu0 %6451
  %v6453 = vsel %vm2428, %v6411, 0.0
  %6454 = vadd.xlane.f32.xlu0 %v6453
  %v6455 = vpop.xlane.xlu0 %6454
  %v6456 = vsel %vm2428, %v6412, 0.0
  %6457 = vadd.xlane.f32.xlu0 %v6456
  %v6458 = vpop.xlane.xlu0 %6457
  %v6459 = vsel %vm2428, %v6413, 0.0
  %6460 = vadd.xlane.f32.xlu0 %v6459
  %v6461 = vpop.xlane.xlu0 %6460
  %6462 = vst.msk [vmem:[%s7] sm:$0xff] %vm6381, %v6416
  %6463 = vst.msk [vmem:[%s7 + $0x8] sm:$0xff] %vm6381, %v6419
  %6464 = vst.msk [vmem:[%s7 + $0x10] sm:$0xff] %vm6381, %v6422
  %6465 = vst.msk [vmem:[%s7 + $0x18] sm:$0xff] %vm6381, %v6425
  %6466 = vst.msk [vmem:[%s7 + $0x20] sm:$0xff] %vm6381, %v6428
  %6467 = vst.msk [vmem:[%s7 + $0x28] sm:$0xff] %vm6381, %v6431
  %6468 = vst.msk [vmem:[%s7 + $0x30] sm:$0xff] %vm6381, %v6434
  %6469 = vst.msk [vmem:[%s7 + $0x38] sm:$0xff] %vm6381, %v6437
  %6470 = vst.msk [vmem:[%s7 + $0x40] sm:$0xff] %vm6381, %v6440
  %6471 = vst.msk [vmem:[%s7 + $0x48] sm:$0xff] %vm6381, %v6443
  %6472 = vst.msk [vmem:[%s7 + $0x50] sm:$0xff] %vm6381, %v6446
  %6473 = vst.msk [vmem:[%s7 + $0x58] sm:$0xff] %vm6381, %v6449
  %6474 = vst.msk [vmem:[%s7 + $0x60] sm:$0xff] %vm6381, %v6452
  %6475 = vst.msk [vmem:[%s7 + $0x68] sm:$0xff] %vm6381, %v6455
  %6476 = vst.msk [vmem:[%s7 + $0x70] sm:$0xff] %vm6381, %v6458
  %6477 = vst.msk [vmem:[%s7 + $0x78] sm:$0xff] %vm6381, %v6461
  // Predicated region
  $region33: #{tpu_custom_call.1} parent=0 // pred_check
    _
  $region34: #{tpu_custom_call.1} parent=0 // pred_check_branch
    %6479 = sbr.rel (0) target = $region36
  $region35: #{tpu_custom_call.1} parent=0 // pred_region
    _
  $region36: #{tpu_custom_call.1} parent=0 // pred_fallthru
    _
  // Predicated region
  $region37: #{tpu_custom_call.1} parent=0 // pred_check
    _
  $region38: #{tpu_custom_call.1} parent=0 // pred_check_branch
    %6481 = sbr.rel (0) target = $region40
  $region39: #{tpu_custom_call.1} parent=0 // pred_region
    _
  $region40: #{tpu_custom_call.1} parent=0 // pred_fallthru
    _
  // Predicated region
  $region41: #{tpu_custom_call.1} parent=0 // pred_check
    _
  $region42: #{tpu_custom_call.1} parent=0 // pred_check_branch
    %6483 = sbr.rel (0) target = $region44
  $region43: #{tpu_custom_call.1} parent=0 // pred_region
    _
  $region44: #{tpu_custom_call.1} parent=0 // pred_fallthru
    _
  // Predicated region
  $region45: #{tpu_custom_call.1} parent=0 // pred_check
    _
  $region46: #{tpu_custom_call.1} parent=0 // pred_check_branch
    %6485 = sbr.rel (0) target = $region48
  $region47: #{tpu_custom_call.1} parent=0 // pred_region
    _
  $region48: #{tpu_custom_call.1} parent=0 // pred_fallthru
    _

</llo_original>
